<compile_context>
chip_gen: v7x
topology: tpu7x:2x2x1
jax: 0.10.0
libtpu: 0.0.40
codegen_flags: <defaults>
</compile_context>

<pallas_src>
import math

import jax
import jax.numpy as jnp
import numpy as np
from jax.experimental import pallas as pl
from jax.experimental.pallas import tpu as pltpu

# ----- model config (mirrors the PyTorch script) -----
FEATURES = ['close', 'PMA12', 'PMA144', 'PMA169', 'PMA576', 'PMA676', 'MHULL',
            'SHULL', 'KD', 'J', 'RSI', 'MACD', 'Signal Line', 'Histogram',
            'QQE Line', 'Histo2', 'volume', 'Bullish Volume Trend',
            'Bearish Volume Trend']
INPUT_SIZE = len(FEATURES)          # 19
HIDDEN_SIZE = 32
NUM_LAYERS = 2
OUTPUT_SIZE = 1

BATCH = 2
SEQ_LEN = 8

LANE = 128                          # padded per-gate width (lane-aligned gates)
SUBLANE = 8                         # padded batch (one f32 sublane tile)


def _make_lstm_kernel(num_layers: int, b_pad: int, seq_len: int, hp: int,
                      fc_as_reduce: bool):
    """Kernel closed over the static layer/time structure.

    b_pad = batch padded to a sublane tile, hp = padded per-gate hidden width.
    """
    L, T, BP, HP = num_layers, seq_len, b_pad, hp

    def kernel(*refs):
        # refs layout:
        #   x_ref (T*BP, D0_pad) bf16                       -- time-major slab
        #   [w_ih (D_l, 4*HP) bf16, w_hh (HP, 4*HP) bf16, b (1, 4*HP) f32] * L
        #       (layer 0 weights in VMEM; layer>=1 weights are HBM refs)
        #   w_fc, b_fc (VMEM, f32)
        #   out_ref (BP, O)
        #   scratch: xp_scr (T*BP, 4*HP) f32, hseq_scr (T*BP, HP) f32,
        #            [w_ih_buf, w_hh_buf] * (L-1) bf16, DMA sems (2*(L-1),)
        x_ref = refs[0]
        layer_refs = refs[1:1 + 3 * L]
        w_fc_ref = refs[1 + 3 * L]
        b_fc_ref = refs[2 + 3 * L]
        out_ref = refs[3 + 3 * L]
        xp_scr = refs[4 + 3 * L]
        hseq_scr = refs[5 + 3 * L]
        wbufs = refs[6 + 3 * L: 6 + 3 * L + 2 * (L - 1)]
        sems = refs[6 + 3 * L + 2 * (L - 1)] if L > 1 else None

        # Kick off layer>=1 weight DMAs (HBM -> VMEM scratch) right away so
        # they overlap with layer 0's projection + recurrence.
        copies = []
        for l in range(1, L):
            k = l - 1
            c_ih = pltpu.make_async_copy(layer_refs[3 * l], wbufs[2 * k],
                                         sems.at[2 * k])
            c_hh = pltpu.make_async_copy(layer_refs[3 * l + 1], wbufs[2 * k + 1],
                                         sems.at[2 * k + 1])
            c_ih.start()
            c_hh.start()
            copies.append((c_ih, c_hh))

        last_h = None
        for l in range(L):
            b = layer_refs[3 * l + 2][...]                     # (1, 4*HP) f32
            if l == 0:
                w_ih = layer_refs[0][...]                      # (D0_pad, 4*HP) bf16
                w_hh = layer_refs[1][...]                      # (HP, 4*HP) bf16
                seq = x_ref[...]                               # already bf16
            else:
                c_ih, c_hh = copies[l - 1]
                c_ih.wait()
                c_hh.wait()
                w_ih = wbufs[2 * (l - 1)][...]
                w_hh = wbufs[2 * (l - 1) + 1][...]
                seq = hseq_scr[...].astype(jnp.bfloat16)       # (T*BP, HP)

            # Hoisted input projection for all T timesteps (bias folded in),
            # landed in VMEM scratch: only one (BP, 4*HP) slice is live per step.
            xp_scr[...] = jnp.dot(seq, w_ih,
                                  preferred_element_type=jnp.float32) + b

            h = jnp.zeros((BP, HP), jnp.float32)
            c = jnp.zeros((BP, HP), jnp.float32)
            for t in range(T):
                # Only the recurrent matmul + gate math sit on the serial chain;
                # xp is read from scratch at tile-aligned rows.
                g = xp_scr[t * BP:(t + 1) * BP, :] + jnp.dot(
                    h.astype(jnp.bfloat16), w_hh,
                    preferred_element_type=jnp.float32)
                i_g = jax.nn.sigmoid(g[:, 0 * HP:1 * HP])      # whole-vreg slices
                f_g = jax.nn.sigmoid(g[:, 1 * HP:2 * HP])
                g_g = jnp.tanh(g[:, 2 * HP:3 * HP])
                o_g = jax.nn.sigmoid(g[:, 3 * HP:4 * HP])
                c = f_g * c + i_g * g_g
                h = o_g * jnp.tanh(c)
                if l + 1 < L:
                    # tile-aligned (8,128) f32 store, fire-and-forget (off-chain)
                    hseq_scr[t * BP:(t + 1) * BP, :] = h
            last_h = h

        # fc on the last timestep of the top layer (f32, off the recurrent chain).
        if fc_as_reduce:
            # output_size == 1: VPU multiply + lane reduce, no 1-wide MXU dot.
            out = jnp.sum(last_h * w_fc_ref[...], axis=-1, keepdims=True) \
                + b_fc_ref[...]
        else:
            out = jnp.dot(last_h, w_fc_ref[...],
                          preferred_element_type=jnp.float32) + b_fc_ref[...]
        out_ref[...] = out.astype(out_ref.dtype)

    return kernel


def _pack_gate_cols(w_t, h, hp):
    """(D, 4h) -> (D, 4*hp); gate k lives in cols [k*hp, k*hp + h), zeros elsewhere."""
    d = w_t.shape[0]
    out = jnp.zeros((d, 4 * hp), w_t.dtype)
    for k in range(4):
        out = out.at[:, k * hp:k * hp + h].set(w_t[:, k * h:(k + 1) * h])
    return out


def _pad_rows(a, rows):
    return jnp.zeros((rows, a.shape[1]), a.dtype).at[:a.shape[0], :].set(a)


def lstm_model_forward(x, params):
    """x: (B, T, D_in) float32. params: dict of weights (see init_params)."""
    B, T, D = x.shape
    H, HP = HIDDEN_SIZE, LANE
    L = len(params['layers'])
    O = params['fc_w'].shape[0]
    BP = max(SUBLANE, -(-B // SUBLANE) * SUBLANE)      # batch -> sublane tile
    d_pad = -(-D // 16) * 16                           # contraction-dim padding

    # Time-major (T*BP, D_pad) bf16 slab: row index = t*BP + b. Padded batch
    # rows carry garbage downstream but are never read back.
    x_tm = jnp.transpose(x, (1, 0, 2)).astype(jnp.float32)          # (T, B, D)
    x_tm = jnp.pad(x_tm, ((0, 0), (0, BP - B), (0, d_pad - D)))
    x_tb = x_tm.reshape(T * BP, d_pad).astype(jnp.bfloat16)

    vmem = pl.BlockSpec(memory_space=pltpu.MemorySpace.VMEM)
    hbm = pl.BlockSpec(memory_space=pl.ANY)

    flat_inputs = [x_tb]
    in_specs = [vmem]
    for l, (w_ih, w_hh, b_ih, b_hh) in enumerate(params['layers']):
        # pre-transposed, gate-column-padded weights (lane-dense 4*HP = 512)
        w_ih_t = _pack_gate_cols(w_ih.T, H, HP)                  # (D_l, 4*HP)
        w_ih_t = _pad_rows(w_ih_t, d_pad if l == 0 else HP)
        w_hh_t = _pad_rows(_pack_gate_cols(w_hh.T, H, HP), HP)   # (HP, 4*HP)
        b = _pack_gate_cols((b_ih + b_hh).reshape(1, -1), H, HP)  # (1, 4*HP)
        flat_inputs += [w_ih_t.astype(jnp.bfloat16),
                        w_hh_t.astype(jnp.bfloat16),
                        b.astype(jnp.float32)]
        # Layer 0 weights are needed immediately -> VMEM auto-copy. Later
        # layers stay in HBM and are prefetched inside the kernel so their DMA
        # overlaps layer-0 compute.
        in_specs += [vmem, vmem, vmem] if l == 0 else [hbm, hbm, vmem]

    fc_as_reduce = (O == 1)
    if fc_as_reduce:
        w_fc = jnp.zeros((1, HP), jnp.float32).at[:, :H].set(
            params['fc_w'].astype(jnp.float32))                  # (1, HP) row
    else:
        w_fc = _pad_rows(params['fc_w'].T.astype(jnp.float32), HP)  # (HP, O)
    flat_inputs += [w_fc, params['fc_b'].reshape(1, -1).astype(jnp.float32)]
    in_specs += [vmem, vmem]

    scratch_shapes = [pltpu.VMEM((T * BP, 4 * HP), jnp.float32),   # xp slab
                      pltpu.VMEM((T * BP, HP), jnp.float32)]       # inter-layer h
    if L > 1:
        scratch_shapes += [pltpu.VMEM((HP, 4 * HP), jnp.bfloat16)] * (2 * (L - 1))
        scratch_shapes += [pltpu.SemaphoreType.DMA((2 * (L - 1),))]

    kernel = _make_lstm_kernel(L, BP, T, HP, fc_as_reduce)
    out = pl.pallas_call(
        kernel,
        out_shape=jax.ShapeDtypeStruct((BP, O), jnp.float32),
        in_specs=in_specs,
        out_specs=vmem,
        scratch_shapes=scratch_shapes,
    )(*flat_inputs)
    return out[:B]


def init_params(key):
    """Deterministic init matching PyTorch's U(-1/sqrt(H), 1/sqrt(H)) scheme."""
    bound = 1.0 / math.sqrt(HIDDEN_SIZE)
    layers = []
    for l in range(NUM_LAYERS):
        d_in = INPUT_SIZE if l == 0 else HIDDEN_SIZE
        key, k1, k2, k3, k4 = jax.random.split(key, 5)
        w_ih = jax.random.uniform(k1, (4 * HIDDEN_SIZE, d_in), jnp.float32, -bound, bound)
        w_hh = jax.random.uniform(k2, (4 * HIDDEN_SIZE, HIDDEN_SIZE), jnp.float32, -bound, bound)
        b_ih = jax.random.uniform(k3, (4 * HIDDEN_SIZE,), jnp.float32, -bound, bound)
        b_hh = jax.random.uniform(k4, (4 * HIDDEN_SIZE,), jnp.float32, -bound, bound)
        layers.append((w_ih, w_hh, b_ih, b_hh))
    key, k5, k6 = jax.random.split(key, 3)
    fc_w = jax.random.uniform(k5, (OUTPUT_SIZE, HIDDEN_SIZE), jnp.float32, -bound, bound)
    fc_b = jax.random.uniform(k6, (OUTPUT_SIZE,), jnp.float32, -bound, bound)
    return {'layers': layers, 'fc_w': fc_w, 'fc_b': fc_b}


def reference_forward(x, params, matmul_dtype=jnp.float32):
    """Pure-JAX reference (eval mode, no dropout). matmul_dtype controls only the
    LSTM matmul operand precision so we can check against a bf16-matched model."""
    H = HIDDEN_SIZE

    def mm(a, b):
        return jnp.dot(a.astype(matmul_dtype), b.astype(matmul_dtype),
                       preferred_element_type=jnp.float32)

    seq = x.astype(jnp.float32)
    for (w_ih, w_hh, b_ih, b_hh) in params['layers']:
        B, T, _ = seq.shape
        h = jnp.zeros((B, H), jnp.float32)
        c = jnp.zeros((B, H), jnp.float32)
        outs = []
        for t in range(T):
            g = mm(seq[:, t, :], w_ih.T) + mm(h, w_hh.T) + b_ih + b_hh
            i_g = jax.nn.sigmoid(g[:, 0 * H:1 * H])
            f_g = jax.nn.sigmoid(g[:, 1 * H:2 * H])
            g_g = jnp.tanh(g[:, 2 * H:3 * H])
            o_g = jax.nn.sigmoid(g[:, 3 * H:4 * H])
            c = f_g * c + i_g * g_g
            h = o_g * jnp.tanh(c)
            outs.append(h)
        seq = jnp.stack(outs, axis=1)
    return seq[:, -1, :] @ params['fc_w'].T + params['fc_b']


if __name__ == "__main__":
    key = jax.random.PRNGKey(0)
    key, kx = jax.random.split(key)
    x = jax.random.normal(kx, (BATCH, SEQ_LEN, INPUT_SIZE), jnp.float32)
    params = init_params(key)

    out = jax.block_until_ready(lstm_model_forward(x, params))
    assert out.shape == (BATCH, OUTPUT_SIZE)

    # 1) Structural check vs. a reference using the same bf16 MXU-operand scheme.
    ref_matched = reference_forward(x, params, matmul_dtype=jnp.bfloat16)
    np.testing.assert_allclose(np.asarray(out), np.asarray(ref_matched),
                               rtol=5e-3, atol=1e-3)

    # 2) Numerical sanity vs. the full-f32 reference (bf16 only in MXU operands).
    ref_f32 = reference_forward(x, params, matmul_dtype=jnp.float32)
    np.testing.assert_allclose(np.asarray(out), np.asarray(ref_f32),
                               rtol=2e-2, atol=1e-2)

    print("KERNEL_OK")
</pallas_src>

<mosaic_0001>
module attributes {stable_mosaic.version = 11 : i64} {
  func.func @kernel(%arg0: memref<64x32xbf16, #tpu.memory_space<vmem>>, %arg1: memref<32x512xbf16, #tpu.memory_space<vmem>>, %arg2: memref<128x512xbf16, #tpu.memory_space<vmem>>, %arg3: memref<1x512xf32, #tpu.memory_space<vmem>>, %arg4: memref<128x512xbf16, #tpu.memory_space<any>>, %arg5: memref<128x512xbf16, #tpu.memory_space<any>>, %arg6: memref<1x512xf32, #tpu.memory_space<vmem>>, %arg7: memref<1x128xf32, #tpu.memory_space<vmem>>, %arg8: memref<1x1xf32, #tpu.memory_space<vmem>>, %arg9: memref<8x1xf32, #tpu.memory_space<vmem>>, %arg10: memref<64x512xf32, #tpu.memory_space<vmem>>, %arg11: memref<64x128xf32, #tpu.memory_space<vmem>>, %arg12: memref<128x512xbf16, #tpu.memory_space<vmem>>, %arg13: memref<128x512xbf16, #tpu.memory_space<vmem>>, %arg14: memref<2x!tpu.dma_semaphore, #tpu.memory_space<semaphore_mem>>) attributes {dimension_semantics = [], scalar_prefetch = 0 : i64, scratch_operands = 5 : i64, tpu.core_type = #tpu.core_type<tc>} {
    %c0_i32 = arith.constant 0 : i32
    %0 = tpu.memref_slice %arg14[%c0_i32] : memref<2x!tpu.dma_semaphore, #tpu.memory_space<semaphore_mem>> -> memref<1x!tpu.dma_semaphore, #tpu.memory_space<semaphore_mem>>
    %1 = tpu.memref_squeeze %0 : memref<1x!tpu.dma_semaphore, #tpu.memory_space<semaphore_mem>> -> memref<!tpu.dma_semaphore, #tpu.memory_space<semaphore_mem>>
    tpu.enqueue_dma source(%arg4 : memref<128x512xbf16, #tpu.memory_space<any>>) target(%arg12 : memref<128x512xbf16, #tpu.memory_space<vmem>>) target_semaphore(%1 : memref<!tpu.dma_semaphore, #tpu.memory_space<semaphore_mem>>)
    %c1_i32 = arith.constant 1 : i32
    %2 = tpu.memref_slice %arg14[%c1_i32] : memref<2x!tpu.dma_semaphore, #tpu.memory_space<semaphore_mem>> -> memref<1x!tpu.dma_semaphore, #tpu.memory_space<semaphore_mem>>
    %3 = tpu.memref_squeeze %2 : memref<1x!tpu.dma_semaphore, #tpu.memory_space<semaphore_mem>> -> memref<!tpu.dma_semaphore, #tpu.memory_space<semaphore_mem>>
    tpu.enqueue_dma source(%arg5 : memref<128x512xbf16, #tpu.memory_space<any>>) target(%arg13 : memref<128x512xbf16, #tpu.memory_space<vmem>>) target_semaphore(%3 : memref<!tpu.dma_semaphore, #tpu.memory_space<semaphore_mem>>)
    %c0 = arith.constant 0 : index
    %c0_0 = arith.constant 0 : index
    %4 = vector.load %arg3[%c0, %c0_0] : memref<1x512xf32, #tpu.memory_space<vmem>>, vector<1x512xf32>
    %c0_1 = arith.constant 0 : index
    %c0_2 = arith.constant 0 : index
    %5 = vector.load %arg1[%c0_1, %c0_2] : memref<32x512xbf16, #tpu.memory_space<vmem>>, vector<32x512xbf16>
    %c0_3 = arith.constant 0 : index
    %c0_4 = arith.constant 0 : index
    %6 = vector.load %arg2[%c0_3, %c0_4] : memref<128x512xbf16, #tpu.memory_space<vmem>>, vector<128x512xbf16>
    %c0_5 = arith.constant 0 : index
    %c0_6 = arith.constant 0 : index
    %7 = vector.load %arg0[%c0_5, %c0_6] : memref<64x32xbf16, #tpu.memory_space<vmem>>, vector<64x32xbf16>
    %cst = arith.constant dense<0.000000e+00> : vector<64x512xf32>
    %8 = tpu.matmul %7, %5, %cst {dimension_numbers = #tpu.dot_dimension_numbers<[1], [0], [0], [1], [0, 0, 1, 1], [], []>} : vector<64x32xbf16>, vector<32x512xbf16>, vector<64x512xf32> -> vector<64x512xf32>
    %9 = vector.broadcast %4 : vector<1x512xf32> to vector<64x512xf32>
    %10 = arith.addf %8, %9 : vector<64x512xf32>
    %c0_7 = arith.constant 0 : index
    %c0_8 = arith.constant 0 : index
    %11 = vector.load %arg10[%c0_7, %c0_8] : memref<64x512xf32, #tpu.memory_space<vmem>>, vector<64x512xf32>
    tpu.vector_store %arg10[%c0_7, %c0_8], %10 {strides = array<i32>} : memref<64x512xf32, #tpu.memory_space<vmem>>, vector<64x512xf32>,
    %cst_9 = arith.constant 0.000000e+00 : f32
    %12 = vector.broadcast %cst_9 : f32 to vector<8x128xf32>
    %cst_10 = arith.constant 0.000000e+00 : f32
    %13 = vector.broadcast %cst_10 : f32 to vector<8x128xf32>
    %c0_11 = arith.constant 0 : index
    %c0_12 = arith.constant 0 : index
    %14 = vector.load %arg10[%c0_11, %c0_12] : memref<64x512xf32, #tpu.memory_space<vmem>>, vector<8x512xf32>
    %15 = arith.truncf %12 : vector<8x128xf32> to vector<8x128xbf16>
    %cst_13 = arith.constant dense<0.000000e+00> : vector<8x512xf32>
    %16 = tpu.matmul %15, %6, %cst_13 {dimension_numbers = #tpu.dot_dimension_numbers<[1], [0], [0], [1], [0, 0, 1, 1], [], []>} : vector<8x128xbf16>, vector<128x512xbf16>, vector<8x512xf32> -> vector<8x512xf32>
    %17 = arith.addf %14, %16 : vector<8x512xf32>
    %18 = vector.extract_strided_slice %17 {offsets = [0, 0], sizes = [8, 128], strides = [1, 1]} : vector<8x512xf32> to vector<8x128xf32>
    %19 = arith.negf %18 : vector<8x128xf32>
    %20 = math.exp %19 : vector<8x128xf32>
    %cst_14 = arith.constant 1.000000e+00 : f32
    %21 = vector.broadcast %cst_14 : f32 to vector<8x128xf32>
    %22 = arith.addf %21, %20 : vector<8x128xf32>
    %23 = arith.divf %21, %22 : vector<8x128xf32>
    %24 = vector.extract_strided_slice %17 {offsets = [0, 128], sizes = [8, 128], strides = [1, 1]} : vector<8x512xf32> to vector<8x128xf32>
    %25 = arith.negf %24 : vector<8x128xf32>
    %26 = math.exp %25 : vector<8x128xf32>
    %cst_15 = arith.constant 1.000000e+00 : f32
    %27 = vector.broadcast %cst_15 : f32 to vector<8x128xf32>
    %28 = arith.addf %27, %26 : vector<8x128xf32>
    %29 = arith.divf %27, %28 : vector<8x128xf32>
    %30 = vector.extract_strided_slice %17 {offsets = [0, 256], sizes = [8, 128], strides = [1, 1]} : vector<8x512xf32> to vector<8x128xf32>
    %31 = math.tanh %30 : vector<8x128xf32>
    %32 = vector.extract_strided_slice %17 {offsets = [0, 384], sizes = [8, 128], strides = [1, 1]} : vector<8x512xf32> to vector<8x128xf32>
    %33 = arith.negf %32 : vector<8x128xf32>
    %34 = math.exp %33 : vector<8x128xf32>
    %cst_16 = arith.constant 1.000000e+00 : f32
    %35 = vector.broadcast %cst_16 : f32 to vector<8x128xf32>
    %36 = arith.addf %35, %34 : vector<8x128xf32>
    %37 = arith.divf %35, %36 : vector<8x128xf32>
    %38 = arith.mulf %29, %13 : vector<8x128xf32>
    %39 = arith.mulf %23, %31 : vector<8x128xf32>
    %40 = arith.addf %38, %39 : vector<8x128xf32>
    %41 = math.tanh %40 : vector<8x128xf32>
    %42 = arith.mulf %37, %41 : vector<8x128xf32>
    %c0_17 = arith.constant 0 : index
    %c0_18 = arith.constant 0 : index
    %43 = vector.load %arg11[%c0_17, %c0_18] : memref<64x128xf32, #tpu.memory_space<vmem>>, vector<8x128xf32>
    tpu.vector_store %arg11[%c0_17, %c0_18], %42 {strides = array<i32>} : memref<64x128xf32, #tpu.memory_space<vmem>>, vector<8x128xf32>,
    %c8 = arith.constant 8 : index
    %c0_19 = arith.constant 0 : index
    %44 = vector.load %arg10[%c8, %c0_19] : memref<64x512xf32, #tpu.memory_space<vmem>>, vector<8x512xf32>
    %45 = arith.truncf %42 : vector<8x128xf32> to vector<8x128xbf16>
    %cst_20 = arith.constant dense<0.000000e+00> : vector<8x512xf32>
    %46 = tpu.matmul %45, %6, %cst_20 {dimension_numbers = #tpu.dot_dimension_numbers<[1], [0], [0], [1], [0, 0, 1, 1], [], []>} : vector<8x128xbf16>, vector<128x512xbf16>, vector<8x512xf32> -> vector<8x512xf32>
    %47 = arith.addf %44, %46 : vector<8x512xf32>
    %48 = vector.extract_strided_slice %47 {offsets = [0, 0], sizes = [8, 128], strides = [1, 1]} : vector<8x512xf32> to vector<8x128xf32>
    %49 = arith.negf %48 : vector<8x128xf32>
    %50 = math.exp %49 : vector<8x128xf32>
    %cst_21 = arith.constant 1.000000e+00 : f32
    %51 = vector.broadcast %cst_21 : f32 to vector<8x128xf32>
    %52 = arith.addf %51, %50 : vector<8x128xf32>
    %53 = arith.divf %51, %52 : vector<8x128xf32>
    %54 = vector.extract_strided_slice %47 {offsets = [0, 128], sizes = [8, 128], strides = [1, 1]} : vector<8x512xf32> to vector<8x128xf32>
    %55 = arith.negf %54 : vector<8x128xf32>
    %56 = math.exp %55 : vector<8x128xf32>
    %cst_22 = arith.constant 1.000000e+00 : f32
    %57 = vector.broadcast %cst_22 : f32 to vector<8x128xf32>
    %58 = arith.addf %57, %56 : vector<8x128xf32>
    %59 = arith.divf %57, %58 : vector<8x128xf32>
    %60 = vector.extract_strided_slice %47 {offsets = [0, 256], sizes = [8, 128], strides = [1, 1]} : vector<8x512xf32> to vector<8x128xf32>
    %61 = math.tanh %60 : vector<8x128xf32>
    %62 = vector.extract_strided_slice %47 {offsets = [0, 384], sizes = [8, 128], strides = [1, 1]} : vector<8x512xf32> to vector<8x128xf32>
    %63 = arith.negf %62 : vector<8x128xf32>
    %64 = math.exp %63 : vector<8x128xf32>
    %cst_23 = arith.constant 1.000000e+00 : f32
    %65 = vector.broadcast %cst_23 : f32 to vector<8x128xf32>
    %66 = arith.addf %65, %64 : vector<8x128xf32>
    %67 = arith.divf %65, %66 : vector<8x128xf32>
    %68 = arith.mulf %59, %40 : vector<8x128xf32>
    %69 = arith.mulf %53, %61 : vector<8x128xf32>
    %70 = arith.addf %68, %69 : vector<8x128xf32>
    %71 = math.tanh %70 : vector<8x128xf32>
    %72 = arith.mulf %67, %71 : vector<8x128xf32>
    %c8_24 = arith.constant 8 : index
    %c0_25 = arith.constant 0 : index
    %73 = vector.load %arg11[%c8_24, %c0_25] : memref<64x128xf32, #tpu.memory_space<vmem>>, vector<8x128xf32>
    tpu.vector_store %arg11[%c8_24, %c0_25], %72 {strides = array<i32>} : memref<64x128xf32, #tpu.memory_space<vmem>>, vector<8x128xf32>,
    %c16 = arith.constant 16 : index
    %c0_26 = arith.constant 0 : index
    %74 = vector.load %arg10[%c16, %c0_26] : memref<64x512xf32, #tpu.memory_space<vmem>>, vector<8x512xf32>
    %75 = arith.truncf %72 : vector<8x128xf32> to vector<8x128xbf16>
    %cst_27 = arith.constant dense<0.000000e+00> : vector<8x512xf32>
    %76 = tpu.matmul %75, %6, %cst_27 {dimension_numbers = #tpu.dot_dimension_numbers<[1], [0], [0], [1], [0, 0, 1, 1], [], []>} : vector<8x128xbf16>, vector<128x512xbf16>, vector<8x512xf32> -> vector<8x512xf32>
    %77 = arith.addf %74, %76 : vector<8x512xf32>
    %78 = vector.extract_strided_slice %77 {offsets = [0, 0], sizes = [8, 128], strides = [1, 1]} : vector<8x512xf32> to vector<8x128xf32>
    %79 = arith.negf %78 : vector<8x128xf32>
    %80 = math.exp %79 : vector<8x128xf32>
    %cst_28 = arith.constant 1.000000e+00 : f32
    %81 = vector.broadcast %cst_28 : f32 to vector<8x128xf32>
    %82 = arith.addf %81, %80 : vector<8x128xf32>
    %83 = arith.divf %81, %82 : vector<8x128xf32>
    %84 = vector.extract_strided_slice %77 {offsets = [0, 128], sizes = [8, 128], strides = [1, 1]} : vector<8x512xf32> to vector<8x128xf32>
    %85 = arith.negf %84 : vector<8x128xf32>
    %86 = math.exp %85 : vector<8x128xf32>
    %cst_29 = arith.constant 1.000000e+00 : f32
    %87 = vector.broadcast %cst_29 : f32 to vector<8x128xf32>
    %88 = arith.addf %87, %86 : vector<8x128xf32>
    %89 = arith.divf %87, %88 : vector<8x128xf32>
    %90 = vector.extract_strided_slice %77 {offsets = [0, 256], sizes = [8, 128], strides = [1, 1]} : vector<8x512xf32> to vector<8x128xf32>
    %91 = math.tanh %90 : vector<8x128xf32>
    %92 = vector.extract_strided_slice %77 {offsets = [0, 384], sizes = [8, 128], strides = [1, 1]} : vector<8x512xf32> to vector<8x128xf32>
    %93 = arith.negf %92 : vector<8x128xf32>
    %94 = math.exp %93 : vector<8x128xf32>
    %cst_30 = arith.constant 1.000000e+00 : f32
    %95 = vector.broadcast %cst_30 : f32 to vector<8x128xf32>
    %96 = arith.addf %95, %94 : vector<8x128xf32>
    %97 = arith.divf %95, %96 : vector<8x128xf32>
    %98 = arith.mulf %89, %70 : vector<8x128xf32>
    %99 = arith.mulf %83, %91 : vector<8x128xf32>
    %100 = arith.addf %98, %99 : vector<8x128xf32>
    %101 = math.tanh %100 : vector<8x128xf32>
    %102 = arith.mulf %97, %101 : vector<8x128xf32>
    %c16_31 = arith.constant 16 : index
    %c0_32 = arith.constant 0 : index
    %103 = vector.load %arg11[%c16_31, %c0_32] : memref<64x128xf32, #tpu.memory_space<vmem>>, vector<8x128xf32>
    tpu.vector_store %arg11[%c16_31, %c0_32], %102 {strides = array<i32>} : memref<64x128xf32, #tpu.memory_space<vmem>>, vector<8x128xf32>,
    %c24 = arith.constant 24 : index
    %c0_33 = arith.constant 0 : index
    %104 = vector.load %arg10[%c24, %c0_33] : memref<64x512xf32, #tpu.memory_space<vmem>>, vector<8x512xf32>
    %105 = arith.truncf %102 : vector<8x128xf32> to vector<8x128xbf16>
    %cst_34 = arith.constant dense<0.000000e+00> : vector<8x512xf32>
    %106 = tpu.matmul %105, %6, %cst_34 {dimension_numbers = #tpu.dot_dimension_numbers<[1], [0], [0], [1], [0, 0, 1, 1], [], []>} : vector<8x128xbf16>, vector<128x512xbf16>, vector<8x512xf32> -> vector<8x512xf32>
    %107 = arith.addf %104, %106 : vector<8x512xf32>
    %108 = vector.extract_strided_slice %107 {offsets = [0, 0], sizes = [8, 128], strides = [1, 1]} : vector<8x512xf32> to vector<8x128xf32>
    %109 = arith.negf %108 : vector<8x128xf32>
    %110 = math.exp %109 : vector<8x128xf32>
    %cst_35 = arith.constant 1.000000e+00 : f32
    %111 = vector.broadcast %cst_35 : f32 to vector<8x128xf32>
    %112 = arith.addf %111, %110 : vector<8x128xf32>
    %113 = arith.divf %111, %112 : vector<8x128xf32>
    %114 = vector.extract_strided_slice %107 {offsets = [0, 128], sizes = [8, 128], strides = [1, 1]} : vector<8x512xf32> to vector<8x128xf32>
    %115 = arith.negf %114 : vector<8x128xf32>
    %116 = math.exp %115 : vector<8x128xf32>
    %cst_36 = arith.constant 1.000000e+00 : f32
    %117 = vector.broadcast %cst_36 : f32 to vector<8x128xf32>
    %118 = arith.addf %117, %116 : vector<8x128xf32>
    %119 = arith.divf %117, %118 : vector<8x128xf32>
    %120 = vector.extract_strided_slice %107 {offsets = [0, 256], sizes = [8, 128], strides = [1, 1]} : vector<8x512xf32> to vector<8x128xf32>
    %121 = math.tanh %120 : vector<8x128xf32>
    %122 = vector.extract_strided_slice %107 {offsets = [0, 384], sizes = [8, 128], strides = [1, 1]} : vector<8x512xf32> to vector<8x128xf32>
    %123 = arith.negf %122 : vector<8x128xf32>
    %124 = math.exp %123 : vector<8x128xf32>
    %cst_37 = arith.constant 1.000000e+00 : f32
    %125 = vector.broadcast %cst_37 : f32 to vector<8x128xf32>
    %126 = arith.addf %125, %124 : vector<8x128xf32>
    %127 = arith.divf %125, %126 : vector<8x128xf32>
    %128 = arith.mulf %119, %100 : vector<8x128xf32>
    %129 = arith.mulf %113, %121 : vector<8x128xf32>
    %130 = arith.addf %128, %129 : vector<8x128xf32>
    %131 = math.tanh %130 : vector<8x128xf32>
    %132 = arith.mulf %127, %131 : vector<8x128xf32>
    %c24_38 = arith.constant 24 : index
    %c0_39 = arith.constant 0 : index
    %133 = vector.load %arg11[%c24_38, %c0_39] : memref<64x128xf32, #tpu.memory_space<vmem>>, vector<8x128xf32>
    tpu.vector_store %arg11[%c24_38, %c0_39], %132 {strides = array<i32>} : memref<64x128xf32, #tpu.memory_space<vmem>>, vector<8x128xf32>,
    %c32 = arith.constant 32 : index
    %c0_40 = arith.constant 0 : index
    %134 = vector.load %arg10[%c32, %c0_40] : memref<64x512xf32, #tpu.memory_space<vmem>>, vector<8x512xf32>
    %135 = arith.truncf %132 : vector<8x128xf32> to vector<8x128xbf16>
    %cst_41 = arith.constant dense<0.000000e+00> : vector<8x512xf32>
    %136 = tpu.matmul %135, %6, %cst_41 {dimension_numbers = #tpu.dot_dimension_numbers<[1], [0], [0], [1], [0, 0, 1, 1], [], []>} : vector<8x128xbf16>, vector<128x512xbf16>, vector<8x512xf32> -> vector<8x512xf32>
    %137 = arith.addf %134, %136 : vector<8x512xf32>
    %138 = vector.extract_strided_slice %137 {offsets = [0, 0], sizes = [8, 128], strides = [1, 1]} : vector<8x512xf32> to vector<8x128xf32>
    %139 = arith.negf %138 : vector<8x128xf32>
    %140 = math.exp %139 : vector<8x128xf32>
    %cst_42 = arith.constant 1.000000e+00 : f32
    %141 = vector.broadcast %cst_42 : f32 to vector<8x128xf32>
    %142 = arith.addf %141, %140 : vector<8x128xf32>
    %143 = arith.divf %141, %142 : vector<8x128xf32>
    %144 = vector.extract_strided_slice %137 {offsets = [0, 128], sizes = [8, 128], strides = [1, 1]} : vector<8x512xf32> to vector<8x128xf32>
    %145 = arith.negf %144 : vector<8x128xf32>
    %146 = math.exp %145 : vector<8x128xf32>
    %cst_43 = arith.constant 1.000000e+00 : f32
    %147 = vector.broadcast %cst_43 : f32 to vector<8x128xf32>
    %148 = arith.addf %147, %146 : vector<8x128xf32>
    %149 = arith.divf %147, %148 : vector<8x128xf32>
    %150 = vector.extract_strided_slice %137 {offsets = [0, 256], sizes = [8, 128], strides = [1, 1]} : vector<8x512xf32> to vector<8x128xf32>
    %151 = math.tanh %150 : vector<8x128xf32>
    %152 = vector.extract_strided_slice %137 {offsets = [0, 384], sizes = [8, 128], strides = [1, 1]} : vector<8x512xf32> to vector<8x128xf32>
    %153 = arith.negf %152 : vector<8x128xf32>
    %154 = math.exp %153 : vector<8x128xf32>
    %cst_44 = arith.constant 1.000000e+00 : f32
    %155 = vector.broadcast %cst_44 : f32 to vector<8x128xf32>
    %156 = arith.addf %155, %154 : vector<8x128xf32>
    %157 = arith.divf %155, %156 : vector<8x128xf32>
    %158 = arith.mulf %149, %130 : vector<8x128xf32>
    %159 = arith.mulf %143, %151 : vector<8x128xf32>
    %160 = arith.addf %158, %159 : vector<8x128xf32>
    %161 = math.tanh %160 : vector<8x128xf32>
    %162 = arith.mulf %157, %161 : vector<8x128xf32>
    %c32_45 = arith.constant 32 : index
    %c0_46 = arith.constant 0 : index
    %163 = vector.load %arg11[%c32_45, %c0_46] : memref<64x128xf32, #tpu.memory_space<vmem>>, vector<8x128xf32>
    tpu.vector_store %arg11[%c32_45, %c0_46], %162 {strides = array<i32>} : memref<64x128xf32, #tpu.memory_space<vmem>>, vector<8x128xf32>,
    %c40 = arith.constant 40 : index
    %c0_47 = arith.constant 0 : index
    %164 = vector.load %arg10[%c40, %c0_47] : memref<64x512xf32, #tpu.memory_space<vmem>>, vector<8x512xf32>
    %165 = arith.truncf %162 : vector<8x128xf32> to vector<8x128xbf16>
    %cst_48 = arith.constant dense<0.000000e+00> : vector<8x512xf32>
    %166 = tpu.matmul %165, %6, %cst_48 {dimension_numbers = #tpu.dot_dimension_numbers<[1], [0], [0], [1], [0, 0, 1, 1], [], []>} : vector<8x128xbf16>, vector<128x512xbf16>, vector<8x512xf32> -> vector<8x512xf32>
    %167 = arith.addf %164, %166 : vector<8x512xf32>
    %168 = vector.extract_strided_slice %167 {offsets = [0, 0], sizes = [8, 128], strides = [1, 1]} : vector<8x512xf32> to vector<8x128xf32>
    %169 = arith.negf %168 : vector<8x128xf32>
    %170 = math.exp %169 : vector<8x128xf32>
    %cst_49 = arith.constant 1.000000e+00 : f32
    %171 = vector.broadcast %cst_49 : f32 to vector<8x128xf32>
    %172 = arith.addf %171, %170 : vector<8x128xf32>
    %173 = arith.divf %171, %172 : vector<8x128xf32>
    %174 = vector.extract_strided_slice %167 {offsets = [0, 128], sizes = [8, 128], strides = [1, 1]} : vector<8x512xf32> to vector<8x128xf32>
    %175 = arith.negf %174 : vector<8x128xf32>
    %176 = math.exp %175 : vector<8x128xf32>
    %cst_50 = arith.constant 1.000000e+00 : f32
    %177 = vector.broadcast %cst_50 : f32 to vector<8x128xf32>
    %178 = arith.addf %177, %176 : vector<8x128xf32>
    %179 = arith.divf %177, %178 : vector<8x128xf32>
    %180 = vector.extract_strided_slice %167 {offsets = [0, 256], sizes = [8, 128], strides = [1, 1]} : vector<8x512xf32> to vector<8x128xf32>
    %181 = math.tanh %180 : vector<8x128xf32>
    %182 = vector.extract_strided_slice %167 {offsets = [0, 384], sizes = [8, 128], strides = [1, 1]} : vector<8x512xf32> to vector<8x128xf32>
    %183 = arith.negf %182 : vector<8x128xf32>
    %184 = math.exp %183 : vector<8x128xf32>
    %cst_51 = arith.constant 1.000000e+00 : f32
    %185 = vector.broadcast %cst_51 : f32 to vector<8x128xf32>
    %186 = arith.addf %185, %184 : vector<8x128xf32>
    %187 = arith.divf %185, %186 : vector<8x128xf32>
    %188 = arith.mulf %179, %160 : vector<8x128xf32>
    %189 = arith.mulf %173, %181 : vector<8x128xf32>
    %190 = arith.addf %188, %189 : vector<8x128xf32>
    %191 = math.tanh %190 : vector<8x128xf32>
    %192 = arith.mulf %187, %191 : vector<8x128xf32>
    %c40_52 = arith.constant 40 : index
    %c0_53 = arith.constant 0 : index
    %193 = vector.load %arg11[%c40_52, %c0_53] : memref<64x128xf32, #tpu.memory_space<vmem>>, vector<8x128xf32>
    tpu.vector_store %arg11[%c40_52, %c0_53], %192 {strides = array<i32>} : memref<64x128xf32, #tpu.memory_space<vmem>>, vector<8x128xf32>,
    %c48 = arith.constant 48 : index
    %c0_54 = arith.constant 0 : index
    %194 = vector.load %arg10[%c48, %c0_54] : memref<64x512xf32, #tpu.memory_space<vmem>>, vector<8x512xf32>
    %195 = arith.truncf %192 : vector<8x128xf32> to vector<8x128xbf16>
    %cst_55 = arith.constant dense<0.000000e+00> : vector<8x512xf32>
    %196 = tpu.matmul %195, %6, %cst_55 {dimension_numbers = #tpu.dot_dimension_numbers<[1], [0], [0], [1], [0, 0, 1, 1], [], []>} : vector<8x128xbf16>, vector<128x512xbf16>, vector<8x512xf32> -> vector<8x512xf32>
    %197 = arith.addf %194, %196 : vector<8x512xf32>
    %198 = vector.extract_strided_slice %197 {offsets = [0, 0], sizes = [8, 128], strides = [1, 1]} : vector<8x512xf32> to vector<8x128xf32>
    %199 = arith.negf %198 : vector<8x128xf32>
    %200 = math.exp %199 : vector<8x128xf32>
    %cst_56 = arith.constant 1.000000e+00 : f32
    %201 = vector.broadcast %cst_56 : f32 to vector<8x128xf32>
    %202 = arith.addf %201, %200 : vector<8x128xf32>
    %203 = arith.divf %201, %202 : vector<8x128xf32>
    %204 = vector.extract_strided_slice %197 {offsets = [0, 128], sizes = [8, 128], strides = [1, 1]} : vector<8x512xf32> to vector<8x128xf32>
    %205 = arith.negf %204 : vector<8x128xf32>
    %206 = math.exp %205 : vector<8x128xf32>
    %cst_57 = arith.constant 1.000000e+00 : f32
    %207 = vector.broadcast %cst_57 : f32 to vector<8x128xf32>
    %208 = arith.addf %207, %206 : vector<8x128xf32>
    %209 = arith.divf %207, %208 : vector<8x128xf32>
    %210 = vector.extract_strided_slice %197 {offsets = [0, 256], sizes = [8, 128], strides = [1, 1]} : vector<8x512xf32> to vector<8x128xf32>
    %211 = math.tanh %210 : vector<8x128xf32>
    %212 = vector.extract_strided_slice %197 {offsets = [0, 384], sizes = [8, 128], strides = [1, 1]} : vector<8x512xf32> to vector<8x128xf32>
    %213 = arith.negf %212 : vector<8x128xf32>
    %214 = math.exp %213 : vector<8x128xf32>
    %cst_58 = arith.constant 1.000000e+00 : f32
    %215 = vector.broadcast %cst_58 : f32 to vector<8x128xf32>
    %216 = arith.addf %215, %214 : vector<8x128xf32>
    %217 = arith.divf %215, %216 : vector<8x128xf32>
    %218 = arith.mulf %209, %190 : vector<8x128xf32>
    %219 = arith.mulf %203, %211 : vector<8x128xf32>
    %220 = arith.addf %218, %219 : vector<8x128xf32>
    %221 = math.tanh %220 : vector<8x128xf32>
    %222 = arith.mulf %217, %221 : vector<8x128xf32>
    %c48_59 = arith.constant 48 : index
    %c0_60 = arith.constant 0 : index
    %223 = vector.load %arg11[%c48_59, %c0_60] : memref<64x128xf32, #tpu.memory_space<vmem>>, vector<8x128xf32>
    tpu.vector_store %arg11[%c48_59, %c0_60], %222 {strides = array<i32>} : memref<64x128xf32, #tpu.memory_space<vmem>>, vector<8x128xf32>,
    %c56 = arith.constant 56 : index
    %c0_61 = arith.constant 0 : index
    %224 = vector.load %arg10[%c56, %c0_61] : memref<64x512xf32, #tpu.memory_space<vmem>>, vector<8x512xf32>
    %225 = arith.truncf %222 : vector<8x128xf32> to vector<8x128xbf16>
    %cst_62 = arith.constant dense<0.000000e+00> : vector<8x512xf32>
    %226 = tpu.matmul %225, %6, %cst_62 {dimension_numbers = #tpu.dot_dimension_numbers<[1], [0], [0], [1], [0, 0, 1, 1], [], []>} : vector<8x128xbf16>, vector<128x512xbf16>, vector<8x512xf32> -> vector<8x512xf32>
    %227 = arith.addf %224, %226 : vector<8x512xf32>
    %228 = vector.extract_strided_slice %227 {offsets = [0, 0], sizes = [8, 128], strides = [1, 1]} : vector<8x512xf32> to vector<8x128xf32>
    %229 = arith.negf %228 : vector<8x128xf32>
    %230 = math.exp %229 : vector<8x128xf32>
    %cst_63 = arith.constant 1.000000e+00 : f32
    %231 = vector.broadcast %cst_63 : f32 to vector<8x128xf32>
    %232 = arith.addf %231, %230 : vector<8x128xf32>
    %233 = arith.divf %231, %232 : vector<8x128xf32>
    %234 = vector.extract_strided_slice %227 {offsets = [0, 128], sizes = [8, 128], strides = [1, 1]} : vector<8x512xf32> to vector<8x128xf32>
    %235 = arith.negf %234 : vector<8x128xf32>
    %236 = math.exp %235 : vector<8x128xf32>
    %cst_64 = arith.constant 1.000000e+00 : f32
    %237 = vector.broadcast %cst_64 : f32 to vector<8x128xf32>
    %238 = arith.addf %237, %236 : vector<8x128xf32>
    %239 = arith.divf %237, %238 : vector<8x128xf32>
    %240 = vector.extract_strided_slice %227 {offsets = [0, 256], sizes = [8, 128], strides = [1, 1]} : vector<8x512xf32> to vector<8x128xf32>
    %241 = math.tanh %240 : vector<8x128xf32>
    %242 = vector.extract_strided_slice %227 {offsets = [0, 384], sizes = [8, 128], strides = [1, 1]} : vector<8x512xf32> to vector<8x128xf32>
    %243 = arith.negf %242 : vector<8x128xf32>
    %244 = math.exp %243 : vector<8x128xf32>
    %cst_65 = arith.constant 1.000000e+00 : f32
    %245 = vector.broadcast %cst_65 : f32 to vector<8x128xf32>
    %246 = arith.addf %245, %244 : vector<8x128xf32>
    %247 = arith.divf %245, %246 : vector<8x128xf32>
    %248 = arith.mulf %239, %220 : vector<8x128xf32>
    %249 = arith.mulf %233, %241 : vector<8x128xf32>
    %250 = arith.addf %248, %249 : vector<8x128xf32>
    %251 = math.tanh %250 : vector<8x128xf32>
    %252 = arith.mulf %247, %251 : vector<8x128xf32>
    %c56_66 = arith.constant 56 : index
    %c0_67 = arith.constant 0 : index
    %253 = vector.load %arg11[%c56_66, %c0_67] : memref<64x128xf32, #tpu.memory_space<vmem>>, vector<8x128xf32>
    tpu.vector_store %arg11[%c56_66, %c0_67], %252 {strides = array<i32>} : memref<64x128xf32, #tpu.memory_space<vmem>>, vector<8x128xf32>,
    %c0_68 = arith.constant 0 : index
    %c0_69 = arith.constant 0 : index
    %254 = vector.load %arg6[%c0_68, %c0_69] : memref<1x512xf32, #tpu.memory_space<vmem>>, vector<1x512xf32>
    %c0_i32_70 = arith.constant 0 : i32
    %255 = tpu.memref_slice %arg14[%c0_i32_70] : memref<2x!tpu.dma_semaphore, #tpu.memory_space<semaphore_mem>> -> memref<1x!tpu.dma_semaphore, #tpu.memory_space<semaphore_mem>>
    %256 = tpu.memref_squeeze %255 : memref<1x!tpu.dma_semaphore, #tpu.memory_space<semaphore_mem>> -> memref<!tpu.dma_semaphore, #tpu.memory_space<semaphore_mem>>
    tpu.wait_dma2 semaphore(%256 : memref<!tpu.dma_semaphore, #tpu.memory_space<semaphore_mem>>) src(%arg4 : memref<128x512xbf16, #tpu.memory_space<any>>) dst(%arg12 : memref<128x512xbf16, #tpu.memory_space<vmem>>)
    %c1_i32_71 = arith.constant 1 : i32
    %257 = tpu.memref_slice %arg14[%c1_i32_71] : memref<2x!tpu.dma_semaphore, #tpu.memory_space<semaphore_mem>> -> memref<1x!tpu.dma_semaphore, #tpu.memory_space<semaphore_mem>>
    %258 = tpu.memref_squeeze %257 : memref<1x!tpu.dma_semaphore, #tpu.memory_space<semaphore_mem>> -> memref<!tpu.dma_semaphore, #tpu.memory_space<semaphore_mem>>
    tpu.wait_dma2 semaphore(%258 : memref<!tpu.dma_semaphore, #tpu.memory_space<semaphore_mem>>) src(%arg5 : memref<128x512xbf16, #tpu.memory_space<any>>) dst(%arg13 : memref<128x512xbf16, #tpu.memory_space<vmem>>)
    %c0_72 = arith.constant 0 : index
    %c0_73 = arith.constant 0 : index
    %259 = vector.load %arg12[%c0_72, %c0_73] : memref<128x512xbf16, #tpu.memory_space<vmem>>, vector<128x512xbf16>
    %c0_74 = arith.constant 0 : index
    %c0_75 = arith.constant 0 : index
    %260 = vector.load %arg13[%c0_74, %c0_75] : memref<128x512xbf16, #tpu.memory_space<vmem>>, vector<128x512xbf16>
    %c0_76 = arith.constant 0 : index
    %c0_77 = arith.constant 0 : index
    %261 = vector.load %arg11[%c0_76, %c0_77] : memref<64x128xf32, #tpu.memory_space<vmem>>, vector<64x128xf32>
    %262 = arith.truncf %261 : vector<64x128xf32> to vector<64x128xbf16>
    %cst_78 = arith.constant dense<0.000000e+00> : vector<64x512xf32>
    %263 = tpu.matmul %262, %259, %cst_78 {dimension_numbers = #tpu.dot_dimension_numbers<[1], [0], [0], [1], [0, 0, 1, 1], [], []>} : vector<64x128xbf16>, vector<128x512xbf16>, vector<64x512xf32> -> vector<64x512xf32>
    %264 = vector.broadcast %254 : vector<1x512xf32> to vector<64x512xf32>
    %265 = arith.addf %263, %264 : vector<64x512xf32>
    %c0_79 = arith.constant 0 : index
    %c0_80 = arith.constant 0 : index
    %266 = vector.load %arg10[%c0_79, %c0_80] : memref<64x512xf32, #tpu.memory_space<vmem>>, vector<64x512xf32>
    tpu.vector_store %arg10[%c0_79, %c0_80], %265 {strides = array<i32>} : memref<64x512xf32, #tpu.memory_space<vmem>>, vector<64x512xf32>,
    %cst_81 = arith.constant 0.000000e+00 : f32
    %267 = vector.broadcast %cst_81 : f32 to vector<8x128xf32>
    %cst_82 = arith.constant 0.000000e+00 : f32
    %268 = vector.broadcast %cst_82 : f32 to vector<8x128xf32>
    %c0_83 = arith.constant 0 : index
    %c0_84 = arith.constant 0 : index
    %269 = vector.load %arg10[%c0_83, %c0_84] : memref<64x512xf32, #tpu.memory_space<vmem>>, vector<8x512xf32>
    %270 = arith.truncf %267 : vector<8x128xf32> to vector<8x128xbf16>
    %cst_85 = arith.constant dense<0.000000e+00> : vector<8x512xf32>
    %271 = tpu.matmul %270, %260, %cst_85 {dimension_numbers = #tpu.dot_dimension_numbers<[1], [0], [0], [1], [0, 0, 1, 1], [], []>} : vector<8x128xbf16>, vector<128x512xbf16>, vector<8x512xf32> -> vector<8x512xf32>
    %272 = arith.addf %269, %271 : vector<8x512xf32>
    %273 = vector.extract_strided_slice %272 {offsets = [0, 0], sizes = [8, 128], strides = [1, 1]} : vector<8x512xf32> to vector<8x128xf32>
    %274 = arith.negf %273 : vector<8x128xf32>
    %275 = math.exp %274 : vector<8x128xf32>
    %cst_86 = arith.constant 1.000000e+00 : f32
    %276 = vector.broadcast %cst_86 : f32 to vector<8x128xf32>
    %277 = arith.addf %276, %275 : vector<8x128xf32>
    %278 = arith.divf %276, %277 : vector<8x128xf32>
    %279 = vector.extract_strided_slice %272 {offsets = [0, 128], sizes = [8, 128], strides = [1, 1]} : vector<8x512xf32> to vector<8x128xf32>
    %280 = arith.negf %279 : vector<8x128xf32>
    %281 = math.exp %280 : vector<8x128xf32>
    %cst_87 = arith.constant 1.000000e+00 : f32
    %282 = vector.broadcast %cst_87 : f32 to vector<8x128xf32>
    %283 = arith.addf %282, %281 : vector<8x128xf32>
    %284 = arith.divf %282, %283 : vector<8x128xf32>
    %285 = vector.extract_strided_slice %272 {offsets = [0, 256], sizes = [8, 128], strides = [1, 1]} : vector<8x512xf32> to vector<8x128xf32>
    %286 = math.tanh %285 : vector<8x128xf32>
    %287 = vector.extract_strided_slice %272 {offsets = [0, 384], sizes = [8, 128], strides = [1, 1]} : vector<8x512xf32> to vector<8x128xf32>
    %288 = arith.negf %287 : vector<8x128xf32>
    %289 = math.exp %288 : vector<8x128xf32>
    %cst_88 = arith.constant 1.000000e+00 : f32
    %290 = vector.broadcast %cst_88 : f32 to vector<8x128xf32>
    %291 = arith.addf %290, %289 : vector<8x128xf32>
    %292 = arith.divf %290, %291 : vector<8x128xf32>
    %293 = arith.mulf %284, %268 : vector<8x128xf32>
    %294 = arith.mulf %278, %286 : vector<8x128xf32>
    %295 = arith.addf %293, %294 : vector<8x128xf32>
    %296 = math.tanh %295 : vector<8x128xf32>
    %297 = arith.mulf %292, %296 : vector<8x128xf32>
    %c8_89 = arith.constant 8 : index
    %c0_90 = arith.constant 0 : index
    %298 = vector.load %arg10[%c8_89, %c0_90] : memref<64x512xf32, #tpu.memory_space<vmem>>, vector<8x512xf32>
    %299 = arith.truncf %297 : vector<8x128xf32> to vector<8x128xbf16>
    %cst_91 = arith.constant dense<0.000000e+00> : vector<8x512xf32>
    %300 = tpu.matmul %299, %260, %cst_91 {dimension_numbers = #tpu.dot_dimension_numbers<[1], [0], [0], [1], [0, 0, 1, 1], [], []>} : vector<8x128xbf16>, vector<128x512xbf16>, vector<8x512xf32> -> vector<8x512xf32>
    %301 = arith.addf %298, %300 : vector<8x512xf32>
    %302 = vector.extract_strided_slice %301 {offsets = [0, 0], sizes = [8, 128], strides = [1, 1]} : vector<8x512xf32> to vector<8x128xf32>
    %303 = arith.negf %302 : vector<8x128xf32>
    %304 = math.exp %303 : vector<8x128xf32>
    %cst_92 = arith.constant 1.000000e+00 : f32
    %305 = vector.broadcast %cst_92 : f32 to vector<8x128xf32>
    %306 = arith.addf %305, %304 : vector<8x128xf32>
    %307 = arith.divf %305, %306 : vector<8x128xf32>
    %308 = vector.extract_strided_slice %301 {offsets = [0, 128], sizes = [8, 128], strides = [1, 1]} : vector<8x512xf32> to vector<8x128xf32>
    %309 = arith.negf %308 : vector<8x128xf32>
    %310 = math.exp %309 : vector<8x128xf32>
    %cst_93 = arith.constant 1.000000e+00 : f32
    %311 = vector.broadcast %cst_93 : f32 to vector<8x128xf32>
    %312 = arith.addf %311, %310 : vector<8x128xf32>
    %313 = arith.divf %311, %312 : vector<8x128xf32>
    %314 = vector.extract_strided_slice %301 {offsets = [0, 256], sizes = [8, 128], strides = [1, 1]} : vector<8x512xf32> to vector<8x128xf32>
    %315 = math.tanh %314 : vector<8x128xf32>
    %316 = vector.extract_strided_slice %301 {offsets = [0, 384], sizes = [8, 128], strides = [1, 1]} : vector<8x512xf32> to vector<8x128xf32>
    %317 = arith.negf %316 : vector<8x128xf32>
    %318 = math.exp %317 : vector<8x128xf32>
    %cst_94 = arith.constant 1.000000e+00 : f32
    %319 = vector.broadcast %cst_94 : f32 to vector<8x128xf32>
    %320 = arith.addf %319, %318 : vector<8x128xf32>
    %321 = arith.divf %319, %320 : vector<8x128xf32>
    %322 = arith.mulf %313, %295 : vector<8x128xf32>
    %323 = arith.mulf %307, %315 : vector<8x128xf32>
    %324 = arith.addf %322, %323 : vector<8x128xf32>
    %325 = math.tanh %324 : vector<8x128xf32>
    %326 = arith.mulf %321, %325 : vector<8x128xf32>
    %c16_95 = arith.constant 16 : index
    %c0_96 = arith.constant 0 : index
    %327 = vector.load %arg10[%c16_95, %c0_96] : memref<64x512xf32, #tpu.memory_space<vmem>>, vector<8x512xf32>
    %328 = arith.truncf %326 : vector<8x128xf32> to vector<8x128xbf16>
    %cst_97 = arith.constant dense<0.000000e+00> : vector<8x512xf32>
    %329 = tpu.matmul %328, %260, %cst_97 {dimension_numbers = #tpu.dot_dimension_numbers<[1], [0], [0], [1], [0, 0, 1, 1], [], []>} : vector<8x128xbf16>, vector<128x512xbf16>, vector<8x512xf32> -> vector<8x512xf32>
    %330 = arith.addf %327, %329 : vector<8x512xf32>
    %331 = vector.extract_strided_slice %330 {offsets = [0, 0], sizes = [8, 128], strides = [1, 1]} : vector<8x512xf32> to vector<8x128xf32>
    %332 = arith.negf %331 : vector<8x128xf32>
    %333 = math.exp %332 : vector<8x128xf32>
    %cst_98 = arith.constant 1.000000e+00 : f32
    %334 = vector.broadcast %cst_98 : f32 to vector<8x128xf32>
    %335 = arith.addf %334, %333 : vector<8x128xf32>
    %336 = arith.divf %334, %335 : vector<8x128xf32>
    %337 = vector.extract_strided_slice %330 {offsets = [0, 128], sizes = [8, 128], strides = [1, 1]} : vector<8x512xf32> to vector<8x128xf32>
    %338 = arith.negf %337 : vector<8x128xf32>
    %339 = math.exp %338 : vector<8x128xf32>
    %cst_99 = arith.constant 1.000000e+00 : f32
    %340 = vector.broadcast %cst_99 : f32 to vector<8x128xf32>
    %341 = arith.addf %340, %339 : vector<8x128xf32>
    %342 = arith.divf %340, %341 : vector<8x128xf32>
    %343 = vector.extract_strided_slice %330 {offsets = [0, 256], sizes = [8, 128], strides = [1, 1]} : vector<8x512xf32> to vector<8x128xf32>
    %344 = math.tanh %343 : vector<8x128xf32>
    %345 = vector.extract_strided_slice %330 {offsets = [0, 384], sizes = [8, 128], strides = [1, 1]} : vector<8x512xf32> to vector<8x128xf32>
    %346 = arith.negf %345 : vector<8x128xf32>
    %347 = math.exp %346 : vector<8x128xf32>
    %cst_100 = arith.constant 1.000000e+00 : f32
    %348 = vector.broadcast %cst_100 : f32 to vector<8x128xf32>
    %349 = arith.addf %348, %347 : vector<8x128xf32>
    %350 = arith.divf %348, %349 : vector<8x128xf32>
    %351 = arith.mulf %342, %324 : vector<8x128xf32>
    %352 = arith.mulf %336, %344 : vector<8x128xf32>
    %353 = arith.addf %351, %352 : vector<8x128xf32>
    %354 = math.tanh %353 : vector<8x128xf32>
    %355 = arith.mulf %350, %354 : vector<8x128xf32>
    %c24_101 = arith.constant 24 : index
    %c0_102 = arith.constant 0 : index
    %356 = vector.load %arg10[%c24_101, %c0_102] : memref<64x512xf32, #tpu.memory_space<vmem>>, vector<8x512xf32>
    %357 = arith.truncf %355 : vector<8x128xf32> to vector<8x128xbf16>
    %cst_103 = arith.constant dense<0.000000e+00> : vector<8x512xf32>
    %358 = tpu.matmul %357, %260, %cst_103 {dimension_numbers = #tpu.dot_dimension_numbers<[1], [0], [0], [1], [0, 0, 1, 1], [], []>} : vector<8x128xbf16>, vector<128x512xbf16>, vector<8x512xf32> -> vector<8x512xf32>
    %359 = arith.addf %356, %358 : vector<8x512xf32>
    %360 = vector.extract_strided_slice %359 {offsets = [0, 0], sizes = [8, 128], strides = [1, 1]} : vector<8x512xf32> to vector<8x128xf32>
    %361 = arith.negf %360 : vector<8x128xf32>
    %362 = math.exp %361 : vector<8x128xf32>
    %cst_104 = arith.constant 1.000000e+00 : f32
    %363 = vector.broadcast %cst_104 : f32 to vector<8x128xf32>
    %364 = arith.addf %363, %362 : vector<8x128xf32>
    %365 = arith.divf %363, %364 : vector<8x128xf32>
    %366 = vector.extract_strided_slice %359 {offsets = [0, 128], sizes = [8, 128], strides = [1, 1]} : vector<8x512xf32> to vector<8x128xf32>
    %367 = arith.negf %366 : vector<8x128xf32>
    %368 = math.exp %367 : vector<8x128xf32>
    %cst_105 = arith.constant 1.000000e+00 : f32
    %369 = vector.broadcast %cst_105 : f32 to vector<8x128xf32>
    %370 = arith.addf %369, %368 : vector<8x128xf32>
    %371 = arith.divf %369, %370 : vector<8x128xf32>
    %372 = vector.extract_strided_slice %359 {offsets = [0, 256], sizes = [8, 128], strides = [1, 1]} : vector<8x512xf32> to vector<8x128xf32>
    %373 = math.tanh %372 : vector<8x128xf32>
    %374 = vector.extract_strided_slice %359 {offsets = [0, 384], sizes = [8, 128], strides = [1, 1]} : vector<8x512xf32> to vector<8x128xf32>
    %375 = arith.negf %374 : vector<8x128xf32>
    %376 = math.exp %375 : vector<8x128xf32>
    %cst_106 = arith.constant 1.000000e+00 : f32
    %377 = vector.broadcast %cst_106 : f32 to vector<8x128xf32>
    %378 = arith.addf %377, %376 : vector<8x128xf32>
    %379 = arith.divf %377, %378 : vector<8x128xf32>
    %380 = arith.mulf %371, %353 : vector<8x128xf32>
    %381 = arith.mulf %365, %373 : vector<8x128xf32>
    %382 = arith.addf %380, %381 : vector<8x128xf32>
    %383 = math.tanh %382 : vector<8x128xf32>
    %384 = arith.mulf %379, %383 : vector<8x128xf32>
    %c32_107 = arith.constant 32 : index
    %c0_108 = arith.constant 0 : index
    %385 = vector.load %arg10[%c32_107, %c0_108] : memref<64x512xf32, #tpu.memory_space<vmem>>, vector<8x512xf32>
    %386 = arith.truncf %384 : vector<8x128xf32> to vector<8x128xbf16>
    %cst_109 = arith.constant dense<0.000000e+00> : vector<8x512xf32>
    %387 = tpu.matmul %386, %260, %cst_109 {dimension_numbers = #tpu.dot_dimension_numbers<[1], [0], [0], [1], [0, 0, 1, 1], [], []>} : vector<8x128xbf16>, vector<128x512xbf16>, vector<8x512xf32> -> vector<8x512xf32>
    %388 = arith.addf %385, %387 : vector<8x512xf32>
    %389 = vector.extract_strided_slice %388 {offsets = [0, 0], sizes = [8, 128], strides = [1, 1]} : vector<8x512xf32> to vector<8x128xf32>
    %390 = arith.negf %389 : vector<8x128xf32>
    %391 = math.exp %390 : vector<8x128xf32>
    %cst_110 = arith.constant 1.000000e+00 : f32
    %392 = vector.broadcast %cst_110 : f32 to vector<8x128xf32>
    %393 = arith.addf %392, %391 : vector<8x128xf32>
    %394 = arith.divf %392, %393 : vector<8x128xf32>
    %395 = vector.extract_strided_slice %388 {offsets = [0, 128], sizes = [8, 128], strides = [1, 1]} : vector<8x512xf32> to vector<8x128xf32>
    %396 = arith.negf %395 : vector<8x128xf32>
    %397 = math.exp %396 : vector<8x128xf32>
    %cst_111 = arith.constant 1.000000e+00 : f32
    %398 = vector.broadcast %cst_111 : f32 to vector<8x128xf32>
    %399 = arith.addf %398, %397 : vector<8x128xf32>
    %400 = arith.divf %398, %399 : vector<8x128xf32>
    %401 = vector.extract_strided_slice %388 {offsets = [0, 256], sizes = [8, 128], strides = [1, 1]} : vector<8x512xf32> to vector<8x128xf32>
    %402 = math.tanh %401 : vector<8x128xf32>
    %403 = vector.extract_strided_slice %388 {offsets = [0, 384], sizes = [8, 128], strides = [1, 1]} : vector<8x512xf32> to vector<8x128xf32>
    %404 = arith.negf %403 : vector<8x128xf32>
    %405 = math.exp %404 : vector<8x128xf32>
    %cst_112 = arith.constant 1.000000e+00 : f32
    %406 = vector.broadcast %cst_112 : f32 to vector<8x128xf32>
    %407 = arith.addf %406, %405 : vector<8x128xf32>
    %408 = arith.divf %406, %407 : vector<8x128xf32>
    %409 = arith.mulf %400, %382 : vector<8x128xf32>
    %410 = arith.mulf %394, %402 : vector<8x128xf32>
    %411 = arith.addf %409, %410 : vector<8x128xf32>
    %412 = math.tanh %411 : vector<8x128xf32>
    %413 = arith.mulf %408, %412 : vector<8x128xf32>
    %c40_113 = arith.constant 40 : index
    %c0_114 = arith.constant 0 : index
    %414 = vector.load %arg10[%c40_113, %c0_114] : memref<64x512xf32, #tpu.memory_space<vmem>>, vector<8x512xf32>
    %415 = arith.truncf %413 : vector<8x128xf32> to vector<8x128xbf16>
    %cst_115 = arith.constant dense<0.000000e+00> : vector<8x512xf32>
    %416 = tpu.matmul %415, %260, %cst_115 {dimension_numbers = #tpu.dot_dimension_numbers<[1], [0], [0], [1], [0, 0, 1, 1], [], []>} : vector<8x128xbf16>, vector<128x512xbf16>, vector<8x512xf32> -> vector<8x512xf32>
    %417 = arith.addf %414, %416 : vector<8x512xf32>
    %418 = vector.extract_strided_slice %417 {offsets = [0, 0], sizes = [8, 128], strides = [1, 1]} : vector<8x512xf32> to vector<8x128xf32>
    %419 = arith.negf %418 : vector<8x128xf32>
    %420 = math.exp %419 : vector<8x128xf32>
    %cst_116 = arith.constant 1.000000e+00 : f32
    %421 = vector.broadcast %cst_116 : f32 to vector<8x128xf32>
    %422 = arith.addf %421, %420 : vector<8x128xf32>
    %423 = arith.divf %421, %422 : vector<8x128xf32>
    %424 = vector.extract_strided_slice %417 {offsets = [0, 128], sizes = [8, 128], strides = [1, 1]} : vector<8x512xf32> to vector<8x128xf32>
    %425 = arith.negf %424 : vector<8x128xf32>
    %426 = math.exp %425 : vector<8x128xf32>
    %cst_117 = arith.constant 1.000000e+00 : f32
    %427 = vector.broadcast %cst_117 : f32 to vector<8x128xf32>
    %428 = arith.addf %427, %426 : vector<8x128xf32>
    %429 = arith.divf %427, %428 : vector<8x128xf32>
    %430 = vector.extract_strided_slice %417 {offsets = [0, 256], sizes = [8, 128], strides = [1, 1]} : vector<8x512xf32> to vector<8x128xf32>
    %431 = math.tanh %430 : vector<8x128xf32>
    %432 = vector.extract_strided_slice %417 {offsets = [0, 384], sizes = [8, 128], strides = [1, 1]} : vector<8x512xf32> to vector<8x128xf32>
    %433 = arith.negf %432 : vector<8x128xf32>
    %434 = math.exp %433 : vector<8x128xf32>
    %cst_118 = arith.constant 1.000000e+00 : f32
    %435 = vector.broadcast %cst_118 : f32 to vector<8x128xf32>
    %436 = arith.addf %435, %434 : vector<8x128xf32>
    %437 = arith.divf %435, %436 : vector<8x128xf32>
    %438 = arith.mulf %429, %411 : vector<8x128xf32>
    %439 = arith.mulf %423, %431 : vector<8x128xf32>
    %440 = arith.addf %438, %439 : vector<8x128xf32>
    %441 = math.tanh %440 : vector<8x128xf32>
    %442 = arith.mulf %437, %441 : vector<8x128xf32>
    %c48_119 = arith.constant 48 : index
    %c0_120 = arith.constant 0 : index
    %443 = vector.load %arg10[%c48_119, %c0_120] : memref<64x512xf32, #tpu.memory_space<vmem>>, vector<8x512xf32>
    %444 = arith.truncf %442 : vector<8x128xf32> to vector<8x128xbf16>
    %cst_121 = arith.constant dense<0.000000e+00> : vector<8x512xf32>
    %445 = tpu.matmul %444, %260, %cst_121 {dimension_numbers = #tpu.dot_dimension_numbers<[1], [0], [0], [1], [0, 0, 1, 1], [], []>} : vector<8x128xbf16>, vector<128x512xbf16>, vector<8x512xf32> -> vector<8x512xf32>
    %446 = arith.addf %443, %445 : vector<8x512xf32>
    %447 = vector.extract_strided_slice %446 {offsets = [0, 0], sizes = [8, 128], strides = [1, 1]} : vector<8x512xf32> to vector<8x128xf32>
    %448 = arith.negf %447 : vector<8x128xf32>
    %449 = math.exp %448 : vector<8x128xf32>
    %cst_122 = arith.constant 1.000000e+00 : f32
    %450 = vector.broadcast %cst_122 : f32 to vector<8x128xf32>
    %451 = arith.addf %450, %449 : vector<8x128xf32>
    %452 = arith.divf %450, %451 : vector<8x128xf32>
    %453 = vector.extract_strided_slice %446 {offsets = [0, 128], sizes = [8, 128], strides = [1, 1]} : vector<8x512xf32> to vector<8x128xf32>
    %454 = arith.negf %453 : vector<8x128xf32>
    %455 = math.exp %454 : vector<8x128xf32>
    %cst_123 = arith.constant 1.000000e+00 : f32
    %456 = vector.broadcast %cst_123 : f32 to vector<8x128xf32>
    %457 = arith.addf %456, %455 : vector<8x128xf32>
    %458 = arith.divf %456, %457 : vector<8x128xf32>
    %459 = vector.extract_strided_slice %446 {offsets = [0, 256], sizes = [8, 128], strides = [1, 1]} : vector<8x512xf32> to vector<8x128xf32>
    %460 = math.tanh %459 : vector<8x128xf32>
    %461 = vector.extract_strided_slice %446 {offsets = [0, 384], sizes = [8, 128], strides = [1, 1]} : vector<8x512xf32> to vector<8x128xf32>
    %462 = arith.negf %461 : vector<8x128xf32>
    %463 = math.exp %462 : vector<8x128xf32>
    %cst_124 = arith.constant 1.000000e+00 : f32
    %464 = vector.broadcast %cst_124 : f32 to vector<8x128xf32>
    %465 = arith.addf %464, %463 : vector<8x128xf32>
    %466 = arith.divf %464, %465 : vector<8x128xf32>
    %467 = arith.mulf %458, %440 : vector<8x128xf32>
    %468 = arith.mulf %452, %460 : vector<8x128xf32>
    %469 = arith.addf %467, %468 : vector<8x128xf32>
    %470 = math.tanh %469 : vector<8x128xf32>
    %471 = arith.mulf %466, %470 : vector<8x128xf32>
    %c56_125 = arith.constant 56 : index
    %c0_126 = arith.constant 0 : index
    %472 = vector.load %arg10[%c56_125, %c0_126] : memref<64x512xf32, #tpu.memory_space<vmem>>, vector<8x512xf32>
    %473 = arith.truncf %471 : vector<8x128xf32> to vector<8x128xbf16>
    %cst_127 = arith.constant dense<0.000000e+00> : vector<8x512xf32>
    %474 = tpu.matmul %473, %260, %cst_127 {dimension_numbers = #tpu.dot_dimension_numbers<[1], [0], [0], [1], [0, 0, 1, 1], [], []>} : vector<8x128xbf16>, vector<128x512xbf16>, vector<8x512xf32> -> vector<8x512xf32>
    %475 = arith.addf %472, %474 : vector<8x512xf32>
    %476 = vector.extract_strided_slice %475 {offsets = [0, 0], sizes = [8, 128], strides = [1, 1]} : vector<8x512xf32> to vector<8x128xf32>
    %477 = arith.negf %476 : vector<8x128xf32>
    %478 = math.exp %477 : vector<8x128xf32>
    %cst_128 = arith.constant 1.000000e+00 : f32
    %479 = vector.broadcast %cst_128 : f32 to vector<8x128xf32>
    %480 = arith.addf %479, %478 : vector<8x128xf32>
    %481 = arith.divf %479, %480 : vector<8x128xf32>
    %482 = vector.extract_strided_slice %475 {offsets = [0, 128], sizes = [8, 128], strides = [1, 1]} : vector<8x512xf32> to vector<8x128xf32>
    %483 = arith.negf %482 : vector<8x128xf32>
    %484 = math.exp %483 : vector<8x128xf32>
    %cst_129 = arith.constant 1.000000e+00 : f32
    %485 = vector.broadcast %cst_129 : f32 to vector<8x128xf32>
    %486 = arith.addf %485, %484 : vector<8x128xf32>
    %487 = arith.divf %485, %486 : vector<8x128xf32>
    %488 = vector.extract_strided_slice %475 {offsets = [0, 256], sizes = [8, 128], strides = [1, 1]} : vector<8x512xf32> to vector<8x128xf32>
    %489 = math.tanh %488 : vector<8x128xf32>
    %490 = vector.extract_strided_slice %475 {offsets = [0, 384], sizes = [8, 128], strides = [1, 1]} : vector<8x512xf32> to vector<8x128xf32>
    %491 = arith.negf %490 : vector<8x128xf32>
    %492 = math.exp %491 : vector<8x128xf32>
    %cst_130 = arith.constant 1.000000e+00 : f32
    %493 = vector.broadcast %cst_130 : f32 to vector<8x128xf32>
    %494 = arith.addf %493, %492 : vector<8x128xf32>
    %495 = arith.divf %493, %494 : vector<8x128xf32>
    %496 = arith.mulf %487, %469 : vector<8x128xf32>
    %497 = arith.mulf %481, %489 : vector<8x128xf32>
    %498 = arith.addf %496, %497 : vector<8x128xf32>
    %499 = math.tanh %498 : vector<8x128xf32>
    %500 = arith.mulf %495, %499 : vector<8x128xf32>
    %c0_131 = arith.constant 0 : index
    %c0_132 = arith.constant 0 : index
    %501 = vector.load %arg7[%c0_131, %c0_132] : memref<1x128xf32, #tpu.memory_space<vmem>>, vector<1x128xf32>
    %502 = vector.broadcast %501 : vector<1x128xf32> to vector<8x128xf32>
    %503 = arith.mulf %500, %502 : vector<8x128xf32>
    %cst_133 = arith.constant dense<0.000000e+00> : vector<8xf32>
    %504 = vector.multi_reduction <add>, %503, %cst_133 [1] : vector<8x128xf32> to vector<8xf32>
    %505 = vector.shape_cast %504 : vector<8xf32> to vector<8x1xf32>
    %c0_134 = arith.constant 0 : index
    %c0_135 = arith.constant 0 : index
    %506 = vector.load %arg8[%c0_134, %c0_135] : memref<1x1xf32, #tpu.memory_space<vmem>>, vector<1x1xf32>
    %507 = vector.broadcast %506 : vector<1x1xf32> to vector<8x1xf32>
    %508 = arith.addf %505, %507 : vector<8x1xf32>
    %c0_136 = arith.constant 0 : index
    %c0_137 = arith.constant 0 : index
    %509 = vector.load %arg9[%c0_136, %c0_137] : memref<8x1xf32, #tpu.memory_space<vmem>>, vector<8x1xf32>
    tpu.vector_store %arg9[%c0_136, %c0_137], %508 {strides = array<i32>} : memref<8x1xf32, #tpu.memory_space<vmem>>, vector<8x1xf32>,
    return
  }
}

</mosaic_0001>

<llo_original>
// kernel: tpu_custom_call.1
$region0: #{tpu_custom_call.1}
  #allocation0 [shape = 'u32[]', space=smem, size = 0x4, offset = 0x4, fixed_abs, tag = 'smem constant byte address 0x4 - core index']
  #allocation1 [shape = 'u32[144,128]{1,0:T(1,128)}', space=vmem, size = 0x12000, scoped, tag = 'internal scratch']
  #allocation2 [shape = 'f32[64,512]{1,0:T(8,128)}', space=vmem, size = 0x20000, scoped, tag = 'scratch operand']
  #allocation3 [shape = 'f32[64,128]{1,0:T(8,128)}', space=vmem, size = 0x8000, scoped, tag = 'scratch operand']
  #allocation4 [shape = 'bf16[128,512]{1,0:T(16,128)(2,1)}', space=vmem, size = 0x20000, scoped, tag = 'scratch operand']
  #allocation5 [shape = 'bf16[128,512]{1,0:T(16,128)(2,1)}', space=vmem, size = 0x20000, scoped, tag = 'scratch operand']
  #allocation6 [shape = 's32[2]{0}', space=sflag, size = 0x8, scoped, tag = 'scratch operand']
  #allocation7 [shape = 'f32[1,1]{1,0:T(1,128)S(1)}', space=vmem, size = 0x200, scoped, tag = 'scoped memory for tpu_custom_call.1']
  #allocation12 [shape = 's32[]', space=sflag, size = 0x4, offset = 0, fixed_abs, tag = 'sflag constant byte address 0x0 - dummy sync flag']
  #allocation14 [shape = 's32[]', space=sflag, size = 0x4, offset = 0, fixed_abs, tag = 'sflag constant byte address 0x0 - dummy sync flag']
  %s0 = inlined_call_operand.vmem [shape: bf16[64,32], index: 0, kind: input, shape index: {}]
  %s1 = inlined_call_operand.hbm [shape: bf16[32,512], index: 1, kind: input, shape index: {}]
  %s2 = inlined_call_operand.hbm [shape: bf16[128,512], index: 2, kind: input, shape index: {}]
  %s3 = inlined_call_operand.vmem [shape: f32[1,512], index: 3, kind: input, shape index: {}]
  %s4 = inlined_call_operand.hbm [shape: bf16[128,512], index: 4, kind: input, shape index: {}]
  %s5 = inlined_call_operand.hbm [shape: bf16[128,512], index: 5, kind: input, shape index: {}]
  %s6 = inlined_call_operand.vmem [shape: f32[1,512], index: 6, kind: input, shape index: {}]
  %s7 = inlined_call_operand.vmem [shape: f32[1,128], index: 7, kind: input, shape index: {}]
  %s8 = inlined_call_operand.<no memory space> [shape: f32[1,1], index: 8, kind: input, shape index: {}]
  %s9 = inlined_call_operand.vmem [shape: f32[8,1], index: 9, kind: output, shape index: {}]
  %s10 = sld [smem:[#allocation0]]
  $region46: #{tpu_custom_call.1} parent=0
    _
  %s12 = ssub.s32 1, %s10
  %s13 = scalar_select 0, %s12, %s10
  %v14 = vstv %s8
  %15 = vst [vmem:[#allocation7] sm:$0x1] %v14
  $region1: #{tpu_custom_call.1} parent=0
    #allocation8 [shape = 'u8[32768]{0}', space=vmem, size = 0x8000, scoped, tag = 'input window, operand 1, single buffered']
    #allocation9 [shape = 's32[1]{0}', space=sflag, size = 0x4, scoped, tag = 'scoped memory for tpu_custom_call.1']
    #allocation10 [shape = 'u8[131072]{0}', space=vmem, size = 0x20000, scoped, tag = 'input window, operand 2, single buffered']
    #allocation11 [shape = 's32[1]{0}', space=sflag, size = 0x4, scoped, tag = 'scoped memory for tpu_custom_call.1']
    #allocation13 [shape = 'u32[9]{0}', space=smem, size = 0x24, scoped, tag = 'DMA stride descriptor']
    #allocation15 [shape = 'u32[9]{0}', space=smem, size = 0x24, scoped, tag = 'DMA stride descriptor']
    %16 = vsyncpa [#allocation9], 0
    %17 = vsyncpa [#allocation11], 0
    // Predicated region
    $region2: #{tpu_custom_call.1} parent=1 // pred_check
      _
    $region3: #{tpu_custom_call.1} parent=1 // pred_check_branch
      %19 = sbr.rel (0) target = $region5
    $region4: #{tpu_custom_call.1} parent=1 // pred_region
      _
    $region5: #{tpu_custom_call.1} parent=1 // pred_fallthru
      _
    // Predicated region
    $region6: #{tpu_custom_call.1} parent=1 // pred_check
      _
    $region7: #{tpu_custom_call.1} parent=1 // pred_check_branch
      %21 = sbr.rel (0) target = $region9
    $region8: #{tpu_custom_call.1} parent=1 // pred_region
      %s23 = ssub.s32 1024, 1024
      %24 = vsyncadd [#allocation9], %s23
      %s25 = sshll.u32 [#allocation8], 4
      %s26 = int_to_ptr.vmem [resolvable:$true] %s25
      %31 = dma.hbm_to_vmem [thread:$0]  %s1, 1024, %s26, [#allocation9], 256, 256, 16
    $region9: #{tpu_custom_call.1} parent=1 // pred_fallthru
      _
    // Predicated region
    $region10: #{tpu_custom_call.1} parent=1 // pred_check
      _
    $region11: #{tpu_custom_call.1} parent=1 // pred_check_branch
      %33 = sbr.rel (0) target = $region13
    $region12: #{tpu_custom_call.1} parent=1 // pred_region
      %s35 = ssub.s32 4096, 4096
      %36 = vsyncadd [#allocation11], %s35
      %s37 = sshll.u32 [#allocation10], 4
      %s38 = int_to_ptr.vmem [resolvable:$true] %s37
      %43 = dma.hbm_to_vmem [thread:$0]  %s2, 4096, %s38, [#allocation11], 256, 256, 16
    $region13: #{tpu_custom_call.1} parent=1 // pred_fallthru
      _
    // Predicated region
    $region14: #{tpu_custom_call.1} parent=1 // pred_check
      _
    $region15: #{tpu_custom_call.1} parent=1 // pred_check_branch
      %45 = sbr.rel (0) target = $region17
    $region16: #{tpu_custom_call.1} parent=1 // pred_region
      _
    $region17: #{tpu_custom_call.1} parent=1 // pred_fallthru
      _
    // Predicated region
    $region18: #{tpu_custom_call.1} parent=1 // pred_check
      _
    $region19: #{tpu_custom_call.1} parent=1 // pred_check_branch
      %47 = sbr.rel (0) target = $region21
    $region20: #{tpu_custom_call.1} parent=1 // pred_region
      _
    $region21: #{tpu_custom_call.1} parent=1 // pred_fallthru
      _
    // Predicated region
    $region22: #{tpu_custom_call.1} parent=1 // pred_check
      _
    $region23: #{tpu_custom_call.1} parent=1 // pred_check_branch
      %49 = sbr.rel (0) target = $region25
    $region24: #{tpu_custom_call.1} parent=1 // pred_region
      _
    $region25: #{tpu_custom_call.1} parent=1 // pred_fallthru
      _
    // Predicated region
    $region26: #{tpu_custom_call.1} parent=1 // pred_check
      _
    $region27: #{tpu_custom_call.1} parent=1 // pred_check_branch
      %51 = sbr.rel (0) target = $region29
    $region28: #{tpu_custom_call.1} parent=1 // pred_region
      _
    $region29: #{tpu_custom_call.1} parent=1 // pred_fallthru
      _
    // Predicated region
    $region30: #{tpu_custom_call.1} parent=1 // pred_check
      _
    $region31: #{tpu_custom_call.1} parent=1 // pred_check_branch
      %53 = sbr.rel (0) target = $region33
    $region32: #{tpu_custom_call.1} parent=1 // pred_region
      %54 = dma.done [#allocation9], 1024
    $region33: #{tpu_custom_call.1} parent=1 // pred_fallthru
      _
    // Predicated region
    $region34: #{tpu_custom_call.1} parent=1 // pred_check
      _
    $region35: #{tpu_custom_call.1} parent=1 // pred_check_branch
      %56 = sbr.rel (0) target = $region37
    $region36: #{tpu_custom_call.1} parent=1 // pred_region
      %57 = dma.done [#allocation11], 4096
    $region37: #{tpu_custom_call.1} parent=1 // pred_fallthru
      _
    %s60 = sshll.u32 1, 14
    %s61 = sxor.u32 4294967295, %s60
    %s63 = sld [smem:[#allocation0]]
    %s64 = sadd.s32 2, %s63
    %s66 = sshll.u32 7, 26
    %s67 = sxor.u32 4294967295, %s66
    %s68 = sand.u32 0, %s67
    %s69 = sshll.u32 %s64, 26
    %s70 = sor.u32 %s68, %s69
    %s71 = sshll.u32 [#allocation4], 4
    %s72 = int_to_ptr.vmem [resolvable:$true] %s71
    %75 = sst [smem:[#allocation13]] 512
    %s76 = scalar_lea.smem [#allocation13], 1
    %77 = sst [smem:[%s76]] 512
    %s78 = scalar_lea.smem [#allocation13], 2
    %79 = sst [smem:[%s78]] 4
    %s80 = scalar_lea.smem [#allocation13], 3
    %81 = sst [smem:[%s80]] 64
    %s82 = scalar_lea.smem [#allocation13], 4
    %83 = sst [smem:[%s82]] 128
    %s84 = scalar_lea.smem [#allocation13], 5
    %85 = sst [smem:[%s84]] 2
    %s86 = scalar_lea.smem [#allocation13], 6
    %87 = sst [smem:[%s86]] 256
    %s88 = scalar_lea.smem [#allocation13], 7
    %89 = sst [smem:[%s88]] 64
    %s90 = scalar_lea.smem [#allocation13], 8
    %91 = sst [smem:[%s90]] 4
    %93 = dma.general %s4, 4096, %s72, [#allocation6], [#allocation12], [#allocation13], %s70, 0
    %s94 = scalar_lea.sflag [#allocation6], 1
    %s96 = sshll.u32 1, 14
    %s97 = sxor.u32 4294967295, %s96
    %s99 = sadd.s32 2, %s63
    %s101 = sshll.u32 7, 26
    %s102 = sxor.u32 4294967295, %s101
    %s103 = sand.u32 0, %s102
    %s104 = sshll.u32 %s99, 26
    %s105 = sor.u32 %s103, %s104
    %s106 = sshll.u32 [#allocation5], 4
    %s107 = int_to_ptr.vmem [resolvable:$true] %s106
    %110 = sst [smem:[#allocation15]] 512
    %s111 = scalar_lea.smem [#allocation15], 1
    %112 = sst [smem:[%s111]] 512
    %s113 = scalar_lea.smem [#allocation15], 2
    %114 = sst [smem:[%s113]] 4
    %s115 = scalar_lea.smem [#allocation15], 3
    %116 = sst [smem:[%s115]] 64
    %s117 = scalar_lea.smem [#allocation15], 4
    %118 = sst [smem:[%s117]] 128
    %s119 = scalar_lea.smem [#allocation15], 5
    %120 = sst [smem:[%s119]] 2
    %s121 = scalar_lea.smem [#allocation15], 6
    %122 = sst [smem:[%s121]] 256
    %s123 = scalar_lea.smem [#allocation15], 7
    %124 = sst [smem:[%s123]] 64
    %s125 = scalar_lea.smem [#allocation15], 8
    %126 = sst [smem:[%s125]] 4
    %128 = dma.general %s5, 4096, %s107, %s94, [#allocation14], [#allocation15], %s105, 0
    %v129 = vld [vmem:[%s3] sm:$0xf]
    %v130 = vld [vmem:[#allocation8] sm:$0xff]
    %v131 = vld [vmem:[#allocation8 + $0x8] sm:$0xff]
    %v132 = vld [vmem:[#allocation8 + $0x10] sm:$0xff]
    %v133 = vld [vmem:[#allocation8 + $0x18] sm:$0xff]
    %v134 = vld [vmem:[#allocation8 + $0x20] sm:$0xff]
    %v135 = vld [vmem:[#allocation8 + $0x28] sm:$0xff]
    %v136 = vld [vmem:[#allocation8 + $0x30] sm:$0xff]
    %v137 = vld [vmem:[#allocation8 + $0x38] sm:$0xff]
    %v138 = vld [vmem:[#allocation10] sm:$0xff]
    %v139 = vld [vmem:[#allocation10 + $0x8] sm:$0xff]
    %v140 = vld [vmem:[#allocation10 + $0x10] sm:$0xff]
    %v141 = vld [vmem:[#allocation10 + $0x18] sm:$0xff]
    %v142 = vld [vmem:[#allocation10 + $0x20] sm:$0xff]
    %v143 = vld [vmem:[#allocation10 + $0x28] sm:$0xff]
    %v144 = vld [vmem:[#allocation10 + $0x30] sm:$0xff]
    %v145 = vld [vmem:[#allocation10 + $0x38] sm:$0xff]
    %v146 = vld [vmem:[#allocation10 + $0x40] sm:$0xff]
    %v147 = vld [vmem:[#allocation10 + $0x48] sm:$0xff]
    %v148 = vld [vmem:[#allocation10 + $0x50] sm:$0xff]
    %v149 = vld [vmem:[#allocation10 + $0x58] sm:$0xff]
    %v150 = vld [vmem:[#allocation10 + $0x60] sm:$0xff]
    %v151 = vld [vmem:[#allocation10 + $0x68] sm:$0xff]
    %v152 = vld [vmem:[#allocation10 + $0x70] sm:$0xff]
    %v153 = vld [vmem:[#allocation10 + $0x78] sm:$0xff]
    %v154 = vld [vmem:[#allocation10 + $0x80] sm:$0xff]
    %v155 = vld [vmem:[#allocation10 + $0x88] sm:$0xff]
    %v156 = vld [vmem:[#allocation10 + $0x90] sm:$0xff]
    %v157 = vld [vmem:[#allocation10 + $0x98] sm:$0xff]
    %v158 = vld [vmem:[#allocation10 + $0xa0] sm:$0xff]
    %v159 = vld [vmem:[#allocation10 + $0xa8] sm:$0xff]
    %v160 = vld [vmem:[#allocation10 + $0xb0] sm:$0xff]
    %v161 = vld [vmem:[#allocation10 + $0xb8] sm:$0xff]
    %v162 = vld [vmem:[#allocation10 + $0xc0] sm:$0xff]
    %v163 = vld [vmem:[#allocation10 + $0xc8] sm:$0xff]
    %v164 = vld [vmem:[#allocation10 + $0xd0] sm:$0xff]
    %v165 = vld [vmem:[#allocation10 + $0xd8] sm:$0xff]
    %v166 = vld [vmem:[#allocation10 + $0xe0] sm:$0xff]
    %v167 = vld [vmem:[#allocation10 + $0xe8] sm:$0xff]
    %v168 = vld [vmem:[#allocation10 + $0xf0] sm:$0xff]
    %v169 = vld [vmem:[#allocation10 + $0xf8] sm:$0xff]
    %v170 = vld [vmem:[%s0] sm:$0xf]
    %v171 = vld [vmem:[%s0 + $0x4] sm:$0xf]
    %v172 = vld [vmem:[%s0 + $0x8] sm:$0xf]
    %v173 = vld [vmem:[%s0 + $0xc] sm:$0xf]
    %v174 = vld [vmem:[%s0 + $0x10] sm:$0xf]
    %v175 = vld [vmem:[%s0 + $0x14] sm:$0xf]
    %v176 = vld [vmem:[%s0 + $0x18] sm:$0xf]
    %v177 = vld [vmem:[%s0 + $0x1c] sm:$0xf]
    %v179 = vlaneseq
    %v180 = vshrl.u32 %v179, 7
    %v181 = vsub.s32 0, %v180
    %v182 = vrot.slane %v129, %v181
    %v183 = vlaneseq
    %v184 = vshrl.u32 %v183, 7
    %v185 = vsub.s32 1, %v184
    %v186 = vrot.slane %v129, %v185
    %v187 = vlaneseq
    %v188 = vshrl.u32 %v187, 7
    %v189 = vsub.s32 2, %v188
    %v190 = vrot.slane %v129, %v189
    %v191 = vlaneseq
    %v192 = vshrl.u32 %v191, 7
    %v193 = vsub.s32 3, %v192
    %v194 = vrot.slane %v129, %v193
    %v207 = vunpack.c.l.b16 %v170
    %v208 = vunpack.c.l.b16 %v171
    %v209 = vunpack.c.l.b16 %v172
    %v210 = vunpack.c.l.b16 %v173
    %v211 = vunpack.c.l.b16 %v174
    %v212 = vunpack.c.l.b16 %v175
    %v213 = vunpack.c.l.b16 %v176
    %v214 = vunpack.c.l.b16 %v177
    %v215 = vpack.c.b16 %v208, %v207
    %v216 = vpack.c.b16 %v210, %v209
    %v217 = vpack.c.b16 %v212, %v211
    %v218 = vpack.c.b16 %v214, %v213
    %v227 = vunpack.c.l.b16 %v130
    %v228 = vunpack.c.h.b16 %v130
    %v229 = vunpack.c.l.b16 %v131
    %v230 = vunpack.c.h.b16 %v131
    %v231 = vunpack.c.l.b16 %v132
    %v232 = vunpack.c.h.b16 %v132
    %v233 = vunpack.c.l.b16 %v133
    %v234 = vunpack.c.h.b16 %v133
    %v235 = vunpack.c.l.b16 %v134
    %v236 = vunpack.c.h.b16 %v134
    %v237 = vunpack.c.l.b16 %v135
    %v238 = vunpack.c.h.b16 %v135
    %v239 = vunpack.c.l.b16 %v136
    %v240 = vunpack.c.h.b16 %v136
    %v241 = vunpack.c.l.b16 %v137
    %v242 = vunpack.c.h.b16 %v137
    %v243 = vpack.c.b16 %v231, %v227
    %v244 = vpack.c.b16 %v232, %v228
    %v245 = vpack.c.b16 %v233, %v229
    %v246 = vpack.c.b16 %v234, %v230
    %v247 = vpack.c.b16 %v239, %v235
    %v248 = vpack.c.b16 %v240, %v236
    %v249 = vpack.c.b16 %v241, %v237
    %v250 = vpack.c.b16 %v242, %v238
    %vm259 = vcmask 261120
    %v261 = vsel %vm259, %v215, 0
    %v264 = vsel %vm259, %v216, 0
    %v267 = vsel %vm259, %v217, 0
    %v270 = vsel %vm259, %v218, 0
    %272 = vmatprep.subr.bf16.mxu0 %v244
    %273 = vmatpush1.bf16.msra.mxu0 %v243
    %274 = vmatprep.subr.bf16.mxu0 %v248
    %275 = vmatpush1.bf16.msra.mxu0 %v247
    %276 = vmatprep.subr.bf16.mxu0 0
    %277 = vmatpush1.bf16.msra.mxu0 0
    %278 = vmatprep.subr.bf16.mxu0 0
    %279 = vmatpush1.bf16.msra.mxu0 0
    %280 = vmatprep.subr.bf16.mxu0 0
    %281 = vmatpush1.bf16.msra.mxu0 0
    %282 = vmatprep.subr.bf16.mxu0 0
    %283 = vmatpush1.bf16.msra.mxu0 0
    %284 = vmatprep.subr.bf16.mxu0 0
    %285 = vmatpush1.bf16.msra.mxu0 0
    %286 = vmatprep.subr.bf16.mxu0 0
    %287 = vmatpush1.bf16.msra.mxu0 0
    %288 = vmatprep.subr.bf16.mxu0 0
    %289 = vmatpush1.bf16.msra.mxu0 0
    %290 = vmatprep.subr.bf16.mxu0 0
    %291 = vmatpush1.bf16.msra.mxu0 0
    %292 = vmatprep.subr.bf16.mxu0 0
    %293 = vmatpush1.bf16.msra.mxu0 0
    %294 = vmatprep.subr.bf16.mxu0 0
    %295 = vmatpush1.bf16.msra.mxu0 0
    %296 = vmatprep.subr.bf16.mxu0 0
    %297 = vmatpush1.bf16.msra.mxu0 0
    %298 = vmatprep.subr.bf16.mxu0 0
    %299 = vmatpush1.bf16.msra.mxu0 0
    %300 = vmatprep.subr.bf16.mxu0 0
    %301 = vmatpush1.bf16.msra.mxu0 0
    %302 = vmatprep.subr.bf16.mxu0 0
    %303 = vmatpush1.bf16.msra.mxu0 0
    %304 = vmatprep.mubr.bf16.mxu0 0
    %305 = vmatmul.mubr.bf16.gmra.mrb[0].mxu0 %v261
    %v306 = vpop.f32.mrb[0].mxu0
    %v307 = vadd.f32 %v182, %v306
    %v308 = vpop.f32.mrb[0].mxu0
    %v309 = vadd.f32 %v186, %v308
    %v310 = vpop.f32.mrb[0].mxu0
    %v311 = vadd.f32 %v182, %v310
    %v312 = vpop.f32.mrb[0].mxu0
    %v313 = vadd.f32 %v186, %v312
    %314 = vmatprep.mubr.bf16.mxu0 0
    %315 = vmatmul.mubr.bf16.gmra.mrb[0].mxu0 %v264
    %v316 = vpop.f32.mrb[0].mxu0
    %v317 = vadd.f32 %v182, %v316
    %v318 = vpop.f32.mrb[0].mxu0
    %v319 = vadd.f32 %v186, %v318
    %v320 = vpop.f32.mrb[0].mxu0
    %v321 = vadd.f32 %v182, %v320
    %v322 = vpop.f32.mrb[0].mxu0
    %v323 = vadd.f32 %v186, %v322
    %324 = vmatprep.mubr.bf16.mxu0 0
    %325 = vmatmul.mubr.bf16.gmra.mrb[0].mxu0 %v267
    %v326 = vpop.f32.mrb[0].mxu0
    %v327 = vadd.f32 %v182, %v326
    %v328 = vpop.f32.mrb[0].mxu0
    %v329 = vadd.f32 %v186, %v328
    %v330 = vpop.f32.mrb[0].mxu0
    %v331 = vadd.f32 %v182, %v330
    %v332 = vpop.f32.mrb[0].mxu0
    %v333 = vadd.f32 %v186, %v332
    %334 = vmatprep.mubr.bf16.mxu0 0
    %335 = vmatmul.mubr.bf16.gmra.mrb[0].mxu0 %v270
    %v336 = vpop.f32.mrb[0].mxu0
    %v337 = vadd.f32 %v182, %v336
    %v338 = vpop.f32.mrb[0].mxu0
    %v339 = vadd.f32 %v186, %v338
    %v340 = vpop.f32.mrb[0].mxu0
    %v341 = vadd.f32 %v182, %v340
    %v342 = vpop.f32.mrb[0].mxu0
    %v343 = vadd.f32 %v186, %v342
    %344 = vdwg.mxu0
    %345 = vmatprep.subr.bf16.mxu0 %v246
    %346 = vmatpush1.bf16.msra.mxu0 %v245
    %347 = vmatprep.subr.bf16.mxu0 %v250
    %348 = vmatpush1.bf16.msra.mxu0 %v249
    %349 = vmatprep.subr.bf16.mxu0 0
    %350 = vmatpush1.bf16.msra.mxu0 0
    %351 = vmatprep.subr.bf16.mxu0 0
    %352 = vmatpush1.bf16.msra.mxu0 0
    %353 = vmatprep.subr.bf16.mxu0 0
    %354 = vmatpush1.bf16.msra.mxu0 0
    %355 = vmatprep.subr.bf16.mxu0 0
    %356 = vmatpush1.bf16.msra.mxu0 0
    %357 = vmatprep.subr.bf16.mxu0 0
    %358 = vmatpush1.bf16.msra.mxu0 0
    %359 = vmatprep.subr.bf16.mxu0 0
    %360 = vmatpush1.bf16.msra.mxu0 0
    %361 = vmatprep.subr.bf16.mxu0 0
    %362 = vmatpush1.bf16.msra.mxu0 0
    %363 = vmatprep.subr.bf16.mxu0 0
    %364 = vmatpush1.bf16.msra.mxu0 0
    %365 = vmatprep.subr.bf16.mxu0 0
    %366 = vmatpush1.bf16.msra.mxu0 0
    %367 = vmatprep.subr.bf16.mxu0 0
    %368 = vmatpush1.bf16.msra.mxu0 0
    %369 = vmatprep.subr.bf16.mxu0 0
    %370 = vmatpush1.bf16.msra.mxu0 0
    %371 = vmatprep.subr.bf16.mxu0 0
    %372 = vmatpush1.bf16.msra.mxu0 0
    %373 = vmatprep.subr.bf16.mxu0 0
    %374 = vmatpush1.bf16.msra.mxu0 0
    %375 = vmatprep.subr.bf16.mxu0 0
    %376 = vmatpush1.bf16.msra.mxu0 0
    %377 = vmatprep.mubr.bf16.mxu0 0
    %378 = vmatmul.mubr.bf16.gmra.mrb[0].mxu0 %v261
    %v379 = vpop.f32.mrb[0].mxu0
    %v380 = vadd.f32 %v190, %v379
    %v381 = vpop.f32.mrb[0].mxu0
    %v382 = vadd.f32 %v194, %v381
    %v383 = vpop.f32.mrb[0].mxu0
    %v384 = vadd.f32 %v190, %v383
    %v385 = vpop.f32.mrb[0].mxu0
    %v386 = vadd.f32 %v194, %v385
    %387 = vmatprep.mubr.bf16.mxu0 0
    %388 = vmatmul.mubr.bf16.gmra.mrb[0].mxu0 %v264
    %v389 = vpop.f32.mrb[0].mxu0
    %v390 = vadd.f32 %v190, %v389
    %v391 = vpop.f32.mrb[0].mxu0
    %v392 = vadd.f32 %v194, %v391
    %v393 = vpop.f32.mrb[0].mxu0
    %v394 = vadd.f32 %v190, %v393
    %v395 = vpop.f32.mrb[0].mxu0
    %v396 = vadd.f32 %v194, %v395
    %397 = vmatprep.mubr.bf16.mxu0 0
    %398 = vmatmul.mubr.bf16.gmra.mrb[0].mxu0 %v267
    %v399 = vpop.f32.mrb[0].mxu0
    %v400 = vadd.f32 %v190, %v399
    %v401 = vpop.f32.mrb[0].mxu0
    %v402 = vadd.f32 %v194, %v401
    %v403 = vpop.f32.mrb[0].mxu0
    %v404 = vadd.f32 %v190, %v403
    %v405 = vpop.f32.mrb[0].mxu0
    %v406 = vadd.f32 %v194, %v405
    %407 = vmatprep.mubr.bf16.mxu0 0
    %408 = vmatmul.mubr.bf16.gmra.mrb[0].mxu0 %v270
    %v409 = vpop.f32.mrb[0].mxu0
    %v410 = vadd.f32 %v190, %v409
    %v411 = vpop.f32.mrb[0].mxu0
    %v412 = vadd.f32 %v194, %v411
    %v413 = vpop.f32.mrb[0].mxu0
    %v414 = vadd.f32 %v190, %v413
    %v415 = vpop.f32.mrb[0].mxu0
    %v416 = vadd.f32 %v194, %v415
    %417 = vdwg.mxu0
    %418 = vst [vmem:[#allocation2] sm:$0xff] %v307
    %419 = vst [vmem:[#allocation2 + $0x8] sm:$0xff] %v309
    %420 = vst [vmem:[#allocation2 + $0x10] sm:$0xff] %v380
    %421 = vst [vmem:[#allocation2 + $0x18] sm:$0xff] %v382
    %422 = vst [vmem:[#allocation2 + $0x20] sm:$0xff] %v311
    %423 = vst [vmem:[#allocation2 + $0x28] sm:$0xff] %v313
    %424 = vst [vmem:[#allocation2 + $0x30] sm:$0xff] %v384
    %425 = vst [vmem:[#allocation2 + $0x38] sm:$0xff] %v386
    %426 = vst [vmem:[#allocation2 + $0x40] sm:$0xff] %v317
    %427 = vst [vmem:[#allocation2 + $0x48] sm:$0xff] %v319
    %428 = vst [vmem:[#allocation2 + $0x50] sm:$0xff] %v390
    %429 = vst [vmem:[#allocation2 + $0x58] sm:$0xff] %v392
    %430 = vst [vmem:[#allocation2 + $0x60] sm:$0xff] %v321
    %431 = vst [vmem:[#allocation2 + $0x68] sm:$0xff] %v323
    %432 = vst [vmem:[#allocation2 + $0x70] sm:$0xff] %v394
    %433 = vst [vmem:[#allocation2 + $0x78] sm:$0xff] %v396
    %434 = vst [vmem:[#allocation2 + $0x80] sm:$0xff] %v327
    %435 = vst [vmem:[#allocation2 + $0x88] sm:$0xff] %v329
    %436 = vst [vmem:[#allocation2 + $0x90] sm:$0xff] %v400
    %437 = vst [vmem:[#allocation2 + $0x98] sm:$0xff] %v402
    %438 = vst [vmem:[#allocation2 + $0xa0] sm:$0xff] %v331
    %439 = vst [vmem:[#allocation2 + $0xa8] sm:$0xff] %v333
    %440 = vst [vmem:[#allocation2 + $0xb0] sm:$0xff] %v404
    %441 = vst [vmem:[#allocation2 + $0xb8] sm:$0xff] %v406
    %442 = vst [vmem:[#allocation2 + $0xc0] sm:$0xff] %v337
    %443 = vst [vmem:[#allocation2 + $0xc8] sm:$0xff] %v339
    %444 = vst [vmem:[#allocation2 + $0xd0] sm:$0xff] %v410
    %445 = vst [vmem:[#allocation2 + $0xd8] sm:$0xff] %v412
    %446 = vst [vmem:[#allocation2 + $0xe0] sm:$0xff] %v341
    %447 = vst [vmem:[#allocation2 + $0xe8] sm:$0xff] %v343
    %448 = vst [vmem:[#allocation2 + $0xf0] sm:$0xff] %v414
    %449 = vst [vmem:[#allocation2 + $0xf8] sm:$0xff] %v416
    %v450 = vld [vmem:[#allocation2] sm:$0xff]
    %v451 = vld [vmem:[#allocation2 + $0x8] sm:$0xff]
    %v452 = vld [vmem:[#allocation2 + $0x10] sm:$0xff]
    %v453 = vld [vmem:[#allocation2 + $0x18] sm:$0xff]
    %v486 = vunpack.c.l.b16 %v138
    %v487 = vunpack.c.h.b16 %v138
    %v488 = vunpack.c.l.b16 %v139
    %v489 = vunpack.c.h.b16 %v139
    %v490 = vunpack.c.l.b16 %v140
    %v491 = vunpack.c.h.b16 %v140
    %v492 = vunpack.c.l.b16 %v141
    %v493 = vunpack.c.h.b16 %v141
    %v494 = vunpack.c.l.b16 %v142
    %v495 = vunpack.c.h.b16 %v142
    %v496 = vunpack.c.l.b16 %v143
    %v497 = vunpack.c.h.b16 %v143
    %v498 = vunpack.c.l.b16 %v144
    %v499 = vunpack.c.h.b16 %v144
    %v500 = vunpack.c.l.b16 %v145
    %v501 = vunpack.c.h.b16 %v145
    %v502 = vunpack.c.l.b16 %v146
    %v503 = vunpack.c.h.b16 %v146
    %v504 = vunpack.c.l.b16 %v147
    %v505 = vunpack.c.h.b16 %v147
    %v506 = vunpack.c.l.b16 %v148
    %v507 = vunpack.c.h.b16 %v148
    %v508 = vunpack.c.l.b16 %v149
    %v509 = vunpack.c.h.b16 %v149
    %v510 = vunpack.c.l.b16 %v150
    %v511 = vunpack.c.h.b16 %v150
    %v512 = vunpack.c.l.b16 %v151
    %v513 = vunpack.c.h.b16 %v151
    %v514 = vunpack.c.l.b16 %v152
    %v515 = vunpack.c.h.b16 %v152
    %v516 = vunpack.c.l.b16 %v153
    %v517 = vunpack.c.h.b16 %v153
    %v518 = vunpack.c.l.b16 %v154
    %v519 = vunpack.c.h.b16 %v154
    %v520 = vunpack.c.l.b16 %v155
    %v521 = vunpack.c.h.b16 %v155
    %v522 = vunpack.c.l.b16 %v156
    %v523 = vunpack.c.h.b16 %v156
    %v524 = vunpack.c.l.b16 %v157
    %v525 = vunpack.c.h.b16 %v157
    %v526 = vunpack.c.l.b16 %v158
    %v527 = vunpack.c.h.b16 %v158
    %v528 = vunpack.c.l.b16 %v159
    %v529 = vunpack.c.h.b16 %v159
    %v530 = vunpack.c.l.b16 %v160
    %v531 = vunpack.c.h.b16 %v160
    %v532 = vunpack.c.l.b16 %v161
    %v533 = vunpack.c.h.b16 %v161
    %v534 = vunpack.c.l.b16 %v162
    %v535 = vunpack.c.h.b16 %v162
    %v536 = vunpack.c.l.b16 %v163
    %v537 = vunpack.c.h.b16 %v163
    %v538 = vunpack.c.l.b16 %v164
    %v539 = vunpack.c.h.b16 %v164
    %v540 = vunpack.c.l.b16 %v165
    %v541 = vunpack.c.h.b16 %v165
    %v542 = vunpack.c.l.b16 %v166
    %v543 = vunpack.c.h.b16 %v166
    %v544 = vunpack.c.l.b16 %v167
    %v545 = vunpack.c.h.b16 %v167
    %v546 = vunpack.c.l.b16 %v168
    %v547 = vunpack.c.h.b16 %v168
    %v548 = vunpack.c.l.b16 %v169
    %v549 = vunpack.c.h.b16 %v169
    %v550 = vpack.c.b16 %v490, %v486
    %v551 = vpack.c.b16 %v491, %v487
    %v552 = vpack.c.b16 %v492, %v488
    %v553 = vpack.c.b16 %v493, %v489
    %v554 = vpack.c.b16 %v498, %v494
    %v555 = vpack.c.b16 %v499, %v495
    %v556 = vpack.c.b16 %v500, %v496
    %v557 = vpack.c.b16 %v501, %v497
    %v558 = vpack.c.b16 %v506, %v502
    %v559 = vpack.c.b16 %v507, %v503
    %v560 = vpack.c.b16 %v508, %v504
    %v561 = vpack.c.b16 %v509, %v505
    %v562 = vpack.c.b16 %v514, %v510
    %v563 = vpack.c.b16 %v515, %v511
    %v564 = vpack.c.b16 %v516, %v512
    %v565 = vpack.c.b16 %v517, %v513
    %v566 = vpack.c.b16 %v522, %v518
    %v567 = vpack.c.b16 %v523, %v519
    %v568 = vpack.c.b16 %v524, %v520
    %v569 = vpack.c.b16 %v525, %v521
    %v570 = vpack.c.b16 %v530, %v526
    %v571 = vpack.c.b16 %v531, %v527
    %v572 = vpack.c.b16 %v532, %v528
    %v573 = vpack.c.b16 %v533, %v529
    %v574 = vpack.c.b16 %v538, %v534
    %v575 = vpack.c.b16 %v539, %v535
    %v576 = vpack.c.b16 %v540, %v536
    %v577 = vpack.c.b16 %v541, %v537
    %v578 = vpack.c.b16 %v546, %v542
    %v579 = vpack.c.b16 %v547, %v543
    %v580 = vpack.c.b16 %v548, %v544
    %v581 = vpack.c.b16 %v549, %v545
    %614 = vmatprep.subr.bf16.mxu0 %v551
    %615 = vmatpush1.bf16.msra.mxu0 %v550
    %616 = vmatprep.subr.bf16.mxu0 %v555
    %617 = vmatpush1.bf16.msra.mxu0 %v554
    %618 = vmatprep.subr.bf16.mxu0 %v559
    %619 = vmatpush1.bf16.msra.mxu0 %v558
    %620 = vmatprep.subr.bf16.mxu0 %v563
    %621 = vmatpush1.bf16.msra.mxu0 %v562
    %622 = vmatprep.subr.bf16.mxu0 %v567
    %623 = vmatpush1.bf16.msra.mxu0 %v566
    %624 = vmatprep.subr.bf16.mxu0 %v571
    %625 = vmatpush1.bf16.msra.mxu0 %v570
    %626 = vmatprep.subr.bf16.mxu0 %v575
    %627 = vmatpush1.bf16.msra.mxu0 %v574
    %628 = vmatprep.subr.bf16.mxu0 %v579
    %629 = vmatpush1.bf16.msra.mxu0 %v578
    %630 = vmatprep.subr.bf16.mxu0 0
    %631 = vmatpush1.bf16.msra.mxu0 0
    %632 = vmatprep.subr.bf16.mxu0 0
    %633 = vmatpush1.bf16.msra.mxu0 0
    %634 = vmatprep.subr.bf16.mxu0 0
    %635 = vmatpush1.bf16.msra.mxu0 0
    %636 = vmatprep.subr.bf16.mxu0 0
    %637 = vmatpush1.bf16.msra.mxu0 0
    %638 = vmatprep.subr.bf16.mxu0 0
    %639 = vmatpush1.bf16.msra.mxu0 0
    %640 = vmatprep.subr.bf16.mxu0 0
    %641 = vmatpush1.bf16.msra.mxu0 0
    %642 = vmatprep.subr.bf16.mxu0 0
    %643 = vmatpush1.bf16.msra.mxu0 0
    %644 = vmatprep.subr.bf16.mxu0 0
    %645 = vmatpush1.bf16.msra.mxu0 0
    %646 = vmatprep.mubr.bf16.mxu0 0
    %647 = vmatmul.mubr.bf16.gmra.mrb[0].mxu0 0
    %v648 = vpop.f32.mrb[0].mxu0
    %v649 = vadd.f32 0.0, %v648
    %v650 = vpop.f32.mrb[0].mxu0
    %v651 = vadd.f32 0.0, %v650
    %v652 = vpop.f32.mrb[0].mxu0
    %v653 = vpop.f32.mrb[0].mxu0
    %654 = vdwg.mxu0
    %655 = vmatprep.subr.bf16.mxu0 %v553
    %656 = vmatpush1.bf16.msra.mxu0 %v552
    %657 = vmatprep.subr.bf16.mxu0 %v557
    %658 = vmatpush1.bf16.msra.mxu0 %v556
    %659 = vmatprep.subr.bf16.mxu0 %v561
    %660 = vmatpush1.bf16.msra.mxu0 %v560
    %661 = vmatprep.subr.bf16.mxu0 %v565
    %662 = vmatpush1.bf16.msra.mxu0 %v564
    %663 = vmatprep.subr.bf16.mxu0 %v569
    %664 = vmatpush1.bf16.msra.mxu0 %v568
    %665 = vmatprep.subr.bf16.mxu0 %v573
    %666 = vmatpush1.bf16.msra.mxu0 %v572
    %667 = vmatprep.subr.bf16.mxu0 %v577
    %668 = vmatpush1.bf16.msra.mxu0 %v576
    %669 = vmatprep.subr.bf16.mxu0 %v581
    %670 = vmatpush1.bf16.msra.mxu0 %v580
    %671 = vmatprep.subr.bf16.mxu0 0
    %672 = vmatpush1.bf16.msra.mxu0 0
    %673 = vmatprep.subr.bf16.mxu0 0
    %674 = vmatpush1.bf16.msra.mxu0 0
    %675 = vmatprep.subr.bf16.mxu0 0
    %676 = vmatpush1.bf16.msra.mxu0 0
    %677 = vmatprep.subr.bf16.mxu0 0
    %678 = vmatpush1.bf16.msra.mxu0 0
    %679 = vmatprep.subr.bf16.mxu0 0
    %680 = vmatpush1.bf16.msra.mxu0 0
    %681 = vmatprep.subr.bf16.mxu0 0
    %682 = vmatpush1.bf16.msra.mxu0 0
    %683 = vmatprep.subr.bf16.mxu0 0
    %684 = vmatpush1.bf16.msra.mxu0 0
    %685 = vmatprep.subr.bf16.mxu0 0
    %686 = vmatpush1.bf16.msra.mxu0 0
    %687 = vmatprep.mubr.bf16.mxu0 0
    %688 = vmatmul.mubr.bf16.gmra.mrb[0].mxu0 0
    %v689 = vpop.f32.mrb[0].mxu0
    %v690 = vadd.f32 0.0, %v689
    %v691 = vpop.f32.mrb[0].mxu0
    %v692 = vadd.f32 0.0, %v691
    %v693 = vpop.f32.mrb[0].mxu0
    %v694 = vpop.f32.mrb[0].mxu0
    %695 = vdwg.mxu0
    %v696 = vadd.f32 %v450, %v649
    %v697 = vadd.f32 %v451, %v651
    %v698 = vadd.f32 %v452, %v690
    %v699 = vadd.f32 %v453, %v692
    %v700 = vxor.u32 %v696, 2147483648
    %v701 = vmul.f32 %v700, 1.442695
    %v702 = vpow.pop %v701
    %v703 = vadd.f32 %v702, 1.0
    %v704 = vrcp.pop %v703
    %v705 = vmul.f32 1.0, %v704
    %v706 = vxor.u32 %v697, 2147483648
    %v707 = vmul.f32 %v706, 1.442695
    %v708 = vpow.pop %v707
    %v709 = vadd.f32 %v708, 1.0
    %v710 = vrcp.pop %v709
    %v711 = vmul.f32 1.0, %v710
    %v712 = vtanh.pop %v698
    %v713 = vxor.u32 %v699, 2147483648
    %v714 = vmul.f32 %v713, 1.442695
    %v715 = vpow.pop %v714
    %v716 = vadd.f32 %v715, 1.0
    %v717 = vrcp.pop %v716
    %v718 = vmul.f32 1.0, %v717
    %v719 = vmul.f32 %v711, 0.0
    %v720 = vmul.f32 %v705, %v712
    %v721 = vadd.f32 %v719, %v720
    %v722 = vtanh.pop %v721
    %v723 = vmul.f32 %v718, %v722
    %724 = vst [vmem:[#allocation3] sm:$0xff] %v723
    %v725 = vld [vmem:[#allocation2 + $0x20] sm:$0xff]
    %v726 = vld [vmem:[#allocation2 + $0x28] sm:$0xff]
    %v727 = vld [vmem:[#allocation2 + $0x30] sm:$0xff]
    %v728 = vld [vmem:[#allocation2 + $0x38] sm:$0xff]
    %v729 = vpack.c.bf16 %v723, %v723
    %730 = vmatprep.subr.bf16.mxu0 %v551
    %731 = vmatpush1.bf16.msra.mxu0 %v550
    %732 = vmatprep.subr.bf16.mxu0 %v555
    %733 = vmatpush1.bf16.msra.mxu0 %v554
    %734 = vmatprep.subr.bf16.mxu0 %v559
    %735 = vmatpush1.bf16.msra.mxu0 %v558
    %736 = vmatprep.subr.bf16.mxu0 %v563
    %737 = vmatpush1.bf16.msra.mxu0 %v562
    %738 = vmatprep.subr.bf16.mxu0 %v567
    %739 = vmatpush1.bf16.msra.mxu0 %v566
    %740 = vmatprep.subr.bf16.mxu0 %v571
    %741 = vmatpush1.bf16.msra.mxu0 %v570
    %742 = vmatprep.subr.bf16.mxu0 %v575
    %743 = vmatpush1.bf16.msra.mxu0 %v574
    %744 = vmatprep.subr.bf16.mxu0 %v579
    %745 = vmatpush1.bf16.msra.mxu0 %v578
    %746 = vmatprep.subr.bf16.mxu0 0
    %747 = vmatpush1.bf16.msra.mxu0 0
    %748 = vmatprep.subr.bf16.mxu0 0
    %749 = vmatpush1.bf16.msra.mxu0 0
    %750 = vmatprep.subr.bf16.mxu0 0
    %751 = vmatpush1.bf16.msra.mxu0 0
    %752 = vmatprep.subr.bf16.mxu0 0
    %753 = vmatpush1.bf16.msra.mxu0 0
    %754 = vmatprep.subr.bf16.mxu0 0
    %755 = vmatpush1.bf16.msra.mxu0 0
    %756 = vmatprep.subr.bf16.mxu0 0
    %757 = vmatpush1.bf16.msra.mxu0 0
    %758 = vmatprep.subr.bf16.mxu0 0
    %759 = vmatpush1.bf16.msra.mxu0 0
    %760 = vmatprep.subr.bf16.mxu0 0
    %761 = vmatpush1.bf16.msra.mxu0 0
    %762 = vmatprep.mubr.bf16.mxu0 0
    %763 = vmatmul.mubr.bf16.gmra.mrb[0].mxu0 %v729
    %v764 = vpop.f32.mrb[0].mxu0
    %v765 = vadd.f32 0.0, %v764
    %v766 = vpop.f32.mrb[0].mxu0
    %v767 = vadd.f32 0.0, %v766
    %v768 = vpop.f32.mrb[0].mxu0
    %v769 = vpop.f32.mrb[0].mxu0
    %770 = vdwg.mxu0
    %771 = vmatprep.subr.bf16.mxu0 %v553
    %772 = vmatpush1.bf16.msra.mxu0 %v552
    %773 = vmatprep.subr.bf16.mxu0 %v557
    %774 = vmatpush1.bf16.msra.mxu0 %v556
    %775 = vmatprep.subr.bf16.mxu0 %v561
    %776 = vmatpush1.bf16.msra.mxu0 %v560
    %777 = vmatprep.subr.bf16.mxu0 %v565
    %778 = vmatpush1.bf16.msra.mxu0 %v564
    %779 = vmatprep.subr.bf16.mxu0 %v569
    %780 = vmatpush1.bf16.msra.mxu0 %v568
    %781 = vmatprep.subr.bf16.mxu0 %v573
    %782 = vmatpush1.bf16.msra.mxu0 %v572
    %783 = vmatprep.subr.bf16.mxu0 %v577
    %784 = vmatpush1.bf16.msra.mxu0 %v576
    %785 = vmatprep.subr.bf16.mxu0 %v581
    %786 = vmatpush1.bf16.msra.mxu0 %v580
    %787 = vmatprep.subr.bf16.mxu0 0
    %788 = vmatpush1.bf16.msra.mxu0 0
    %789 = vmatprep.subr.bf16.mxu0 0
    %790 = vmatpush1.bf16.msra.mxu0 0
    %791 = vmatprep.subr.bf16.mxu0 0
    %792 = vmatpush1.bf16.msra.mxu0 0
    %793 = vmatprep.subr.bf16.mxu0 0
    %794 = vmatpush1.bf16.msra.mxu0 0
    %795 = vmatprep.subr.bf16.mxu0 0
    %796 = vmatpush1.bf16.msra.mxu0 0
    %797 = vmatprep.subr.bf16.mxu0 0
    %798 = vmatpush1.bf16.msra.mxu0 0
    %799 = vmatprep.subr.bf16.mxu0 0
    %800 = vmatpush1.bf16.msra.mxu0 0
    %801 = vmatprep.subr.bf16.mxu0 0
    %802 = vmatpush1.bf16.msra.mxu0 0
    %803 = vmatprep.mubr.bf16.mxu0 0
    %804 = vmatmul.mubr.bf16.gmra.mrb[0].mxu0 %v729
    %v805 = vpop.f32.mrb[0].mxu0
    %v806 = vadd.f32 0.0, %v805
    %v807 = vpop.f32.mrb[0].mxu0
    %v808 = vadd.f32 0.0, %v807
    %v809 = vpop.f32.mrb[0].mxu0
    %v810 = vpop.f32.mrb[0].mxu0
    %811 = vdwg.mxu0
    %v812 = vadd.f32 %v725, %v765
    %v813 = vadd.f32 %v726, %v767
    %v814 = vadd.f32 %v727, %v806
    %v815 = vadd.f32 %v728, %v808
    %v816 = vxor.u32 %v812, 2147483648
    %v817 = vmul.f32 %v816, 1.442695
    %v818 = vpow.pop %v817
    %v819 = vadd.f32 %v818, 1.0
    %v820 = vrcp.pop %v819
    %v821 = vmul.f32 1.0, %v820
    %v822 = vxor.u32 %v813, 2147483648
    %v823 = vmul.f32 %v822, 1.442695
    %v824 = vpow.pop %v823
    %v825 = vadd.f32 %v824, 1.0
    %v826 = vrcp.pop %v825
    %v827 = vmul.f32 1.0, %v826
    %v828 = vtanh.pop %v814
    %v829 = vxor.u32 %v815, 2147483648
    %v830 = vmul.f32 %v829, 1.442695
    %v831 = vpow.pop %v830
    %v832 = vadd.f32 %v831, 1.0
    %v833 = vrcp.pop %v832
    %v834 = vmul.f32 1.0, %v833
    %v835 = vmul.f32 %v827, %v721
    %v836 = vmul.f32 %v821, %v828
    %v837 = vadd.f32 %v835, %v836
    %v838 = vtanh.pop %v837
    %v839 = vmul.f32 %v834, %v838
    %840 = vst [vmem:[#allocation3 + $0x8] sm:$0xff] %v839
    %v841 = vld [vmem:[#allocation2 + $0x40] sm:$0xff]
    %v842 = vld [vmem:[#allocation2 + $0x48] sm:$0xff]
    %v843 = vld [vmem:[#allocation2 + $0x50] sm:$0xff]
    %v844 = vld [vmem:[#allocation2 + $0x58] sm:$0xff]
    %v845 = vpack.c.bf16 %v839, %v839
    %846 = vmatprep.subr.bf16.mxu0 %v551
    %847 = vmatpush1.bf16.msra.mxu0 %v550
    %848 = vmatprep.subr.bf16.mxu0 %v555
    %849 = vmatpush1.bf16.msra.mxu0 %v554
    %850 = vmatprep.subr.bf16.mxu0 %v559
    %851 = vmatpush1.bf16.msra.mxu0 %v558
    %852 = vmatprep.subr.bf16.mxu0 %v563
    %853 = vmatpush1.bf16.msra.mxu0 %v562
    %854 = vmatprep.subr.bf16.mxu0 %v567
    %855 = vmatpush1.bf16.msra.mxu0 %v566
    %856 = vmatprep.subr.bf16.mxu0 %v571
    %857 = vmatpush1.bf16.msra.mxu0 %v570
    %858 = vmatprep.subr.bf16.mxu0 %v575
    %859 = vmatpush1.bf16.msra.mxu0 %v574
    %860 = vmatprep.subr.bf16.mxu0 %v579
    %861 = vmatpush1.bf16.msra.mxu0 %v578
    %862 = vmatprep.subr.bf16.mxu0 0
    %863 = vmatpush1.bf16.msra.mxu0 0
    %864 = vmatprep.subr.bf16.mxu0 0
    %865 = vmatpush1.bf16.msra.mxu0 0
    %866 = vmatprep.subr.bf16.mxu0 0
    %867 = vmatpush1.bf16.msra.mxu0 0
    %868 = vmatprep.subr.bf16.mxu0 0
    %869 = vmatpush1.bf16.msra.mxu0 0
    %870 = vmatprep.subr.bf16.mxu0 0
    %871 = vmatpush1.bf16.msra.mxu0 0
    %872 = vmatprep.subr.bf16.mxu0 0
    %873 = vmatpush1.bf16.msra.mxu0 0
    %874 = vmatprep.subr.bf16.mxu0 0
    %875 = vmatpush1.bf16.msra.mxu0 0
    %876 = vmatprep.subr.bf16.mxu0 0
    %877 = vmatpush1.bf16.msra.mxu0 0
    %878 = vmatprep.mubr.bf16.mxu0 0
    %879 = vmatmul.mubr.bf16.gmra.mrb[0].mxu0 %v845
    %v880 = vpop.f32.mrb[0].mxu0
    %v881 = vadd.f32 0.0, %v880
    %v882 = vpop.f32.mrb[0].mxu0
    %v883 = vadd.f32 0.0, %v882
    %v884 = vpop.f32.mrb[0].mxu0
    %v885 = vpop.f32.mrb[0].mxu0
    %886 = vdwg.mxu0
    %887 = vmatprep.subr.bf16.mxu0 %v553
    %888 = vmatpush1.bf16.msra.mxu0 %v552
    %889 = vmatprep.subr.bf16.mxu0 %v557
    %890 = vmatpush1.bf16.msra.mxu0 %v556
    %891 = vmatprep.subr.bf16.mxu0 %v561
    %892 = vmatpush1.bf16.msra.mxu0 %v560
    %893 = vmatprep.subr.bf16.mxu0 %v565
    %894 = vmatpush1.bf16.msra.mxu0 %v564
    %895 = vmatprep.subr.bf16.mxu0 %v569
    %896 = vmatpush1.bf16.msra.mxu0 %v568
    %897 = vmatprep.subr.bf16.mxu0 %v573
    %898 = vmatpush1.bf16.msra.mxu0 %v572
    %899 = vmatprep.subr.bf16.mxu0 %v577
    %900 = vmatpush1.bf16.msra.mxu0 %v576
    %901 = vmatprep.subr.bf16.mxu0 %v581
    %902 = vmatpush1.bf16.msra.mxu0 %v580
    %903 = vmatprep.subr.bf16.mxu0 0
    %904 = vmatpush1.bf16.msra.mxu0 0
    %905 = vmatprep.subr.bf16.mxu0 0
    %906 = vmatpush1.bf16.msra.mxu0 0
    %907 = vmatprep.subr.bf16.mxu0 0
    %908 = vmatpush1.bf16.msra.mxu0 0
    %909 = vmatprep.subr.bf16.mxu0 0
    %910 = vmatpush1.bf16.msra.mxu0 0
    %911 = vmatprep.subr.bf16.mxu0 0
    %912 = vmatpush1.bf16.msra.mxu0 0
    %913 = vmatprep.subr.bf16.mxu0 0
    %914 = vmatpush1.bf16.msra.mxu0 0
    %915 = vmatprep.subr.bf16.mxu0 0
    %916 = vmatpush1.bf16.msra.mxu0 0
    %917 = vmatprep.subr.bf16.mxu0 0
    %918 = vmatpush1.bf16.msra.mxu0 0
    %919 = vmatprep.mubr.bf16.mxu0 0
    %920 = vmatmul.mubr.bf16.gmra.mrb[0].mxu0 %v845
    %v921 = vpop.f32.mrb[0].mxu0
    %v922 = vadd.f32 0.0, %v921
    %v923 = vpop.f32.mrb[0].mxu0
    %v924 = vadd.f32 0.0, %v923
    %v925 = vpop.f32.mrb[0].mxu0
    %v926 = vpop.f32.mrb[0].mxu0
    %927 = vdwg.mxu0
    %v928 = vadd.f32 %v841, %v881
    %v929 = vadd.f32 %v842, %v883
    %v930 = vadd.f32 %v843, %v922
    %v931 = vadd.f32 %v844, %v924
    %v932 = vxor.u32 %v928, 2147483648
    %v933 = vmul.f32 %v932, 1.442695
    %v934 = vpow.pop %v933
    %v935 = vadd.f32 %v934, 1.0
    %v936 = vrcp.pop %v935
    %v937 = vmul.f32 1.0, %v936
    %v938 = vxor.u32 %v929, 2147483648
    %v939 = vmul.f32 %v938, 1.442695
    %v940 = vpow.pop %v939
    %v941 = vadd.f32 %v940, 1.0
    %v942 = vrcp.pop %v941
    %v943 = vmul.f32 1.0, %v942
    %v944 = vtanh.pop %v930
    %v945 = vxor.u32 %v931, 2147483648
    %v946 = vmul.f32 %v945, 1.442695
    %v947 = vpow.pop %v946
    %v948 = vadd.f32 %v947, 1.0
    %v949 = vrcp.pop %v948
    %v950 = vmul.f32 1.0, %v949
    %v951 = vmul.f32 %v943, %v837
    %v952 = vmul.f32 %v937, %v944
    %v953 = vadd.f32 %v951, %v952
    %v954 = vtanh.pop %v953
    %v955 = vmul.f32 %v950, %v954
    %956 = vst [vmem:[#allocation3 + $0x10] sm:$0xff] %v955
    %v957 = vld [vmem:[#allocation2 + $0x60] sm:$0xff]
    %v958 = vld [vmem:[#allocation2 + $0x68] sm:$0xff]
    %v959 = vld [vmem:[#allocation2 + $0x70] sm:$0xff]
    %v960 = vld [vmem:[#allocation2 + $0x78] sm:$0xff]
    %v961 = vpack.c.bf16 %v955, %v955
    %962 = vmatprep.subr.bf16.mxu0 %v551
    %963 = vmatpush1.bf16.msra.mxu0 %v550
    %964 = vmatprep.subr.bf16.mxu0 %v555
    %965 = vmatpush1.bf16.msra.mxu0 %v554
    %966 = vmatprep.subr.bf16.mxu0 %v559
    %967 = vmatpush1.bf16.msra.mxu0 %v558
    %968 = vmatprep.subr.bf16.mxu0 %v563
    %969 = vmatpush1.bf16.msra.mxu0 %v562
    %970 = vmatprep.subr.bf16.mxu0 %v567
    %971 = vmatpush1.bf16.msra.mxu0 %v566
    %972 = vmatprep.subr.bf16.mxu0 %v571
    %973 = vmatpush1.bf16.msra.mxu0 %v570
    %974 = vmatprep.subr.bf16.mxu0 %v575
    %975 = vmatpush1.bf16.msra.mxu0 %v574
    %976 = vmatprep.subr.bf16.mxu0 %v579
    %977 = vmatpush1.bf16.msra.mxu0 %v578
    %978 = vmatprep.subr.bf16.mxu0 0
    %979 = vmatpush1.bf16.msra.mxu0 0
    %980 = vmatprep.subr.bf16.mxu0 0
    %981 = vmatpush1.bf16.msra.mxu0 0
    %982 = vmatprep.subr.bf16.mxu0 0
    %983 = vmatpush1.bf16.msra.mxu0 0
    %984 = vmatprep.subr.bf16.mxu0 0
    %985 = vmatpush1.bf16.msra.mxu0 0
    %986 = vmatprep.subr.bf16.mxu0 0
    %987 = vmatpush1.bf16.msra.mxu0 0
    %988 = vmatprep.subr.bf16.mxu0 0
    %989 = vmatpush1.bf16.msra.mxu0 0
    %990 = vmatprep.subr.bf16.mxu0 0
    %991 = vmatpush1.bf16.msra.mxu0 0
    %992 = vmatprep.subr.bf16.mxu0 0
    %993 = vmatpush1.bf16.msra.mxu0 0
    %994 = vmatprep.mubr.bf16.mxu0 0
    %995 = vmatmul.mubr.bf16.gmra.mrb[0].mxu0 %v961
    %v996 = vpop.f32.mrb[0].mxu0
    %v997 = vadd.f32 0.0, %v996
    %v998 = vpop.f32.mrb[0].mxu0
    %v999 = vadd.f32 0.0, %v998
    %v1000 = vpop.f32.mrb[0].mxu0
    %v1001 = vpop.f32.mrb[0].mxu0
    %1002 = vdwg.mxu0
    %1003 = vmatprep.subr.bf16.mxu0 %v553
    %1004 = vmatpush1.bf16.msra.mxu0 %v552
    %1005 = vmatprep.subr.bf16.mxu0 %v557
    %1006 = vmatpush1.bf16.msra.mxu0 %v556
    %1007 = vmatprep.subr.bf16.mxu0 %v561
    %1008 = vmatpush1.bf16.msra.mxu0 %v560
    %1009 = vmatprep.subr.bf16.mxu0 %v565
    %1010 = vmatpush1.bf16.msra.mxu0 %v564
    %1011 = vmatprep.subr.bf16.mxu0 %v569
    %1012 = vmatpush1.bf16.msra.mxu0 %v568
    %1013 = vmatprep.subr.bf16.mxu0 %v573
    %1014 = vmatpush1.bf16.msra.mxu0 %v572
    %1015 = vmatprep.subr.bf16.mxu0 %v577
    %1016 = vmatpush1.bf16.msra.mxu0 %v576
    %1017 = vmatprep.subr.bf16.mxu0 %v581
    %1018 = vmatpush1.bf16.msra.mxu0 %v580
    %1019 = vmatprep.subr.bf16.mxu0 0
    %1020 = vmatpush1.bf16.msra.mxu0 0
    %1021 = vmatprep.subr.bf16.mxu0 0
    %1022 = vmatpush1.bf16.msra.mxu0 0
    %1023 = vmatprep.subr.bf16.mxu0 0
    %1024 = vmatpush1.bf16.msra.mxu0 0
    %1025 = vmatprep.subr.bf16.mxu0 0
    %1026 = vmatpush1.bf16.msra.mxu0 0
    %1027 = vmatprep.subr.bf16.mxu0 0
    %1028 = vmatpush1.bf16.msra.mxu0 0
    %1029 = vmatprep.subr.bf16.mxu0 0
    %1030 = vmatpush1.bf16.msra.mxu0 0
    %1031 = vmatprep.subr.bf16.mxu0 0
    %1032 = vmatpush1.bf16.msra.mxu0 0
    %1033 = vmatprep.subr.bf16.mxu0 0
    %1034 = vmatpush1.bf16.msra.mxu0 0
    %1035 = vmatprep.mubr.bf16.mxu0 0
    %1036 = vmatmul.mubr.bf16.gmra.mrb[0].mxu0 %v961
    %v1037 = vpop.f32.mrb[0].mxu0
    %v1038 = vadd.f32 0.0, %v1037
    %v1039 = vpop.f32.mrb[0].mxu0
    %v1040 = vadd.f32 0.0, %v1039
    %v1041 = vpop.f32.mrb[0].mxu0
    %v1042 = vpop.f32.mrb[0].mxu0
    %1043 = vdwg.mxu0
    %v1044 = vadd.f32 %v957, %v997
    %v1045 = vadd.f32 %v958, %v999
    %v1046 = vadd.f32 %v959, %v1038
    %v1047 = vadd.f32 %v960, %v1040
    %v1048 = vxor.u32 %v1044, 2147483648
    %v1049 = vmul.f32 %v1048, 1.442695
    %v1050 = vpow.pop %v1049
    %v1051 = vadd.f32 %v1050, 1.0
    %v1052 = vrcp.pop %v1051
    %v1053 = vmul.f32 1.0, %v1052
    %v1054 = vxor.u32 %v1045, 2147483648
    %v1055 = vmul.f32 %v1054, 1.442695
    %v1056 = vpow.pop %v1055
    %v1057 = vadd.f32 %v1056, 1.0
    %v1058 = vrcp.pop %v1057
    %v1059 = vmul.f32 1.0, %v1058
    %v1060 = vtanh.pop %v1046
    %v1061 = vxor.u32 %v1047, 2147483648
    %v1062 = vmul.f32 %v1061, 1.442695
    %v1063 = vpow.pop %v1062
    %v1064 = vadd.f32 %v1063, 1.0
    %v1065 = vrcp.pop %v1064
    %v1066 = vmul.f32 1.0, %v1065
    %v1067 = vmul.f32 %v1059, %v953
    %v1068 = vmul.f32 %v1053, %v1060
    %v1069 = vadd.f32 %v1067, %v1068
    %v1070 = vtanh.pop %v1069
    %v1071 = vmul.f32 %v1066, %v1070
    %1072 = vst [vmem:[#allocation3 + $0x18] sm:$0xff] %v1071
    %v1073 = vld [vmem:[#allocation2 + $0x80] sm:$0xff]
    %v1074 = vld [vmem:[#allocation2 + $0x88] sm:$0xff]
    %v1075 = vld [vmem:[#allocation2 + $0x90] sm:$0xff]
    %v1076 = vld [vmem:[#allocation2 + $0x98] sm:$0xff]
    %v1077 = vpack.c.bf16 %v1071, %v1071
    %1078 = vmatprep.subr.bf16.mxu0 %v551
    %1079 = vmatpush1.bf16.msra.mxu0 %v550
    %1080 = vmatprep.subr.bf16.mxu0 %v555
    %1081 = vmatpush1.bf16.msra.mxu0 %v554
    %1082 = vmatprep.subr.bf16.mxu0 %v559
    %1083 = vmatpush1.bf16.msra.mxu0 %v558
    %1084 = vmatprep.subr.bf16.mxu0 %v563
    %1085 = vmatpush1.bf16.msra.mxu0 %v562
    %1086 = vmatprep.subr.bf16.mxu0 %v567
    %1087 = vmatpush1.bf16.msra.mxu0 %v566
    %1088 = vmatprep.subr.bf16.mxu0 %v571
    %1089 = vmatpush1.bf16.msra.mxu0 %v570
    %1090 = vmatprep.subr.bf16.mxu0 %v575
    %1091 = vmatpush1.bf16.msra.mxu0 %v574
    %1092 = vmatprep.subr.bf16.mxu0 %v579
    %1093 = vmatpush1.bf16.msra.mxu0 %v578
    %1094 = vmatprep.subr.bf16.mxu0 0
    %1095 = vmatpush1.bf16.msra.mxu0 0
    %1096 = vmatprep.subr.bf16.mxu0 0
    %1097 = vmatpush1.bf16.msra.mxu0 0
    %1098 = vmatprep.subr.bf16.mxu0 0
    %1099 = vmatpush1.bf16.msra.mxu0 0
    %1100 = vmatprep.subr.bf16.mxu0 0
    %1101 = vmatpush1.bf16.msra.mxu0 0
    %1102 = vmatprep.subr.bf16.mxu0 0
    %1103 = vmatpush1.bf16.msra.mxu0 0
    %1104 = vmatprep.subr.bf16.mxu0 0
    %1105 = vmatpush1.bf16.msra.mxu0 0
    %1106 = vmatprep.subr.bf16.mxu0 0
    %1107 = vmatpush1.bf16.msra.mxu0 0
    %1108 = vmatprep.subr.bf16.mxu0 0
    %1109 = vmatpush1.bf16.msra.mxu0 0
    %1110 = vmatprep.mubr.bf16.mxu0 0
    %1111 = vmatmul.mubr.bf16.gmra.mrb[0].mxu0 %v1077
    %v1112 = vpop.f32.mrb[0].mxu0
    %v1113 = vadd.f32 0.0, %v1112
    %v1114 = vpop.f32.mrb[0].mxu0
    %v1115 = vadd.f32 0.0, %v1114
    %v1116 = vpop.f32.mrb[0].mxu0
    %v1117 = vpop.f32.mrb[0].mxu0
    %1118 = vdwg.mxu0
    %1119 = vmatprep.subr.bf16.mxu0 %v553
    %1120 = vmatpush1.bf16.msra.mxu0 %v552
    %1121 = vmatprep.subr.bf16.mxu0 %v557
    %1122 = vmatpush1.bf16.msra.mxu0 %v556
    %1123 = vmatprep.subr.bf16.mxu0 %v561
    %1124 = vmatpush1.bf16.msra.mxu0 %v560
    %1125 = vmatprep.subr.bf16.mxu0 %v565
    %1126 = vmatpush1.bf16.msra.mxu0 %v564
    %1127 = vmatprep.subr.bf16.mxu0 %v569
    %1128 = vmatpush1.bf16.msra.mxu0 %v568
    %1129 = vmatprep.subr.bf16.mxu0 %v573
    %1130 = vmatpush1.bf16.msra.mxu0 %v572
    %1131 = vmatprep.subr.bf16.mxu0 %v577
    %1132 = vmatpush1.bf16.msra.mxu0 %v576
    %1133 = vmatprep.subr.bf16.mxu0 %v581
    %1134 = vmatpush1.bf16.msra.mxu0 %v580
    %1135 = vmatprep.subr.bf16.mxu0 0
    %1136 = vmatpush1.bf16.msra.mxu0 0
    %1137 = vmatprep.subr.bf16.mxu0 0
    %1138 = vmatpush1.bf16.msra.mxu0 0
    %1139 = vmatprep.subr.bf16.mxu0 0
    %1140 = vmatpush1.bf16.msra.mxu0 0
    %1141 = vmatprep.subr.bf16.mxu0 0
    %1142 = vmatpush1.bf16.msra.mxu0 0
    %1143 = vmatprep.subr.bf16.mxu0 0
    %1144 = vmatpush1.bf16.msra.mxu0 0
    %1145 = vmatprep.subr.bf16.mxu0 0
    %1146 = vmatpush1.bf16.msra.mxu0 0
    %1147 = vmatprep.subr.bf16.mxu0 0
    %1148 = vmatpush1.bf16.msra.mxu0 0
    %1149 = vmatprep.subr.bf16.mxu0 0
    %1150 = vmatpush1.bf16.msra.mxu0 0
    %1151 = vmatprep.mubr.bf16.mxu0 0
    %1152 = vmatmul.mubr.bf16.gmra.mrb[0].mxu0 %v1077
    %v1153 = vpop.f32.mrb[0].mxu0
    %v1154 = vadd.f32 0.0, %v1153
    %v1155 = vpop.f32.mrb[0].mxu0
    %v1156 = vadd.f32 0.0, %v1155
    %v1157 = vpop.f32.mrb[0].mxu0
    %v1158 = vpop.f32.mrb[0].mxu0
    %1159 = vdwg.mxu0
    %v1160 = vadd.f32 %v1073, %v1113
    %v1161 = vadd.f32 %v1074, %v1115
    %v1162 = vadd.f32 %v1075, %v1154
    %v1163 = vadd.f32 %v1076, %v1156
    %v1164 = vxor.u32 %v1160, 2147483648
    %v1165 = vmul.f32 %v1164, 1.442695
    %v1166 = vpow.pop %v1165
    %v1167 = vadd.f32 %v1166, 1.0
    %v1168 = vrcp.pop %v1167
    %v1169 = vmul.f32 1.0, %v1168
    %v1170 = vxor.u32 %v1161, 2147483648
    %v1171 = vmul.f32 %v1170, 1.442695
    %v1172 = vpow.pop %v1171
    %v1173 = vadd.f32 %v1172, 1.0
    %v1174 = vrcp.pop %v1173
    %v1175 = vmul.f32 1.0, %v1174
    %v1176 = vtanh.pop %v1162
    %v1177 = vxor.u32 %v1163, 2147483648
    %v1178 = vmul.f32 %v1177, 1.442695
    %v1179 = vpow.pop %v1178
    %v1180 = vadd.f32 %v1179, 1.0
    %v1181 = vrcp.pop %v1180
    %v1182 = vmul.f32 1.0, %v1181
    %v1183 = vmul.f32 %v1175, %v1069
    %v1184 = vmul.f32 %v1169, %v1176
    %v1185 = vadd.f32 %v1183, %v1184
    %v1186 = vtanh.pop %v1185
    %v1187 = vmul.f32 %v1182, %v1186
    %1188 = vst [vmem:[#allocation3 + $0x20] sm:$0xff] %v1187
    %v1189 = vld [vmem:[#allocation2 + $0xa0] sm:$0xff]
    %v1190 = vld [vmem:[#allocation2 + $0xa8] sm:$0xff]
    %v1191 = vld [vmem:[#allocation2 + $0xb0] sm:$0xff]
    %v1192 = vld [vmem:[#allocation2 + $0xb8] sm:$0xff]
    %v1193 = vpack.c.bf16 %v1187, %v1187
    %1194 = vmatprep.subr.bf16.mxu0 %v551
    %1195 = vmatpush1.bf16.msra.mxu0 %v550
    %1196 = vmatprep.subr.bf16.mxu0 %v555
    %1197 = vmatpush1.bf16.msra.mxu0 %v554
    %1198 = vmatprep.subr.bf16.mxu0 %v559
    %1199 = vmatpush1.bf16.msra.mxu0 %v558
    %1200 = vmatprep.subr.bf16.mxu0 %v563
    %1201 = vmatpush1.bf16.msra.mxu0 %v562
    %1202 = vmatprep.subr.bf16.mxu0 %v567
    %1203 = vmatpush1.bf16.msra.mxu0 %v566
    %1204 = vmatprep.subr.bf16.mxu0 %v571
    %1205 = vmatpush1.bf16.msra.mxu0 %v570
    %1206 = vmatprep.subr.bf16.mxu0 %v575
    %1207 = vmatpush1.bf16.msra.mxu0 %v574
    %1208 = vmatprep.subr.bf16.mxu0 %v579
    %1209 = vmatpush1.bf16.msra.mxu0 %v578
    %1210 = vmatprep.subr.bf16.mxu0 0
    %1211 = vmatpush1.bf16.msra.mxu0 0
    %1212 = vmatprep.subr.bf16.mxu0 0
    %1213 = vmatpush1.bf16.msra.mxu0 0
    %1214 = vmatprep.subr.bf16.mxu0 0
    %1215 = vmatpush1.bf16.msra.mxu0 0
    %1216 = vmatprep.subr.bf16.mxu0 0
    %1217 = vmatpush1.bf16.msra.mxu0 0
    %1218 = vmatprep.subr.bf16.mxu0 0
    %1219 = vmatpush1.bf16.msra.mxu0 0
    %1220 = vmatprep.subr.bf16.mxu0 0
    %1221 = vmatpush1.bf16.msra.mxu0 0
    %1222 = vmatprep.subr.bf16.mxu0 0
    %1223 = vmatpush1.bf16.msra.mxu0 0
    %1224 = vmatprep.subr.bf16.mxu0 0
    %1225 = vmatpush1.bf16.msra.mxu0 0
    %1226 = vmatprep.mubr.bf16.mxu0 0
    %1227 = vmatmul.mubr.bf16.gmra.mrb[0].mxu0 %v1193
    %v1228 = vpop.f32.mrb[0].mxu0
    %v1229 = vadd.f32 0.0, %v1228
    %v1230 = vpop.f32.mrb[0].mxu0
    %v1231 = vadd.f32 0.0, %v1230
    %v1232 = vpop.f32.mrb[0].mxu0
    %v1233 = vpop.f32.mrb[0].mxu0
    %1234 = vdwg.mxu0
    %1235 = vmatprep.subr.bf16.mxu0 %v553
    %1236 = vmatpush1.bf16.msra.mxu0 %v552
    %1237 = vmatprep.subr.bf16.mxu0 %v557
    %1238 = vmatpush1.bf16.msra.mxu0 %v556
    %1239 = vmatprep.subr.bf16.mxu0 %v561
    %1240 = vmatpush1.bf16.msra.mxu0 %v560
    %1241 = vmatprep.subr.bf16.mxu0 %v565
    %1242 = vmatpush1.bf16.msra.mxu0 %v564
    %1243 = vmatprep.subr.bf16.mxu0 %v569
    %1244 = vmatpush1.bf16.msra.mxu0 %v568
    %1245 = vmatprep.subr.bf16.mxu0 %v573
    %1246 = vmatpush1.bf16.msra.mxu0 %v572
    %1247 = vmatprep.subr.bf16.mxu0 %v577
    %1248 = vmatpush1.bf16.msra.mxu0 %v576
    %1249 = vmatprep.subr.bf16.mxu0 %v581
    %1250 = vmatpush1.bf16.msra.mxu0 %v580
    %1251 = vmatprep.subr.bf16.mxu0 0
    %1252 = vmatpush1.bf16.msra.mxu0 0
    %1253 = vmatprep.subr.bf16.mxu0 0
    %1254 = vmatpush1.bf16.msra.mxu0 0
    %1255 = vmatprep.subr.bf16.mxu0 0
    %1256 = vmatpush1.bf16.msra.mxu0 0
    %1257 = vmatprep.subr.bf16.mxu0 0
    %1258 = vmatpush1.bf16.msra.mxu0 0
    %1259 = vmatprep.subr.bf16.mxu0 0
    %1260 = vmatpush1.bf16.msra.mxu0 0
    %1261 = vmatprep.subr.bf16.mxu0 0
    %1262 = vmatpush1.bf16.msra.mxu0 0
    %1263 = vmatprep.subr.bf16.mxu0 0
    %1264 = vmatpush1.bf16.msra.mxu0 0
    %1265 = vmatprep.subr.bf16.mxu0 0
    %1266 = vmatpush1.bf16.msra.mxu0 0
    %1267 = vmatprep.mubr.bf16.mxu0 0
    %1268 = vmatmul.mubr.bf16.gmra.mrb[0].mxu0 %v1193
    %v1269 = vpop.f32.mrb[0].mxu0
    %v1270 = vadd.f32 0.0, %v1269
    %v1271 = vpop.f32.mrb[0].mxu0
    %v1272 = vadd.f32 0.0, %v1271
    %v1273 = vpop.f32.mrb[0].mxu0
    %v1274 = vpop.f32.mrb[0].mxu0
    %1275 = vdwg.mxu0
    %v1276 = vadd.f32 %v1189, %v1229
    %v1277 = vadd.f32 %v1190, %v1231
    %v1278 = vadd.f32 %v1191, %v1270
    %v1279 = vadd.f32 %v1192, %v1272
    %v1280 = vxor.u32 %v1276, 2147483648
    %v1281 = vmul.f32 %v1280, 1.442695
    %v1282 = vpow.pop %v1281
    %v1283 = vadd.f32 %v1282, 1.0
    %v1284 = vrcp.pop %v1283
    %v1285 = vmul.f32 1.0, %v1284
    %v1286 = vxor.u32 %v1277, 2147483648
    %v1287 = vmul.f32 %v1286, 1.442695
    %v1288 = vpow.pop %v1287
    %v1289 = vadd.f32 %v1288, 1.0
    %v1290 = vrcp.pop %v1289
    %v1291 = vmul.f32 1.0, %v1290
    %v1292 = vtanh.pop %v1278
    %v1293 = vxor.u32 %v1279, 2147483648
    %v1294 = vmul.f32 %v1293, 1.442695
    %v1295 = vpow.pop %v1294
    %v1296 = vadd.f32 %v1295, 1.0
    %v1297 = vrcp.pop %v1296
    %v1298 = vmul.f32 1.0, %v1297
    %v1299 = vmul.f32 %v1291, %v1185
    %v1300 = vmul.f32 %v1285, %v1292
    %v1301 = vadd.f32 %v1299, %v1300
    %v1302 = vtanh.pop %v1301
    %v1303 = vmul.f32 %v1298, %v1302
    %1304 = vst [vmem:[#allocation3 + $0x28] sm:$0xff] %v1303
    %v1305 = vld [vmem:[#allocation2 + $0xc0] sm:$0xff]
    %v1306 = vld [vmem:[#allocation2 + $0xc8] sm:$0xff]
    %v1307 = vld [vmem:[#allocation2 + $0xd0] sm:$0xff]
    %v1308 = vld [vmem:[#allocation2 + $0xd8] sm:$0xff]
    %v1309 = vpack.c.bf16 %v1303, %v1303
    %1310 = vmatprep.subr.bf16.mxu0 %v551
    %1311 = vmatpush1.bf16.msra.mxu0 %v550
    %1312 = vmatprep.subr.bf16.mxu0 %v555
    %1313 = vmatpush1.bf16.msra.mxu0 %v554
    %1314 = vmatprep.subr.bf16.mxu0 %v559
    %1315 = vmatpush1.bf16.msra.mxu0 %v558
    %1316 = vmatprep.subr.bf16.mxu0 %v563
    %1317 = vmatpush1.bf16.msra.mxu0 %v562
    %1318 = vmatprep.subr.bf16.mxu0 %v567
    %1319 = vmatpush1.bf16.msra.mxu0 %v566
    %1320 = vmatprep.subr.bf16.mxu0 %v571
    %1321 = vmatpush1.bf16.msra.mxu0 %v570
    %1322 = vmatprep.subr.bf16.mxu0 %v575
    %1323 = vmatpush1.bf16.msra.mxu0 %v574
    %1324 = vmatprep.subr.bf16.mxu0 %v579
    %1325 = vmatpush1.bf16.msra.mxu0 %v578
    %1326 = vmatprep.subr.bf16.mxu0 0
    %1327 = vmatpush1.bf16.msra.mxu0 0
    %1328 = vmatprep.subr.bf16.mxu0 0
    %1329 = vmatpush1.bf16.msra.mxu0 0
    %1330 = vmatprep.subr.bf16.mxu0 0
    %1331 = vmatpush1.bf16.msra.mxu0 0
    %1332 = vmatprep.subr.bf16.mxu0 0
    %1333 = vmatpush1.bf16.msra.mxu0 0
    %1334 = vmatprep.subr.bf16.mxu0 0
    %1335 = vmatpush1.bf16.msra.mxu0 0
    %1336 = vmatprep.subr.bf16.mxu0 0
    %1337 = vmatpush1.bf16.msra.mxu0 0
    %1338 = vmatprep.subr.bf16.mxu0 0
    %1339 = vmatpush1.bf16.msra.mxu0 0
    %1340 = vmatprep.subr.bf16.mxu0 0
    %1341 = vmatpush1.bf16.msra.mxu0 0
    %1342 = vmatprep.mubr.bf16.mxu0 0
    %1343 = vmatmul.mubr.bf16.gmra.mrb[0].mxu0 %v1309
    %v1344 = vpop.f32.mrb[0].mxu0
    %v1345 = vadd.f32 0.0, %v1344
    %v1346 = vpop.f32.mrb[0].mxu0
    %v1347 = vadd.f32 0.0, %v1346
    %v1348 = vpop.f32.mrb[0].mxu0
    %v1349 = vpop.f32.mrb[0].mxu0
    %1350 = vdwg.mxu0
    %1351 = vmatprep.subr.bf16.mxu0 %v553
    %1352 = vmatpush1.bf16.msra.mxu0 %v552
    %1353 = vmatprep.subr.bf16.mxu0 %v557
    %1354 = vmatpush1.bf16.msra.mxu0 %v556
    %1355 = vmatprep.subr.bf16.mxu0 %v561
    %1356 = vmatpush1.bf16.msra.mxu0 %v560
    %1357 = vmatprep.subr.bf16.mxu0 %v565
    %1358 = vmatpush1.bf16.msra.mxu0 %v564
    %1359 = vmatprep.subr.bf16.mxu0 %v569
    %1360 = vmatpush1.bf16.msra.mxu0 %v568
    %1361 = vmatprep.subr.bf16.mxu0 %v573
    %1362 = vmatpush1.bf16.msra.mxu0 %v572
    %1363 = vmatprep.subr.bf16.mxu0 %v577
    %1364 = vmatpush1.bf16.msra.mxu0 %v576
    %1365 = vmatprep.subr.bf16.mxu0 %v581
    %1366 = vmatpush1.bf16.msra.mxu0 %v580
    %1367 = vmatprep.subr.bf16.mxu0 0
    %1368 = vmatpush1.bf16.msra.mxu0 0
    %1369 = vmatprep.subr.bf16.mxu0 0
    %1370 = vmatpush1.bf16.msra.mxu0 0
    %1371 = vmatprep.subr.bf16.mxu0 0
    %1372 = vmatpush1.bf16.msra.mxu0 0
    %1373 = vmatprep.subr.bf16.mxu0 0
    %1374 = vmatpush1.bf16.msra.mxu0 0
    %1375 = vmatprep.subr.bf16.mxu0 0
    %1376 = vmatpush1.bf16.msra.mxu0 0
    %1377 = vmatprep.subr.bf16.mxu0 0
    %1378 = vmatpush1.bf16.msra.mxu0 0
    %1379 = vmatprep.subr.bf16.mxu0 0
    %1380 = vmatpush1.bf16.msra.mxu0 0
    %1381 = vmatprep.subr.bf16.mxu0 0
    %1382 = vmatpush1.bf16.msra.mxu0 0
    %1383 = vmatprep.mubr.bf16.mxu0 0
    %1384 = vmatmul.mubr.bf16.gmra.mrb[0].mxu0 %v1309
    %v1385 = vpop.f32.mrb[0].mxu0
    %v1386 = vadd.f32 0.0, %v1385
    %v1387 = vpop.f32.mrb[0].mxu0
    %v1388 = vadd.f32 0.0, %v1387
    %v1389 = vpop.f32.mrb[0].mxu0
    %v1390 = vpop.f32.mrb[0].mxu0
    %1391 = vdwg.mxu0
    %v1392 = vadd.f32 %v1305, %v1345
    %v1393 = vadd.f32 %v1306, %v1347
    %v1394 = vadd.f32 %v1307, %v1386
    %v1395 = vadd.f32 %v1308, %v1388
    %v1396 = vxor.u32 %v1392, 2147483648
    %v1397 = vmul.f32 %v1396, 1.442695
    %v1398 = vpow.pop %v1397
    %v1399 = vadd.f32 %v1398, 1.0
    %v1400 = vrcp.pop %v1399
    %v1401 = vmul.f32 1.0, %v1400
    %v1402 = vxor.u32 %v1393, 2147483648
    %v1403 = vmul.f32 %v1402, 1.442695
    %v1404 = vpow.pop %v1403
    %v1405 = vadd.f32 %v1404, 1.0
    %v1406 = vrcp.pop %v1405
    %v1407 = vmul.f32 1.0, %v1406
    %v1408 = vtanh.pop %v1394
    %v1409 = vxor.u32 %v1395, 2147483648
    %v1410 = vmul.f32 %v1409, 1.442695
    %v1411 = vpow.pop %v1410
    %v1412 = vadd.f32 %v1411, 1.0
    %v1413 = vrcp.pop %v1412
    %v1414 = vmul.f32 1.0, %v1413
    %v1415 = vmul.f32 %v1407, %v1301
    %v1416 = vmul.f32 %v1401, %v1408
    %v1417 = vadd.f32 %v1415, %v1416
    %v1418 = vtanh.pop %v1417
    %v1419 = vmul.f32 %v1414, %v1418
    %1420 = vst [vmem:[#allocation3 + $0x30] sm:$0xff] %v1419
    %v1421 = vld [vmem:[#allocation2 + $0xe0] sm:$0xff]
    %v1422 = vld [vmem:[#allocation2 + $0xe8] sm:$0xff]
    %v1423 = vld [vmem:[#allocation2 + $0xf0] sm:$0xff]
    %v1424 = vld [vmem:[#allocation2 + $0xf8] sm:$0xff]
    %v1425 = vpack.c.bf16 %v1419, %v1419
    %1426 = vmatprep.subr.bf16.mxu0 %v551
    %1427 = vmatpush1.bf16.msra.mxu0 %v550
    %1428 = vmatprep.subr.bf16.mxu0 %v555
    %1429 = vmatpush1.bf16.msra.mxu0 %v554
    %1430 = vmatprep.subr.bf16.mxu0 %v559
    %1431 = vmatpush1.bf16.msra.mxu0 %v558
    %1432 = vmatprep.subr.bf16.mxu0 %v563
    %1433 = vmatpush1.bf16.msra.mxu0 %v562
    %1434 = vmatprep.subr.bf16.mxu0 %v567
    %1435 = vmatpush1.bf16.msra.mxu0 %v566
    %1436 = vmatprep.subr.bf16.mxu0 %v571
    %1437 = vmatpush1.bf16.msra.mxu0 %v570
    %1438 = vmatprep.subr.bf16.mxu0 %v575
    %1439 = vmatpush1.bf16.msra.mxu0 %v574
    %1440 = vmatprep.subr.bf16.mxu0 %v579
    %1441 = vmatpush1.bf16.msra.mxu0 %v578
    %1442 = vmatprep.subr.bf16.mxu0 0
    %1443 = vmatpush1.bf16.msra.mxu0 0
    %1444 = vmatprep.subr.bf16.mxu0 0
    %1445 = vmatpush1.bf16.msra.mxu0 0
    %1446 = vmatprep.subr.bf16.mxu0 0
    %1447 = vmatpush1.bf16.msra.mxu0 0
    %1448 = vmatprep.subr.bf16.mxu0 0
    %1449 = vmatpush1.bf16.msra.mxu0 0
    %1450 = vmatprep.subr.bf16.mxu0 0
    %1451 = vmatpush1.bf16.msra.mxu0 0
    %1452 = vmatprep.subr.bf16.mxu0 0
    %1453 = vmatpush1.bf16.msra.mxu0 0
    %1454 = vmatprep.subr.bf16.mxu0 0
    %1455 = vmatpush1.bf16.msra.mxu0 0
    %1456 = vmatprep.subr.bf16.mxu0 0
    %1457 = vmatpush1.bf16.msra.mxu0 0
    %1458 = vmatprep.mubr.bf16.mxu0 0
    %1459 = vmatmul.mubr.bf16.gmra.mrb[0].mxu0 %v1425
    %v1460 = vpop.f32.mrb[0].mxu0
    %v1461 = vadd.f32 0.0, %v1460
    %v1462 = vpop.f32.mrb[0].mxu0
    %v1463 = vadd.f32 0.0, %v1462
    %v1464 = vpop.f32.mrb[0].mxu0
    %v1465 = vpop.f32.mrb[0].mxu0
    %1466 = vdwg.mxu0
    %1467 = vmatprep.subr.bf16.mxu0 %v553
    %1468 = vmatpush1.bf16.msra.mxu0 %v552
    %1469 = vmatprep.subr.bf16.mxu0 %v557
    %1470 = vmatpush1.bf16.msra.mxu0 %v556
    %1471 = vmatprep.subr.bf16.mxu0 %v561
    %1472 = vmatpush1.bf16.msra.mxu0 %v560
    %1473 = vmatprep.subr.bf16.mxu0 %v565
    %1474 = vmatpush1.bf16.msra.mxu0 %v564
    %1475 = vmatprep.subr.bf16.mxu0 %v569
    %1476 = vmatpush1.bf16.msra.mxu0 %v568
    %1477 = vmatprep.subr.bf16.mxu0 %v573
    %1478 = vmatpush1.bf16.msra.mxu0 %v572
    %1479 = vmatprep.subr.bf16.mxu0 %v577
    %1480 = vmatpush1.bf16.msra.mxu0 %v576
    %1481 = vmatprep.subr.bf16.mxu0 %v581
    %1482 = vmatpush1.bf16.msra.mxu0 %v580
    %1483 = vmatprep.subr.bf16.mxu0 0
    %1484 = vmatpush1.bf16.msra.mxu0 0
    %1485 = vmatprep.subr.bf16.mxu0 0
    %1486 = vmatpush1.bf16.msra.mxu0 0
    %1487 = vmatprep.subr.bf16.mxu0 0
    %1488 = vmatpush1.bf16.msra.mxu0 0
    %1489 = vmatprep.subr.bf16.mxu0 0
    %1490 = vmatpush1.bf16.msra.mxu0 0
    %1491 = vmatprep.subr.bf16.mxu0 0
    %1492 = vmatpush1.bf16.msra.mxu0 0
    %1493 = vmatprep.subr.bf16.mxu0 0
    %1494 = vmatpush1.bf16.msra.mxu0 0
    %1495 = vmatprep.subr.bf16.mxu0 0
    %1496 = vmatpush1.bf16.msra.mxu0 0
    %1497 = vmatprep.subr.bf16.mxu0 0
    %1498 = vmatpush1.bf16.msra.mxu0 0
    %1499 = vmatprep.mubr.bf16.mxu0 0
    %1500 = vmatmul.mubr.bf16.gmra.mrb[0].mxu0 %v1425
    %v1501 = vpop.f32.mrb[0].mxu0
    %v1502 = vadd.f32 0.0, %v1501
    %v1503 = vpop.f32.mrb[0].mxu0
    %v1504 = vadd.f32 0.0, %v1503
    %v1505 = vpop.f32.mrb[0].mxu0
    %v1506 = vpop.f32.mrb[0].mxu0
    %1507 = vdwg.mxu0
    %v1508 = vadd.f32 %v1421, %v1461
    %v1509 = vadd.f32 %v1422, %v1463
    %v1510 = vadd.f32 %v1423, %v1502
    %v1511 = vadd.f32 %v1424, %v1504
    %v1512 = vxor.u32 %v1508, 2147483648
    %v1513 = vmul.f32 %v1512, 1.442695
    %v1514 = vpow.pop %v1513
    %v1515 = vadd.f32 %v1514, 1.0
    %v1516 = vrcp.pop %v1515
    %v1517 = vmul.f32 1.0, %v1516
    %v1518 = vxor.u32 %v1509, 2147483648
    %v1519 = vmul.f32 %v1518, 1.442695
    %v1520 = vpow.pop %v1519
    %v1521 = vadd.f32 %v1520, 1.0
    %v1522 = vrcp.pop %v1521
    %v1523 = vmul.f32 1.0, %v1522
    %v1524 = vtanh.pop %v1510
    %v1525 = vxor.u32 %v1511, 2147483648
    %v1526 = vmul.f32 %v1525, 1.442695
    %v1527 = vpow.pop %v1526
    %v1528 = vadd.f32 %v1527, 1.0
    %v1529 = vrcp.pop %v1528
    %v1530 = vmul.f32 1.0, %v1529
    %v1531 = vmul.f32 %v1523, %v1417
    %v1532 = vmul.f32 %v1517, %v1524
    %v1533 = vadd.f32 %v1531, %v1532
    %v1534 = vtanh.pop %v1533
    %v1535 = vmul.f32 %v1530, %v1534
    %1536 = vst [vmem:[#allocation3 + $0x38] sm:$0xff] %v1535
    %v1537 = vld [vmem:[%s6] sm:$0xf]
    %s1538 = smul.u32 4, 16
    %s1539 = smul.u32 %s1538, 4
    %s1540 = sshll.u32 %s1539, 4
    %1541 = dma.done [#allocation6], %s1540
    %s1542 = sshll.u32 %s1539, 4
    %1543 = dma.done %s94, %s1542
    %v1544 = vld [vmem:[#allocation4] sm:$0xff]
    %v1545 = vld [vmem:[#allocation4 + $0x8] sm:$0xff]
    %v1546 = vld [vmem:[#allocation4 + $0x10] sm:$0xff]
    %v1547 = vld [vmem:[#allocation4 + $0x18] sm:$0xff]
    %v1548 = vld [vmem:[#allocation4 + $0x20] sm:$0xff]
    %v1549 = vld [vmem:[#allocation4 + $0x28] sm:$0xff]
    %v1550 = vld [vmem:[#allocation4 + $0x30] sm:$0xff]
    %v1551 = vld [vmem:[#allocation4 + $0x38] sm:$0xff]
    %v1552 = vld [vmem:[#allocation4 + $0x40] sm:$0xff]
    %v1553 = vld [vmem:[#allocation4 + $0x48] sm:$0xff]
    %v1554 = vld [vmem:[#allocation4 + $0x50] sm:$0xff]
    %v1555 = vld [vmem:[#allocation4 + $0x58] sm:$0xff]
    %v1556 = vld [vmem:[#allocation4 + $0x60] sm:$0xff]
    %v1557 = vld [vmem:[#allocation4 + $0x68] sm:$0xff]
    %v1558 = vld [vmem:[#allocation4 + $0x70] sm:$0xff]
    %v1559 = vld [vmem:[#allocation4 + $0x78] sm:$0xff]
    %v1560 = vld [vmem:[#allocation4 + $0x80] sm:$0xff]
    %v1561 = vld [vmem:[#allocation4 + $0x88] sm:$0xff]
    %v1562 = vld [vmem:[#allocation4 + $0x90] sm:$0xff]
    %v1563 = vld [vmem:[#allocation4 + $0x98] sm:$0xff]
    %v1564 = vld [vmem:[#allocation4 + $0xa0] sm:$0xff]
    %v1565 = vld [vmem:[#allocation4 + $0xa8] sm:$0xff]
    %v1566 = vld [vmem:[#allocation4 + $0xb0] sm:$0xff]
    %v1567 = vld [vmem:[#allocation4 + $0xb8] sm:$0xff]
    %v1568 = vld [vmem:[#allocation4 + $0xc0] sm:$0xff]
    %v1569 = vld [vmem:[#allocation4 + $0xc8] sm:$0xff]
    %v1570 = vld [vmem:[#allocation4 + $0xd0] sm:$0xff]
    %v1571 = vld [vmem:[#allocation4 + $0xd8] sm:$0xff]
    %v1572 = vld [vmem:[#allocation4 + $0xe0] sm:$0xff]
    %v1573 = vld [vmem:[#allocation4 + $0xe8] sm:$0xff]
    %v1574 = vld [vmem:[#allocation4 + $0xf0] sm:$0xff]
    %v1575 = vld [vmem:[#allocation4 + $0xf8] sm:$0xff]
    %v1576 = vld [vmem:[#allocation5] sm:$0xff]
    %v1577 = vld [vmem:[#allocation5 + $0x8] sm:$0xff]
    %v1578 = vld [vmem:[#allocation5 + $0x10] sm:$0xff]
    %v1579 = vld [vmem:[#allocation5 + $0x18] sm:$0xff]
    %v1580 = vld [vmem:[#allocation5 + $0x20] sm:$0xff]
    %v1581 = vld [vmem:[#allocation5 + $0x28] sm:$0xff]
    %v1582 = vld [vmem:[#allocation5 + $0x30] sm:$0xff]
    %v1583 = vld [vmem:[#allocation5 + $0x38] sm:$0xff]
    %v1584 = vld [vmem:[#allocation5 + $0x40] sm:$0xff]
    %v1585 = vld [vmem:[#allocation5 + $0x48] sm:$0xff]
    %v1586 = vld [vmem:[#allocation5 + $0x50] sm:$0xff]
    %v1587 = vld [vmem:[#allocation5 + $0x58] sm:$0xff]
    %v1588 = vld [vmem:[#allocation5 + $0x60] sm:$0xff]
    %v1589 = vld [vmem:[#allocation5 + $0x68] sm:$0xff]
    %v1590 = vld [vmem:[#allocation5 + $0x70] sm:$0xff]
    %v1591 = vld [vmem:[#allocation5 + $0x78] sm:$0xff]
    %v1592 = vld [vmem:[#allocation5 + $0x80] sm:$0xff]
    %v1593 = vld [vmem:[#allocation5 + $0x88] sm:$0xff]
    %v1594 = vld [vmem:[#allocation5 + $0x90] sm:$0xff]
    %v1595 = vld [vmem:[#allocation5 + $0x98] sm:$0xff]
    %v1596 = vld [vmem:[#allocation5 + $0xa0] sm:$0xff]
    %v1597 = vld [vmem:[#allocation5 + $0xa8] sm:$0xff]
    %v1598 = vld [vmem:[#allocation5 + $0xb0] sm:$0xff]
    %v1599 = vld [vmem:[#allocation5 + $0xb8] sm:$0xff]
    %v1600 = vld [vmem:[#allocation5 + $0xc0] sm:$0xff]
    %v1601 = vld [vmem:[#allocation5 + $0xc8] sm:$0xff]
    %v1602 = vld [vmem:[#allocation5 + $0xd0] sm:$0xff]
    %v1603 = vld [vmem:[#allocation5 + $0xd8] sm:$0xff]
    %v1604 = vld [vmem:[#allocation5 + $0xe0] sm:$0xff]
    %v1605 = vld [vmem:[#allocation5 + $0xe8] sm:$0xff]
    %v1606 = vld [vmem:[#allocation5 + $0xf0] sm:$0xff]
    %v1607 = vld [vmem:[#allocation5 + $0xf8] sm:$0xff]
    %v1608 = vld [vmem:[#allocation3] sm:$0xff]
    %v1609 = vld [vmem:[#allocation3 + $0x8] sm:$0xff]
    %v1610 = vld [vmem:[#allocation3 + $0x10] sm:$0xff]
    %v1611 = vld [vmem:[#allocation3 + $0x18] sm:$0xff]
    %v1612 = vld [vmem:[#allocation3 + $0x20] sm:$0xff]
    %v1613 = vld [vmem:[#allocation3 + $0x28] sm:$0xff]
    %v1614 = vld [vmem:[#allocation3 + $0x30] sm:$0xff]
    %v1615 = vld [vmem:[#allocation3 + $0x38] sm:$0xff]
    %v1616 = vpack.c.bf16 %v1609, %v1608
    %v1617 = vpack.c.bf16 %v1611, %v1610
    %v1618 = vpack.c.bf16 %v1613, %v1612
    %v1619 = vpack.c.bf16 %v1615, %v1614
    %v1621 = vlaneseq
    %v1622 = vshrl.u32 %v1621, 7
    %v1623 = vsub.s32 0, %v1622
    %v1624 = vrot.slane %v1537, %v1623
    %v1625 = vlaneseq
    %v1626 = vshrl.u32 %v1625, 7
    %v1627 = vsub.s32 1, %v1626
    %v1628 = vrot.slane %v1537, %v1627
    %v1629 = vlaneseq
    %v1630 = vshrl.u32 %v1629, 7
    %v1631 = vsub.s32 2, %v1630
    %v1632 = vrot.slane %v1537, %v1631
    %v1633 = vlaneseq
    %v1634 = vshrl.u32 %v1633, 7
    %v1635 = vsub.s32 3, %v1634
    %v1636 = vrot.slane %v1537, %v1635
    %1641 = vmatprep.subr.bf16.mxu0 %v1545
    %1642 = vmatpush1.bf16.msra.mxu0 %v1544
    %1643 = vmatprep.subr.bf16.mxu0 %v1549
    %1644 = vmatpush1.bf16.msra.mxu0 %v1548
    %1645 = vmatprep.subr.bf16.mxu0 %v1553
    %1646 = vmatpush1.bf16.msra.mxu0 %v1552
    %1647 = vmatprep.subr.bf16.mxu0 %v1557
    %1648 = vmatpush1.bf16.msra.mxu0 %v1556
    %1649 = vmatprep.subr.bf16.mxu0 %v1561
    %1650 = vmatpush1.bf16.msra.mxu0 %v1560
    %1651 = vmatprep.subr.bf16.mxu0 %v1565
    %1652 = vmatpush1.bf16.msra.mxu0 %v1564
    %1653 = vmatprep.subr.bf16.mxu0 %v1569
    %1654 = vmatpush1.bf16.msra.mxu0 %v1568
    %1655 = vmatprep.subr.bf16.mxu0 %v1573
    %1656 = vmatpush1.bf16.msra.mxu0 %v1572
    %1657 = vmatprep.subr.bf16.mxu0 0
    %1658 = vmatpush1.bf16.msra.mxu0 0
    %1659 = vmatprep.subr.bf16.mxu0 0
    %1660 = vmatpush1.bf16.msra.mxu0 0
    %1661 = vmatprep.subr.bf16.mxu0 0
    %1662 = vmatpush1.bf16.msra.mxu0 0
    %1663 = vmatprep.subr.bf16.mxu0 0
    %1664 = vmatpush1.bf16.msra.mxu0 0
    %1665 = vmatprep.subr.bf16.mxu0 0
    %1666 = vmatpush1.bf16.msra.mxu0 0
    %1667 = vmatprep.subr.bf16.mxu0 0
    %1668 = vmatpush1.bf16.msra.mxu0 0
    %1669 = vmatprep.subr.bf16.mxu0 0
    %1670 = vmatpush1.bf16.msra.mxu0 0
    %1671 = vmatprep.subr.bf16.mxu0 0
    %1672 = vmatpush1.bf16.msra.mxu0 0
    %1673 = vmatprep.mubr.bf16.mxu0 0
    %1674 = vmatmul.mubr.bf16.gmra.mrb[0].mxu0 %v1616
    %v1675 = vpop.f32.mrb[0].mxu0
    %v1676 = vadd.f32 %v1624, %v1675
    %v1677 = vpop.f32.mrb[0].mxu0
    %v1678 = vadd.f32 %v1628, %v1677
    %v1679 = vpop.f32.mrb[0].mxu0
    %v1680 = vadd.f32 %v1624, %v1679
    %v1681 = vpop.f32.mrb[0].mxu0
    %v1682 = vadd.f32 %v1628, %v1681
    %1683 = vmatprep.mubr.bf16.mxu0 0
    %1684 = vmatmul.mubr.bf16.gmra.mrb[0].mxu0 %v1617
    %v1685 = vpop.f32.mrb[0].mxu0
    %v1686 = vadd.f32 %v1624, %v1685
    %v1687 = vpop.f32.mrb[0].mxu0
    %v1688 = vadd.f32 %v1628, %v1687
    %v1689 = vpop.f32.mrb[0].mxu0
    %v1690 = vadd.f32 %v1624, %v1689
    %v1691 = vpop.f32.mrb[0].mxu0
    %v1692 = vadd.f32 %v1628, %v1691
    %1693 = vmatprep.mubr.bf16.mxu0 0
    %1694 = vmatmul.mubr.bf16.gmra.mrb[0].mxu0 %v1618
    %v1695 = vpop.f32.mrb[0].mxu0
    %v1696 = vadd.f32 %v1624, %v1695
    %v1697 = vpop.f32.mrb[0].mxu0
    %v1698 = vadd.f32 %v1628, %v1697
    %v1699 = vpop.f32.mrb[0].mxu0
    %v1700 = vadd.f32 %v1624, %v1699
    %v1701 = vpop.f32.mrb[0].mxu0
    %v1702 = vadd.f32 %v1628, %v1701
    %1703 = vmatprep.mubr.bf16.mxu0 0
    %1704 = vmatmul.mubr.bf16.gmra.mrb[0].mxu0 %v1619
    %v1705 = vpop.f32.mrb[0].mxu0
    %v1706 = vadd.f32 %v1624, %v1705
    %v1707 = vpop.f32.mrb[0].mxu0
    %v1708 = vadd.f32 %v1628, %v1707
    %v1709 = vpop.f32.mrb[0].mxu0
    %v1710 = vadd.f32 %v1624, %v1709
    %v1711 = vpop.f32.mrb[0].mxu0
    %v1712 = vadd.f32 %v1628, %v1711
    %1713 = vdwg.mxu0
    %1714 = vmatprep.subr.bf16.mxu0 %v1547
    %1715 = vmatpush1.bf16.msra.mxu0 %v1546
    %1716 = vmatprep.subr.bf16.mxu0 %v1551
    %1717 = vmatpush1.bf16.msra.mxu0 %v1550
    %1718 = vmatprep.subr.bf16.mxu0 %v1555
    %1719 = vmatpush1.bf16.msra.mxu0 %v1554
    %1720 = vmatprep.subr.bf16.mxu0 %v1559
    %1721 = vmatpush1.bf16.msra.mxu0 %v1558
    %1722 = vmatprep.subr.bf16.mxu0 %v1563
    %1723 = vmatpush1.bf16.msra.mxu0 %v1562
    %1724 = vmatprep.subr.bf16.mxu0 %v1567
    %1725 = vmatpush1.bf16.msra.mxu0 %v1566
    %1726 = vmatprep.subr.bf16.mxu0 %v1571
    %1727 = vmatpush1.bf16.msra.mxu0 %v1570
    %1728 = vmatprep.subr.bf16.mxu0 %v1575
    %1729 = vmatpush1.bf16.msra.mxu0 %v1574
    %1730 = vmatprep.subr.bf16.mxu0 0
    %1731 = vmatpush1.bf16.msra.mxu0 0
    %1732 = vmatprep.subr.bf16.mxu0 0
    %1733 = vmatpush1.bf16.msra.mxu0 0
    %1734 = vmatprep.subr.bf16.mxu0 0
    %1735 = vmatpush1.bf16.msra.mxu0 0
    %1736 = vmatprep.subr.bf16.mxu0 0
    %1737 = vmatpush1.bf16.msra.mxu0 0
    %1738 = vmatprep.subr.bf16.mxu0 0
    %1739 = vmatpush1.bf16.msra.mxu0 0
    %1740 = vmatprep.subr.bf16.mxu0 0
    %1741 = vmatpush1.bf16.msra.mxu0 0
    %1742 = vmatprep.subr.bf16.mxu0 0
    %1743 = vmatpush1.bf16.msra.mxu0 0
    %1744 = vmatprep.subr.bf16.mxu0 0
    %1745 = vmatpush1.bf16.msra.mxu0 0
    %1746 = vmatprep.mubr.bf16.mxu0 0
    %1747 = vmatmul.mubr.bf16.gmra.mrb[0].mxu0 %v1616
    %v1748 = vpop.f32.mrb[0].mxu0
    %v1749 = vadd.f32 %v1632, %v1748
    %v1750 = vpop.f32.mrb[0].mxu0
    %v1751 = vadd.f32 %v1636, %v1750
    %v1752 = vpop.f32.mrb[0].mxu0
    %v1753 = vadd.f32 %v1632, %v1752
    %v1754 = vpop.f32.mrb[0].mxu0
    %v1755 = vadd.f32 %v1636, %v1754
    %1756 = vmatprep.mubr.bf16.mxu0 0
    %1757 = vmatmul.mubr.bf16.gmra.mrb[0].mxu0 %v1617
    %v1758 = vpop.f32.mrb[0].mxu0
    %v1759 = vadd.f32 %v1632, %v1758
    %v1760 = vpop.f32.mrb[0].mxu0
    %v1761 = vadd.f32 %v1636, %v1760
    %v1762 = vpop.f32.mrb[0].mxu0
    %v1763 = vadd.f32 %v1632, %v1762
    %v1764 = vpop.f32.mrb[0].mxu0
    %v1765 = vadd.f32 %v1636, %v1764
    %1766 = vmatprep.mubr.bf16.mxu0 0
    %1767 = vmatmul.mubr.bf16.gmra.mrb[0].mxu0 %v1618
    %v1768 = vpop.f32.mrb[0].mxu0
    %v1769 = vadd.f32 %v1632, %v1768
    %v1770 = vpop.f32.mrb[0].mxu0
    %v1771 = vadd.f32 %v1636, %v1770
    %v1772 = vpop.f32.mrb[0].mxu0
    %v1773 = vadd.f32 %v1632, %v1772
    %v1774 = vpop.f32.mrb[0].mxu0
    %v1775 = vadd.f32 %v1636, %v1774
    %1776 = vmatprep.mubr.bf16.mxu0 0
    %1777 = vmatmul.mubr.bf16.gmra.mrb[0].mxu0 %v1619
    %v1778 = vpop.f32.mrb[0].mxu0
    %v1779 = vadd.f32 %v1632, %v1778
    %v1780 = vpop.f32.mrb[0].mxu0
    %v1781 = vadd.f32 %v1636, %v1780
    %v1782 = vpop.f32.mrb[0].mxu0
    %v1783 = vadd.f32 %v1632, %v1782
    %v1784 = vpop.f32.mrb[0].mxu0
    %v1785 = vadd.f32 %v1636, %v1784
    %1786 = vdwg.mxu0
    %1787 = vst [vmem:[#allocation2] sm:$0xff] %v1676
    %1788 = vst [vmem:[#allocation2 + $0x8] sm:$0xff] %v1678
    %1789 = vst [vmem:[#allocation2 + $0x10] sm:$0xff] %v1749
    %1790 = vst [vmem:[#allocation2 + $0x18] sm:$0xff] %v1751
    %1791 = vst [vmem:[#allocation2 + $0x20] sm:$0xff] %v1680
    %1792 = vst [vmem:[#allocation2 + $0x28] sm:$0xff] %v1682
    %1793 = vst [vmem:[#allocation2 + $0x30] sm:$0xff] %v1753
    %1794 = vst [vmem:[#allocation2 + $0x38] sm:$0xff] %v1755
    %1795 = vst [vmem:[#allocation2 + $0x40] sm:$0xff] %v1686
    %1796 = vst [vmem:[#allocation2 + $0x48] sm:$0xff] %v1688
    %1797 = vst [vmem:[#allocation2 + $0x50] sm:$0xff] %v1759
    %1798 = vst [vmem:[#allocation2 + $0x58] sm:$0xff] %v1761
    %1799 = vst [vmem:[#allocation2 + $0x60] sm:$0xff] %v1690
    %1800 = vst [vmem:[#allocation2 + $0x68] sm:$0xff] %v1692
    %1801 = vst [vmem:[#allocation2 + $0x70] sm:$0xff] %v1763
    %1802 = vst [vmem:[#allocation2 + $0x78] sm:$0xff] %v1765
    %1803 = vst [vmem:[#allocation2 + $0x80] sm:$0xff] %v1696
    %1804 = vst [vmem:[#allocation2 + $0x88] sm:$0xff] %v1698
    %1805 = vst [vmem:[#allocation2 + $0x90] sm:$0xff] %v1769
    %1806 = vst [vmem:[#allocation2 + $0x98] sm:$0xff] %v1771
    %1807 = vst [vmem:[#allocation2 + $0xa0] sm:$0xff] %v1700
    %1808 = vst [vmem:[#allocation2 + $0xa8] sm:$0xff] %v1702
    %1809 = vst [vmem:[#allocation2 + $0xb0] sm:$0xff] %v1773
    %1810 = vst [vmem:[#allocation2 + $0xb8] sm:$0xff] %v1775
    %1811 = vst [vmem:[#allocation2 + $0xc0] sm:$0xff] %v1706
    %1812 = vst [vmem:[#allocation2 + $0xc8] sm:$0xff] %v1708
    %1813 = vst [vmem:[#allocation2 + $0xd0] sm:$0xff] %v1779
    %1814 = vst [vmem:[#allocation2 + $0xd8] sm:$0xff] %v1781
    %1815 = vst [vmem:[#allocation2 + $0xe0] sm:$0xff] %v1710
    %1816 = vst [vmem:[#allocation2 + $0xe8] sm:$0xff] %v1712
    %1817 = vst [vmem:[#allocation2 + $0xf0] sm:$0xff] %v1783
    %1818 = vst [vmem:[#allocation2 + $0xf8] sm:$0xff] %v1785
    %v1819 = vld [vmem:[#allocation2] sm:$0xff]
    %v1820 = vld [vmem:[#allocation2 + $0x8] sm:$0xff]
    %v1821 = vld [vmem:[#allocation2 + $0x10] sm:$0xff]
    %v1822 = vld [vmem:[#allocation2 + $0x18] sm:$0xff]
    %1823 = vmatprep.subr.bf16.mxu0 %v1577
    %1824 = vmatpush1.bf16.msra.mxu0 %v1576
    %1825 = vmatprep.subr.bf16.mxu0 %v1581
    %1826 = vmatpush1.bf16.msra.mxu0 %v1580
    %1827 = vmatprep.subr.bf16.mxu0 %v1585
    %1828 = vmatpush1.bf16.msra.mxu0 %v1584
    %1829 = vmatprep.subr.bf16.mxu0 %v1589
    %1830 = vmatpush1.bf16.msra.mxu0 %v1588
    %1831 = vmatprep.subr.bf16.mxu0 %v1593
    %1832 = vmatpush1.bf16.msra.mxu0 %v1592
    %1833 = vmatprep.subr.bf16.mxu0 %v1597
    %1834 = vmatpush1.bf16.msra.mxu0 %v1596
    %1835 = vmatprep.subr.bf16.mxu0 %v1601
    %1836 = vmatpush1.bf16.msra.mxu0 %v1600
    %1837 = vmatprep.subr.bf16.mxu0 %v1605
    %1838 = vmatpush1.bf16.msra.mxu0 %v1604
    %1839 = vmatprep.subr.bf16.mxu0 0
    %1840 = vmatpush1.bf16.msra.mxu0 0
    %1841 = vmatprep.subr.bf16.mxu0 0
    %1842 = vmatpush1.bf16.msra.mxu0 0
    %1843 = vmatprep.subr.bf16.mxu0 0
    %1844 = vmatpush1.bf16.msra.mxu0 0
    %1845 = vmatprep.subr.bf16.mxu0 0
    %1846 = vmatpush1.bf16.msra.mxu0 0
    %1847 = vmatprep.subr.bf16.mxu0 0
    %1848 = vmatpush1.bf16.msra.mxu0 0
    %1849 = vmatprep.subr.bf16.mxu0 0
    %1850 = vmatpush1.bf16.msra.mxu0 0
    %1851 = vmatprep.subr.bf16.mxu0 0
    %1852 = vmatpush1.bf16.msra.mxu0 0
    %1853 = vmatprep.subr.bf16.mxu0 0
    %1854 = vmatpush1.bf16.msra.mxu0 0
    %1855 = vmatprep.mubr.bf16.mxu0 0
    %1856 = vmatmul.mubr.bf16.gmra.mrb[0].mxu0 0
    %v1857 = vpop.f32.mrb[0].mxu0
    %v1858 = vadd.f32 0.0, %v1857
    %v1859 = vpop.f32.mrb[0].mxu0
    %v1860 = vadd.f32 0.0, %v1859
    %v1861 = vpop.f32.mrb[0].mxu0
    %v1862 = vpop.f32.mrb[0].mxu0
    %1863 = vdwg.mxu0
    %1864 = vmatprep.subr.bf16.mxu0 %v1579
    %1865 = vmatpush1.bf16.msra.mxu0 %v1578
    %1866 = vmatprep.subr.bf16.mxu0 %v1583
    %1867 = vmatpush1.bf16.msra.mxu0 %v1582
    %1868 = vmatprep.subr.bf16.mxu0 %v1587
    %1869 = vmatpush1.bf16.msra.mxu0 %v1586
    %1870 = vmatprep.subr.bf16.mxu0 %v1591
    %1871 = vmatpush1.bf16.msra.mxu0 %v1590
    %1872 = vmatprep.subr.bf16.mxu0 %v1595
    %1873 = vmatpush1.bf16.msra.mxu0 %v1594
    %1874 = vmatprep.subr.bf16.mxu0 %v1599
    %1875 = vmatpush1.bf16.msra.mxu0 %v1598
    %1876 = vmatprep.subr.bf16.mxu0 %v1603
    %1877 = vmatpush1.bf16.msra.mxu0 %v1602
    %1878 = vmatprep.subr.bf16.mxu0 %v1607
    %1879 = vmatpush1.bf16.msra.mxu0 %v1606
    %1880 = vmatprep.subr.bf16.mxu0 0
    %1881 = vmatpush1.bf16.msra.mxu0 0
    %1882 = vmatprep.subr.bf16.mxu0 0
    %1883 = vmatpush1.bf16.msra.mxu0 0
    %1884 = vmatprep.subr.bf16.mxu0 0
    %1885 = vmatpush1.bf16.msra.mxu0 0
    %1886 = vmatprep.subr.bf16.mxu0 0
    %1887 = vmatpush1.bf16.msra.mxu0 0
    %1888 = vmatprep.subr.bf16.mxu0 0
    %1889 = vmatpush1.bf16.msra.mxu0 0
    %1890 = vmatprep.subr.bf16.mxu0 0
    %1891 = vmatpush1.bf16.msra.mxu0 0
    %1892 = vmatprep.subr.bf16.mxu0 0
    %1893 = vmatpush1.bf16.msra.mxu0 0
    %1894 = vmatprep.subr.bf16.mxu0 0
    %1895 = vmatpush1.bf16.msra.mxu0 0
    %1896 = vmatprep.mubr.bf16.mxu0 0
    %1897 = vmatmul.mubr.bf16.gmra.mrb[0].mxu0 0
    %v1898 = vpop.f32.mrb[0].mxu0
    %v1899 = vadd.f32 0.0, %v1898
    %v1900 = vpop.f32.mrb[0].mxu0
    %v1901 = vadd.f32 0.0, %v1900
    %v1902 = vpop.f32.mrb[0].mxu0
    %v1903 = vpop.f32.mrb[0].mxu0
    %1904 = vdwg.mxu0
    %v1905 = vadd.f32 %v1819, %v1858
    %v1906 = vadd.f32 %v1820, %v1860
    %v1907 = vadd.f32 %v1821, %v1899
    %v1908 = vadd.f32 %v1822, %v1901
    %v1909 = vxor.u32 %v1905, 2147483648
    %v1910 = vmul.f32 %v1909, 1.442695
    %v1911 = vpow.pop %v1910
    %v1912 = vadd.f32 %v1911, 1.0
    %v1913 = vrcp.pop %v1912
    %v1914 = vmul.f32 1.0, %v1913
    %v1915 = vxor.u32 %v1906, 2147483648
    %v1916 = vmul.f32 %v1915, 1.442695
    %v1917 = vpow.pop %v1916
    %v1918 = vadd.f32 %v1917, 1.0
    %v1919 = vrcp.pop %v1918
    %v1920 = vmul.f32 1.0, %v1919
    %v1921 = vtanh.pop %v1907
    %v1922 = vxor.u32 %v1908, 2147483648
    %v1923 = vmul.f32 %v1922, 1.442695
    %v1924 = vpow.pop %v1923
    %v1925 = vadd.f32 %v1924, 1.0
    %v1926 = vrcp.pop %v1925
    %v1927 = vmul.f32 1.0, %v1926
    %v1928 = vmul.f32 %v1920, 0.0
    %v1929 = vmul.f32 %v1914, %v1921
    %v1930 = vadd.f32 %v1928, %v1929
    %v1931 = vtanh.pop %v1930
    %v1932 = vmul.f32 %v1927, %v1931
    %v1933 = vld [vmem:[#allocation2 + $0x20] sm:$0xff]
    %v1934 = vld [vmem:[#allocation2 + $0x28] sm:$0xff]
    %v1935 = vld [vmem:[#allocation2 + $0x30] sm:$0xff]
    %v1936 = vld [vmem:[#allocation2 + $0x38] sm:$0xff]
    %v1937 = vpack.c.bf16 %v1932, %v1932
    %1938 = vmatprep.subr.bf16.mxu0 %v1577
    %1939 = vmatpush1.bf16.msra.mxu0 %v1576
    %1940 = vmatprep.subr.bf16.mxu0 %v1581
    %1941 = vmatpush1.bf16.msra.mxu0 %v1580
    %1942 = vmatprep.subr.bf16.mxu0 %v1585
    %1943 = vmatpush1.bf16.msra.mxu0 %v1584
    %1944 = vmatprep.subr.bf16.mxu0 %v1589
    %1945 = vmatpush1.bf16.msra.mxu0 %v1588
    %1946 = vmatprep.subr.bf16.mxu0 %v1593
    %1947 = vmatpush1.bf16.msra.mxu0 %v1592
    %1948 = vmatprep.subr.bf16.mxu0 %v1597
    %1949 = vmatpush1.bf16.msra.mxu0 %v1596
    %1950 = vmatprep.subr.bf16.mxu0 %v1601
    %1951 = vmatpush1.bf16.msra.mxu0 %v1600
    %1952 = vmatprep.subr.bf16.mxu0 %v1605
    %1953 = vmatpush1.bf16.msra.mxu0 %v1604
    %1954 = vmatprep.subr.bf16.mxu0 0
    %1955 = vmatpush1.bf16.msra.mxu0 0
    %1956 = vmatprep.subr.bf16.mxu0 0
    %1957 = vmatpush1.bf16.msra.mxu0 0
    %1958 = vmatprep.subr.bf16.mxu0 0
    %1959 = vmatpush1.bf16.msra.mxu0 0
    %1960 = vmatprep.subr.bf16.mxu0 0
    %1961 = vmatpush1.bf16.msra.mxu0 0
    %1962 = vmatprep.subr.bf16.mxu0 0
    %1963 = vmatpush1.bf16.msra.mxu0 0
    %1964 = vmatprep.subr.bf16.mxu0 0
    %1965 = vmatpush1.bf16.msra.mxu0 0
    %1966 = vmatprep.subr.bf16.mxu0 0
    %1967 = vmatpush1.bf16.msra.mxu0 0
    %1968 = vmatprep.subr.bf16.mxu0 0
    %1969 = vmatpush1.bf16.msra.mxu0 0
    %1970 = vmatprep.mubr.bf16.mxu0 0
    %1971 = vmatmul.mubr.bf16.gmra.mrb[0].mxu0 %v1937
    %v1972 = vpop.f32.mrb[0].mxu0
    %v1973 = vadd.f32 0.0, %v1972
    %v1974 = vpop.f32.mrb[0].mxu0
    %v1975 = vadd.f32 0.0, %v1974
    %v1976 = vpop.f32.mrb[0].mxu0
    %v1977 = vpop.f32.mrb[0].mxu0
    %1978 = vdwg.mxu0
    %1979 = vmatprep.subr.bf16.mxu0 %v1579
    %1980 = vmatpush1.bf16.msra.mxu0 %v1578
    %1981 = vmatprep.subr.bf16.mxu0 %v1583
    %1982 = vmatpush1.bf16.msra.mxu0 %v1582
    %1983 = vmatprep.subr.bf16.mxu0 %v1587
    %1984 = vmatpush1.bf16.msra.mxu0 %v1586
    %1985 = vmatprep.subr.bf16.mxu0 %v1591
    %1986 = vmatpush1.bf16.msra.mxu0 %v1590
    %1987 = vmatprep.subr.bf16.mxu0 %v1595
    %1988 = vmatpush1.bf16.msra.mxu0 %v1594
    %1989 = vmatprep.subr.bf16.mxu0 %v1599
    %1990 = vmatpush1.bf16.msra.mxu0 %v1598
    %1991 = vmatprep.subr.bf16.mxu0 %v1603
    %1992 = vmatpush1.bf16.msra.mxu0 %v1602
    %1993 = vmatprep.subr.bf16.mxu0 %v1607
    %1994 = vmatpush1.bf16.msra.mxu0 %v1606
    %1995 = vmatprep.subr.bf16.mxu0 0
    %1996 = vmatpush1.bf16.msra.mxu0 0
    %1997 = vmatprep.subr.bf16.mxu0 0
    %1998 = vmatpush1.bf16.msra.mxu0 0
    %1999 = vmatprep.subr.bf16.mxu0 0
    %2000 = vmatpush1.bf16.msra.mxu0 0
    %2001 = vmatprep.subr.bf16.mxu0 0
    %2002 = vmatpush1.bf16.msra.mxu0 0
    %2003 = vmatprep.subr.bf16.mxu0 0
    %2004 = vmatpush1.bf16.msra.mxu0 0
    %2005 = vmatprep.subr.bf16.mxu0 0
    %2006 = vmatpush1.bf16.msra.mxu0 0
    %2007 = vmatprep.subr.bf16.mxu0 0
    %2008 = vmatpush1.bf16.msra.mxu0 0
    %2009 = vmatprep.subr.bf16.mxu0 0
    %2010 = vmatpush1.bf16.msra.mxu0 0
    %2011 = vmatprep.mubr.bf16.mxu0 0
    %2012 = vmatmul.mubr.bf16.gmra.mrb[0].mxu0 %v1937
    %v2013 = vpop.f32.mrb[0].mxu0
    %v2014 = vadd.f32 0.0, %v2013
    %v2015 = vpop.f32.mrb[0].mxu0
    %v2016 = vadd.f32 0.0, %v2015
    %v2017 = vpop.f32.mrb[0].mxu0
    %v2018 = vpop.f32.mrb[0].mxu0
    %2019 = vdwg.mxu0
    %v2020 = vadd.f32 %v1933, %v1973
    %v2021 = vadd.f32 %v1934, %v1975
    %v2022 = vadd.f32 %v1935, %v2014
    %v2023 = vadd.f32 %v1936, %v2016
    %v2024 = vxor.u32 %v2020, 2147483648
    %v2025 = vmul.f32 %v2024, 1.442695
    %v2026 = vpow.pop %v2025
    %v2027 = vadd.f32 %v2026, 1.0
    %v2028 = vrcp.pop %v2027
    %v2029 = vmul.f32 1.0, %v2028
    %v2030 = vxor.u32 %v2021, 2147483648
    %v2031 = vmul.f32 %v2030, 1.442695
    %v2032 = vpow.pop %v2031
    %v2033 = vadd.f32 %v2032, 1.0
    %v2034 = vrcp.pop %v2033
    %v2035 = vmul.f32 1.0, %v2034
    %v2036 = vtanh.pop %v2022
    %v2037 = vxor.u32 %v2023, 2147483648
    %v2038 = vmul.f32 %v2037, 1.442695
    %v2039 = vpow.pop %v2038
    %v2040 = vadd.f32 %v2039, 1.0
    %v2041 = vrcp.pop %v2040
    %v2042 = vmul.f32 1.0, %v2041
    %v2043 = vmul.f32 %v2035, %v1930
    %v2044 = vmul.f32 %v2029, %v2036
    %v2045 = vadd.f32 %v2043, %v2044
    %v2046 = vtanh.pop %v2045
    %v2047 = vmul.f32 %v2042, %v2046
    %v2048 = vld [vmem:[#allocation2 + $0x40] sm:$0xff]
    %v2049 = vld [vmem:[#allocation2 + $0x48] sm:$0xff]
    %v2050 = vld [vmem:[#allocation2 + $0x50] sm:$0xff]
    %v2051 = vld [vmem:[#allocation2 + $0x58] sm:$0xff]
    %v2052 = vpack.c.bf16 %v2047, %v2047
    %2053 = vmatprep.subr.bf16.mxu0 %v1577
    %2054 = vmatpush1.bf16.msra.mxu0 %v1576
    %2055 = vmatprep.subr.bf16.mxu0 %v1581
    %2056 = vmatpush1.bf16.msra.mxu0 %v1580
    %2057 = vmatprep.subr.bf16.mxu0 %v1585
    %2058 = vmatpush1.bf16.msra.mxu0 %v1584
    %2059 = vmatprep.subr.bf16.mxu0 %v1589
    %2060 = vmatpush1.bf16.msra.mxu0 %v1588
    %2061 = vmatprep.subr.bf16.mxu0 %v1593
    %2062 = vmatpush1.bf16.msra.mxu0 %v1592
    %2063 = vmatprep.subr.bf16.mxu0 %v1597
    %2064 = vmatpush1.bf16.msra.mxu0 %v1596
    %2065 = vmatprep.subr.bf16.mxu0 %v1601
    %2066 = vmatpush1.bf16.msra.mxu0 %v1600
    %2067 = vmatprep.subr.bf16.mxu0 %v1605
    %2068 = vmatpush1.bf16.msra.mxu0 %v1604
    %2069 = vmatprep.subr.bf16.mxu0 0
    %2070 = vmatpush1.bf16.msra.mxu0 0
    %2071 = vmatprep.subr.bf16.mxu0 0
    %2072 = vmatpush1.bf16.msra.mxu0 0
    %2073 = vmatprep.subr.bf16.mxu0 0
    %2074 = vmatpush1.bf16.msra.mxu0 0
    %2075 = vmatprep.subr.bf16.mxu0 0
    %2076 = vmatpush1.bf16.msra.mxu0 0
    %2077 = vmatprep.subr.bf16.mxu0 0
    %2078 = vmatpush1.bf16.msra.mxu0 0
    %2079 = vmatprep.subr.bf16.mxu0 0
    %2080 = vmatpush1.bf16.msra.mxu0 0
    %2081 = vmatprep.subr.bf16.mxu0 0
    %2082 = vmatpush1.bf16.msra.mxu0 0
    %2083 = vmatprep.subr.bf16.mxu0 0
    %2084 = vmatpush1.bf16.msra.mxu0 0
    %2085 = vmatprep.mubr.bf16.mxu0 0
    %2086 = vmatmul.mubr.bf16.gmra.mrb[0].mxu0 %v2052
    %v2087 = vpop.f32.mrb[0].mxu0
    %v2088 = vadd.f32 0.0, %v2087
    %v2089 = vpop.f32.mrb[0].mxu0
    %v2090 = vadd.f32 0.0, %v2089
    %v2091 = vpop.f32.mrb[0].mxu0
    %v2092 = vpop.f32.mrb[0].mxu0
    %2093 = vdwg.mxu0
    %2094 = vmatprep.subr.bf16.mxu0 %v1579
    %2095 = vmatpush1.bf16.msra.mxu0 %v1578
    %2096 = vmatprep.subr.bf16.mxu0 %v1583
    %2097 = vmatpush1.bf16.msra.mxu0 %v1582
    %2098 = vmatprep.subr.bf16.mxu0 %v1587
    %2099 = vmatpush1.bf16.msra.mxu0 %v1586
    %2100 = vmatprep.subr.bf16.mxu0 %v1591
    %2101 = vmatpush1.bf16.msra.mxu0 %v1590
    %2102 = vmatprep.subr.bf16.mxu0 %v1595
    %2103 = vmatpush1.bf16.msra.mxu0 %v1594
    %2104 = vmatprep.subr.bf16.mxu0 %v1599
    %2105 = vmatpush1.bf16.msra.mxu0 %v1598
    %2106 = vmatprep.subr.bf16.mxu0 %v1603
    %2107 = vmatpush1.bf16.msra.mxu0 %v1602
    %2108 = vmatprep.subr.bf16.mxu0 %v1607
    %2109 = vmatpush1.bf16.msra.mxu0 %v1606
    %2110 = vmatprep.subr.bf16.mxu0 0
    %2111 = vmatpush1.bf16.msra.mxu0 0
    %2112 = vmatprep.subr.bf16.mxu0 0
    %2113 = vmatpush1.bf16.msra.mxu0 0
    %2114 = vmatprep.subr.bf16.mxu0 0
    %2115 = vmatpush1.bf16.msra.mxu0 0
    %2116 = vmatprep.subr.bf16.mxu0 0
    %2117 = vmatpush1.bf16.msra.mxu0 0
    %2118 = vmatprep.subr.bf16.mxu0 0
    %2119 = vmatpush1.bf16.msra.mxu0 0
    %2120 = vmatprep.subr.bf16.mxu0 0
    %2121 = vmatpush1.bf16.msra.mxu0 0
    %2122 = vmatprep.subr.bf16.mxu0 0
    %2123 = vmatpush1.bf16.msra.mxu0 0
    %2124 = vmatprep.subr.bf16.mxu0 0
    %2125 = vmatpush1.bf16.msra.mxu0 0
    %2126 = vmatprep.mubr.bf16.mxu0 0
    %2127 = vmatmul.mubr.bf16.gmra.mrb[0].mxu0 %v2052
    %v2128 = vpop.f32.mrb[0].mxu0
    %v2129 = vadd.f32 0.0, %v2128
    %v2130 = vpop.f32.mrb[0].mxu0
    %v2131 = vadd.f32 0.0, %v2130
    %v2132 = vpop.f32.mrb[0].mxu0
    %v2133 = vpop.f32.mrb[0].mxu0
    %2134 = vdwg.mxu0
    %v2135 = vadd.f32 %v2048, %v2088
    %v2136 = vadd.f32 %v2049, %v2090
    %v2137 = vadd.f32 %v2050, %v2129
    %v2138 = vadd.f32 %v2051, %v2131
    %v2139 = vxor.u32 %v2135, 2147483648
    %v2140 = vmul.f32 %v2139, 1.442695
    %v2141 = vpow.pop %v2140
    %v2142 = vadd.f32 %v2141, 1.0
    %v2143 = vrcp.pop %v2142
    %v2144 = vmul.f32 1.0, %v2143
    %v2145 = vxor.u32 %v2136, 2147483648
    %v2146 = vmul.f32 %v2145, 1.442695
    %v2147 = vpow.pop %v2146
    %v2148 = vadd.f32 %v2147, 1.0
    %v2149 = vrcp.pop %v2148
    %v2150 = vmul.f32 1.0, %v2149
    %v2151 = vtanh.pop %v2137
    %v2152 = vxor.u32 %v2138, 2147483648
    %v2153 = vmul.f32 %v2152, 1.442695
    %v2154 = vpow.pop %v2153
    %v2155 = vadd.f32 %v2154, 1.0
    %v2156 = vrcp.pop %v2155
    %v2157 = vmul.f32 1.0, %v2156
    %v2158 = vmul.f32 %v2150, %v2045
    %v2159 = vmul.f32 %v2144, %v2151
    %v2160 = vadd.f32 %v2158, %v2159
    %v2161 = vtanh.pop %v2160
    %v2162 = vmul.f32 %v2157, %v2161
    %v2163 = vld [vmem:[#allocation2 + $0x60] sm:$0xff]
    %v2164 = vld [vmem:[#allocation2 + $0x68] sm:$0xff]
    %v2165 = vld [vmem:[#allocation2 + $0x70] sm:$0xff]
    %v2166 = vld [vmem:[#allocation2 + $0x78] sm:$0xff]
    %v2167 = vpack.c.bf16 %v2162, %v2162
    %2168 = vmatprep.subr.bf16.mxu0 %v1577
    %2169 = vmatpush1.bf16.msra.mxu0 %v1576
    %2170 = vmatprep.subr.bf16.mxu0 %v1581
    %2171 = vmatpush1.bf16.msra.mxu0 %v1580
    %2172 = vmatprep.subr.bf16.mxu0 %v1585
    %2173 = vmatpush1.bf16.msra.mxu0 %v1584
    %2174 = vmatprep.subr.bf16.mxu0 %v1589
    %2175 = vmatpush1.bf16.msra.mxu0 %v1588
    %2176 = vmatprep.subr.bf16.mxu0 %v1593
    %2177 = vmatpush1.bf16.msra.mxu0 %v1592
    %2178 = vmatprep.subr.bf16.mxu0 %v1597
    %2179 = vmatpush1.bf16.msra.mxu0 %v1596
    %2180 = vmatprep.subr.bf16.mxu0 %v1601
    %2181 = vmatpush1.bf16.msra.mxu0 %v1600
    %2182 = vmatprep.subr.bf16.mxu0 %v1605
    %2183 = vmatpush1.bf16.msra.mxu0 %v1604
    %2184 = vmatprep.subr.bf16.mxu0 0
    %2185 = vmatpush1.bf16.msra.mxu0 0
    %2186 = vmatprep.subr.bf16.mxu0 0
    %2187 = vmatpush1.bf16.msra.mxu0 0
    %2188 = vmatprep.subr.bf16.mxu0 0
    %2189 = vmatpush1.bf16.msra.mxu0 0
    %2190 = vmatprep.subr.bf16.mxu0 0
    %2191 = vmatpush1.bf16.msra.mxu0 0
    %2192 = vmatprep.subr.bf16.mxu0 0
    %2193 = vmatpush1.bf16.msra.mxu0 0
    %2194 = vmatprep.subr.bf16.mxu0 0
    %2195 = vmatpush1.bf16.msra.mxu0 0
    %2196 = vmatprep.subr.bf16.mxu0 0
    %2197 = vmatpush1.bf16.msra.mxu0 0
    %2198 = vmatprep.subr.bf16.mxu0 0
    %2199 = vmatpush1.bf16.msra.mxu0 0
    %2200 = vmatprep.mubr.bf16.mxu0 0
    %2201 = vmatmul.mubr.bf16.gmra.mrb[0].mxu0 %v2167
    %v2202 = vpop.f32.mrb[0].mxu0
    %v2203 = vadd.f32 0.0, %v2202
    %v2204 = vpop.f32.mrb[0].mxu0
    %v2205 = vadd.f32 0.0, %v2204
    %v2206 = vpop.f32.mrb[0].mxu0
    %v2207 = vpop.f32.mrb[0].mxu0
    %2208 = vdwg.mxu0
    %2209 = vmatprep.subr.bf16.mxu0 %v1579
    %2210 = vmatpush1.bf16.msra.mxu0 %v1578
    %2211 = vmatprep.subr.bf16.mxu0 %v1583
    %2212 = vmatpush1.bf16.msra.mxu0 %v1582
    %2213 = vmatprep.subr.bf16.mxu0 %v1587
    %2214 = vmatpush1.bf16.msra.mxu0 %v1586
    %2215 = vmatprep.subr.bf16.mxu0 %v1591
    %2216 = vmatpush1.bf16.msra.mxu0 %v1590
    %2217 = vmatprep.subr.bf16.mxu0 %v1595
    %2218 = vmatpush1.bf16.msra.mxu0 %v1594
    %2219 = vmatprep.subr.bf16.mxu0 %v1599
    %2220 = vmatpush1.bf16.msra.mxu0 %v1598
    %2221 = vmatprep.subr.bf16.mxu0 %v1603
    %2222 = vmatpush1.bf16.msra.mxu0 %v1602
    %2223 = vmatprep.subr.bf16.mxu0 %v1607
    %2224 = vmatpush1.bf16.msra.mxu0 %v1606
    %2225 = vmatprep.subr.bf16.mxu0 0
    %2226 = vmatpush1.bf16.msra.mxu0 0
    %2227 = vmatprep.subr.bf16.mxu0 0
    %2228 = vmatpush1.bf16.msra.mxu0 0
    %2229 = vmatprep.subr.bf16.mxu0 0
    %2230 = vmatpush1.bf16.msra.mxu0 0
    %2231 = vmatprep.subr.bf16.mxu0 0
    %2232 = vmatpush1.bf16.msra.mxu0 0
    %2233 = vmatprep.subr.bf16.mxu0 0
    %2234 = vmatpush1.bf16.msra.mxu0 0
    %2235 = vmatprep.subr.bf16.mxu0 0
    %2236 = vmatpush1.bf16.msra.mxu0 0
    %2237 = vmatprep.subr.bf16.mxu0 0
    %2238 = vmatpush1.bf16.msra.mxu0 0
    %2239 = vmatprep.subr.bf16.mxu0 0
    %2240 = vmatpush1.bf16.msra.mxu0 0
    %2241 = vmatprep.mubr.bf16.mxu0 0
    %2242 = vmatmul.mubr.bf16.gmra.mrb[0].mxu0 %v2167
    %v2243 = vpop.f32.mrb[0].mxu0
    %v2244 = vadd.f32 0.0, %v2243
    %v2245 = vpop.f32.mrb[0].mxu0
    %v2246 = vadd.f32 0.0, %v2245
    %v2247 = vpop.f32.mrb[0].mxu0
    %v2248 = vpop.f32.mrb[0].mxu0
    %2249 = vdwg.mxu0
    %v2250 = vadd.f32 %v2163, %v2203
    %v2251 = vadd.f32 %v2164, %v2205
    %v2252 = vadd.f32 %v2165, %v2244
    %v2253 = vadd.f32 %v2166, %v2246
    %v2254 = vxor.u32 %v2250, 2147483648
    %v2255 = vmul.f32 %v2254, 1.442695
    %v2256 = vpow.pop %v2255
    %v2257 = vadd.f32 %v2256, 1.0
    %v2258 = vrcp.pop %v2257
    %v2259 = vmul.f32 1.0, %v2258
    %v2260 = vxor.u32 %v2251, 2147483648
    %v2261 = vmul.f32 %v2260, 1.442695
    %v2262 = vpow.pop %v2261
    %v2263 = vadd.f32 %v2262, 1.0
    %v2264 = vrcp.pop %v2263
    %v2265 = vmul.f32 1.0, %v2264
    %v2266 = vtanh.pop %v2252
    %v2267 = vxor.u32 %v2253, 2147483648
    %v2268 = vmul.f32 %v2267, 1.442695
    %v2269 = vpow.pop %v2268
    %v2270 = vadd.f32 %v2269, 1.0
    %v2271 = vrcp.pop %v2270
    %v2272 = vmul.f32 1.0, %v2271
    %v2273 = vmul.f32 %v2265, %v2160
    %v2274 = vmul.f32 %v2259, %v2266
    %v2275 = vadd.f32 %v2273, %v2274
    %v2276 = vtanh.pop %v2275
    %v2277 = vmul.f32 %v2272, %v2276
    %v2278 = vld [vmem:[#allocation2 + $0x80] sm:$0xff]
    %v2279 = vld [vmem:[#allocation2 + $0x88] sm:$0xff]
    %v2280 = vld [vmem:[#allocation2 + $0x90] sm:$0xff]
    %v2281 = vld [vmem:[#allocation2 + $0x98] sm:$0xff]
    %v2282 = vpack.c.bf16 %v2277, %v2277
    %2283 = vmatprep.subr.bf16.mxu0 %v1577
    %2284 = vmatpush1.bf16.msra.mxu0 %v1576
    %2285 = vmatprep.subr.bf16.mxu0 %v1581
    %2286 = vmatpush1.bf16.msra.mxu0 %v1580
    %2287 = vmatprep.subr.bf16.mxu0 %v1585
    %2288 = vmatpush1.bf16.msra.mxu0 %v1584
    %2289 = vmatprep.subr.bf16.mxu0 %v1589
    %2290 = vmatpush1.bf16.msra.mxu0 %v1588
    %2291 = vmatprep.subr.bf16.mxu0 %v1593
    %2292 = vmatpush1.bf16.msra.mxu0 %v1592
    %2293 = vmatprep.subr.bf16.mxu0 %v1597
    %2294 = vmatpush1.bf16.msra.mxu0 %v1596
    %2295 = vmatprep.subr.bf16.mxu0 %v1601
    %2296 = vmatpush1.bf16.msra.mxu0 %v1600
    %2297 = vmatprep.subr.bf16.mxu0 %v1605
    %2298 = vmatpush1.bf16.msra.mxu0 %v1604
    %2299 = vmatprep.subr.bf16.mxu0 0
    %2300 = vmatpush1.bf16.msra.mxu0 0
    %2301 = vmatprep.subr.bf16.mxu0 0
    %2302 = vmatpush1.bf16.msra.mxu0 0
    %2303 = vmatprep.subr.bf16.mxu0 0
    %2304 = vmatpush1.bf16.msra.mxu0 0
    %2305 = vmatprep.subr.bf16.mxu0 0
    %2306 = vmatpush1.bf16.msra.mxu0 0
    %2307 = vmatprep.subr.bf16.mxu0 0
    %2308 = vmatpush1.bf16.msra.mxu0 0
    %2309 = vmatprep.subr.bf16.mxu0 0
    %2310 = vmatpush1.bf16.msra.mxu0 0
    %2311 = vmatprep.subr.bf16.mxu0 0
    %2312 = vmatpush1.bf16.msra.mxu0 0
    %2313 = vmatprep.subr.bf16.mxu0 0
    %2314 = vmatpush1.bf16.msra.mxu0 0
    %2315 = vmatprep.mubr.bf16.mxu0 0
    %2316 = vmatmul.mubr.bf16.gmra.mrb[0].mxu0 %v2282
    %v2317 = vpop.f32.mrb[0].mxu0
    %v2318 = vadd.f32 0.0, %v2317
    %v2319 = vpop.f32.mrb[0].mxu0
    %v2320 = vadd.f32 0.0, %v2319
    %v2321 = vpop.f32.mrb[0].mxu0
    %v2322 = vpop.f32.mrb[0].mxu0
    %2323 = vdwg.mxu0
    %2324 = vmatprep.subr.bf16.mxu0 %v1579
    %2325 = vmatpush1.bf16.msra.mxu0 %v1578
    %2326 = vmatprep.subr.bf16.mxu0 %v1583
    %2327 = vmatpush1.bf16.msra.mxu0 %v1582
    %2328 = vmatprep.subr.bf16.mxu0 %v1587
    %2329 = vmatpush1.bf16.msra.mxu0 %v1586
    %2330 = vmatprep.subr.bf16.mxu0 %v1591
    %2331 = vmatpush1.bf16.msra.mxu0 %v1590
    %2332 = vmatprep.subr.bf16.mxu0 %v1595
    %2333 = vmatpush1.bf16.msra.mxu0 %v1594
    %2334 = vmatprep.subr.bf16.mxu0 %v1599
    %2335 = vmatpush1.bf16.msra.mxu0 %v1598
    %2336 = vmatprep.subr.bf16.mxu0 %v1603
    %2337 = vmatpush1.bf16.msra.mxu0 %v1602
    %2338 = vmatprep.subr.bf16.mxu0 %v1607
    %2339 = vmatpush1.bf16.msra.mxu0 %v1606
    %2340 = vmatprep.subr.bf16.mxu0 0
    %2341 = vmatpush1.bf16.msra.mxu0 0
    %2342 = vmatprep.subr.bf16.mxu0 0
    %2343 = vmatpush1.bf16.msra.mxu0 0
    %2344 = vmatprep.subr.bf16.mxu0 0
    %2345 = vmatpush1.bf16.msra.mxu0 0
    %2346 = vmatprep.subr.bf16.mxu0 0
    %2347 = vmatpush1.bf16.msra.mxu0 0
    %2348 = vmatprep.subr.bf16.mxu0 0
    %2349 = vmatpush1.bf16.msra.mxu0 0
    %2350 = vmatprep.subr.bf16.mxu0 0
    %2351 = vmatpush1.bf16.msra.mxu0 0
    %2352 = vmatprep.subr.bf16.mxu0 0
    %2353 = vmatpush1.bf16.msra.mxu0 0
    %2354 = vmatprep.subr.bf16.mxu0 0
    %2355 = vmatpush1.bf16.msra.mxu0 0
    %2356 = vmatprep.mubr.bf16.mxu0 0
    %2357 = vmatmul.mubr.bf16.gmra.mrb[0].mxu0 %v2282
    %v2358 = vpop.f32.mrb[0].mxu0
    %v2359 = vadd.f32 0.0, %v2358
    %v2360 = vpop.f32.mrb[0].mxu0
    %v2361 = vadd.f32 0.0, %v2360
    %v2362 = vpop.f32.mrb[0].mxu0
    %v2363 = vpop.f32.mrb[0].mxu0
    %2364 = vdwg.mxu0
    %v2365 = vadd.f32 %v2278, %v2318
    %v2366 = vadd.f32 %v2279, %v2320
    %v2367 = vadd.f32 %v2280, %v2359
    %v2368 = vadd.f32 %v2281, %v2361
    %v2369 = vxor.u32 %v2365, 2147483648
    %v2370 = vmul.f32 %v2369, 1.442695
    %v2371 = vpow.pop %v2370
    %v2372 = vadd.f32 %v2371, 1.0
    %v2373 = vrcp.pop %v2372
    %v2374 = vmul.f32 1.0, %v2373
    %v2375 = vxor.u32 %v2366, 2147483648
    %v2376 = vmul.f32 %v2375, 1.442695
    %v2377 = vpow.pop %v2376
    %v2378 = vadd.f32 %v2377, 1.0
    %v2379 = vrcp.pop %v2378
    %v2380 = vmul.f32 1.0, %v2379
    %v2381 = vtanh.pop %v2367
    %v2382 = vxor.u32 %v2368, 2147483648
    %v2383 = vmul.f32 %v2382, 1.442695
    %v2384 = vpow.pop %v2383
    %v2385 = vadd.f32 %v2384, 1.0
    %v2386 = vrcp.pop %v2385
    %v2387 = vmul.f32 1.0, %v2386
    %v2388 = vmul.f32 %v2380, %v2275
    %v2389 = vmul.f32 %v2374, %v2381
    %v2390 = vadd.f32 %v2388, %v2389
    %v2391 = vtanh.pop %v2390
    %v2392 = vmul.f32 %v2387, %v2391
    %v2393 = vld [vmem:[#allocation2 + $0xa0] sm:$0xff]
    %v2394 = vld [vmem:[#allocation2 + $0xa8] sm:$0xff]
    %v2395 = vld [vmem:[#allocation2 + $0xb0] sm:$0xff]
    %v2396 = vld [vmem:[#allocation2 + $0xb8] sm:$0xff]
    %v2397 = vpack.c.bf16 %v2392, %v2392
    %2398 = vmatprep.subr.bf16.mxu0 %v1577
    %2399 = vmatpush1.bf16.msra.mxu0 %v1576
    %2400 = vmatprep.subr.bf16.mxu0 %v1581
    %2401 = vmatpush1.bf16.msra.mxu0 %v1580
    %2402 = vmatprep.subr.bf16.mxu0 %v1585
    %2403 = vmatpush1.bf16.msra.mxu0 %v1584
    %2404 = vmatprep.subr.bf16.mxu0 %v1589
    %2405 = vmatpush1.bf16.msra.mxu0 %v1588
    %2406 = vmatprep.subr.bf16.mxu0 %v1593
    %2407 = vmatpush1.bf16.msra.mxu0 %v1592
    %2408 = vmatprep.subr.bf16.mxu0 %v1597
    %2409 = vmatpush1.bf16.msra.mxu0 %v1596
    %2410 = vmatprep.subr.bf16.mxu0 %v1601
    %2411 = vmatpush1.bf16.msra.mxu0 %v1600
    %2412 = vmatprep.subr.bf16.mxu0 %v1605
    %2413 = vmatpush1.bf16.msra.mxu0 %v1604
    %2414 = vmatprep.subr.bf16.mxu0 0
    %2415 = vmatpush1.bf16.msra.mxu0 0
    %2416 = vmatprep.subr.bf16.mxu0 0
    %2417 = vmatpush1.bf16.msra.mxu0 0
    %2418 = vmatprep.subr.bf16.mxu0 0
    %2419 = vmatpush1.bf16.msra.mxu0 0
    %2420 = vmatprep.subr.bf16.mxu0 0
    %2421 = vmatpush1.bf16.msra.mxu0 0
    %2422 = vmatprep.subr.bf16.mxu0 0
    %2423 = vmatpush1.bf16.msra.mxu0 0
    %2424 = vmatprep.subr.bf16.mxu0 0
    %2425 = vmatpush1.bf16.msra.mxu0 0
    %2426 = vmatprep.subr.bf16.mxu0 0
    %2427 = vmatpush1.bf16.msra.mxu0 0
    %2428 = vmatprep.subr.bf16.mxu0 0
    %2429 = vmatpush1.bf16.msra.mxu0 0
    %2430 = vmatprep.mubr.bf16.mxu0 0
    %2431 = vmatmul.mubr.bf16.gmra.mrb[0].mxu0 %v2397
    %v2432 = vpop.f32.mrb[0].mxu0
    %v2433 = vadd.f32 0.0, %v2432
    %v2434 = vpop.f32.mrb[0].mxu0
    %v2435 = vadd.f32 0.0, %v2434
    %v2436 = vpop.f32.mrb[0].mxu0
    %v2437 = vpop.f32.mrb[0].mxu0
    %2438 = vdwg.mxu0
    %2439 = vmatprep.subr.bf16.mxu0 %v1579
    %2440 = vmatpush1.bf16.msra.mxu0 %v1578
    %2441 = vmatprep.subr.bf16.mxu0 %v1583
    %2442 = vmatpush1.bf16.msra.mxu0 %v1582
    %2443 = vmatprep.subr.bf16.mxu0 %v1587
    %2444 = vmatpush1.bf16.msra.mxu0 %v1586
    %2445 = vmatprep.subr.bf16.mxu0 %v1591
    %2446 = vmatpush1.bf16.msra.mxu0 %v1590
    %2447 = vmatprep.subr.bf16.mxu0 %v1595
    %2448 = vmatpush1.bf16.msra.mxu0 %v1594
    %2449 = vmatprep.subr.bf16.mxu0 %v1599
    %2450 = vmatpush1.bf16.msra.mxu0 %v1598
    %2451 = vmatprep.subr.bf16.mxu0 %v1603
    %2452 = vmatpush1.bf16.msra.mxu0 %v1602
    %2453 = vmatprep.subr.bf16.mxu0 %v1607
    %2454 = vmatpush1.bf16.msra.mxu0 %v1606
    %2455 = vmatprep.subr.bf16.mxu0 0
    %2456 = vmatpush1.bf16.msra.mxu0 0
    %2457 = vmatprep.subr.bf16.mxu0 0
    %2458 = vmatpush1.bf16.msra.mxu0 0
    %2459 = vmatprep.subr.bf16.mxu0 0
    %2460 = vmatpush1.bf16.msra.mxu0 0
    %2461 = vmatprep.subr.bf16.mxu0 0
    %2462 = vmatpush1.bf16.msra.mxu0 0
    %2463 = vmatprep.subr.bf16.mxu0 0
    %2464 = vmatpush1.bf16.msra.mxu0 0
    %2465 = vmatprep.subr.bf16.mxu0 0
    %2466 = vmatpush1.bf16.msra.mxu0 0
    %2467 = vmatprep.subr.bf16.mxu0 0
    %2468 = vmatpush1.bf16.msra.mxu0 0
    %2469 = vmatprep.subr.bf16.mxu0 0
    %2470 = vmatpush1.bf16.msra.mxu0 0
    %2471 = vmatprep.mubr.bf16.mxu0 0
    %2472 = vmatmul.mubr.bf16.gmra.mrb[0].mxu0 %v2397
    %v2473 = vpop.f32.mrb[0].mxu0
    %v2474 = vadd.f32 0.0, %v2473
    %v2475 = vpop.f32.mrb[0].mxu0
    %v2476 = vadd.f32 0.0, %v2475
    %v2477 = vpop.f32.mrb[0].mxu0
    %v2478 = vpop.f32.mrb[0].mxu0
    %2479 = vdwg.mxu0
    %v2480 = vadd.f32 %v2393, %v2433
    %v2481 = vadd.f32 %v2394, %v2435
    %v2482 = vadd.f32 %v2395, %v2474
    %v2483 = vadd.f32 %v2396, %v2476
    %v2484 = vxor.u32 %v2480, 2147483648
    %v2485 = vmul.f32 %v2484, 1.442695
    %v2486 = vpow.pop %v2485
    %v2487 = vadd.f32 %v2486, 1.0
    %v2488 = vrcp.pop %v2487
    %v2489 = vmul.f32 1.0, %v2488
    %v2490 = vxor.u32 %v2481, 2147483648
    %v2491 = vmul.f32 %v2490, 1.442695
    %v2492 = vpow.pop %v2491
    %v2493 = vadd.f32 %v2492, 1.0
    %v2494 = vrcp.pop %v2493
    %v2495 = vmul.f32 1.0, %v2494
    %v2496 = vtanh.pop %v2482
    %v2497 = vxor.u32 %v2483, 2147483648
    %v2498 = vmul.f32 %v2497, 1.442695
    %v2499 = vpow.pop %v2498
    %v2500 = vadd.f32 %v2499, 1.0
    %v2501 = vrcp.pop %v2500
    %v2502 = vmul.f32 1.0, %v2501
    %v2503 = vmul.f32 %v2495, %v2390
    %v2504 = vmul.f32 %v2489, %v2496
    %v2505 = vadd.f32 %v2503, %v2504
    %v2506 = vtanh.pop %v2505
    %v2507 = vmul.f32 %v2502, %v2506
    %v2508 = vld [vmem:[#allocation2 + $0xc0] sm:$0xff]
    %v2509 = vld [vmem:[#allocation2 + $0xc8] sm:$0xff]
    %v2510 = vld [vmem:[#allocation2 + $0xd0] sm:$0xff]
    %v2511 = vld [vmem:[#allocation2 + $0xd8] sm:$0xff]
    %v2512 = vpack.c.bf16 %v2507, %v2507
    %2513 = vmatprep.subr.bf16.mxu0 %v1577
    %2514 = vmatpush1.bf16.msra.mxu0 %v1576
    %2515 = vmatprep.subr.bf16.mxu0 %v1581
    %2516 = vmatpush1.bf16.msra.mxu0 %v1580
    %2517 = vmatprep.subr.bf16.mxu0 %v1585
    %2518 = vmatpush1.bf16.msra.mxu0 %v1584
    %2519 = vmatprep.subr.bf16.mxu0 %v1589
    %2520 = vmatpush1.bf16.msra.mxu0 %v1588
    %2521 = vmatprep.subr.bf16.mxu0 %v1593
    %2522 = vmatpush1.bf16.msra.mxu0 %v1592
    %2523 = vmatprep.subr.bf16.mxu0 %v1597
    %2524 = vmatpush1.bf16.msra.mxu0 %v1596
    %2525 = vmatprep.subr.bf16.mxu0 %v1601
    %2526 = vmatpush1.bf16.msra.mxu0 %v1600
    %2527 = vmatprep.subr.bf16.mxu0 %v1605
    %2528 = vmatpush1.bf16.msra.mxu0 %v1604
    %2529 = vmatprep.subr.bf16.mxu0 0
    %2530 = vmatpush1.bf16.msra.mxu0 0
    %2531 = vmatprep.subr.bf16.mxu0 0
    %2532 = vmatpush1.bf16.msra.mxu0 0
    %2533 = vmatprep.subr.bf16.mxu0 0
    %2534 = vmatpush1.bf16.msra.mxu0 0
    %2535 = vmatprep.subr.bf16.mxu0 0
    %2536 = vmatpush1.bf16.msra.mxu0 0
    %2537 = vmatprep.subr.bf16.mxu0 0
    %2538 = vmatpush1.bf16.msra.mxu0 0
    %2539 = vmatprep.subr.bf16.mxu0 0
    %2540 = vmatpush1.bf16.msra.mxu0 0
    %2541 = vmatprep.subr.bf16.mxu0 0
    %2542 = vmatpush1.bf16.msra.mxu0 0
    %2543 = vmatprep.subr.bf16.mxu0 0
    %2544 = vmatpush1.bf16.msra.mxu0 0
    %2545 = vmatprep.mubr.bf16.mxu0 0
    %2546 = vmatmul.mubr.bf16.gmra.mrb[0].mxu0 %v2512
    %v2547 = vpop.f32.mrb[0].mxu0
    %v2548 = vadd.f32 0.0, %v2547
    %v2549 = vpop.f32.mrb[0].mxu0
    %v2550 = vadd.f32 0.0, %v2549
    %v2551 = vpop.f32.mrb[0].mxu0
    %v2552 = vpop.f32.mrb[0].mxu0
    %2553 = vdwg.mxu0
    %2554 = vmatprep.subr.bf16.mxu0 %v1579
    %2555 = vmatpush1.bf16.msra.mxu0 %v1578
    %2556 = vmatprep.subr.bf16.mxu0 %v1583
    %2557 = vmatpush1.bf16.msra.mxu0 %v1582
    %2558 = vmatprep.subr.bf16.mxu0 %v1587
    %2559 = vmatpush1.bf16.msra.mxu0 %v1586
    %2560 = vmatprep.subr.bf16.mxu0 %v1591
    %2561 = vmatpush1.bf16.msra.mxu0 %v1590
    %2562 = vmatprep.subr.bf16.mxu0 %v1595
    %2563 = vmatpush1.bf16.msra.mxu0 %v1594
    %2564 = vmatprep.subr.bf16.mxu0 %v1599
    %2565 = vmatpush1.bf16.msra.mxu0 %v1598
    %2566 = vmatprep.subr.bf16.mxu0 %v1603
    %2567 = vmatpush1.bf16.msra.mxu0 %v1602
    %2568 = vmatprep.subr.bf16.mxu0 %v1607
    %2569 = vmatpush1.bf16.msra.mxu0 %v1606
    %2570 = vmatprep.subr.bf16.mxu0 0
    %2571 = vmatpush1.bf16.msra.mxu0 0
    %2572 = vmatprep.subr.bf16.mxu0 0
    %2573 = vmatpush1.bf16.msra.mxu0 0
    %2574 = vmatprep.subr.bf16.mxu0 0
    %2575 = vmatpush1.bf16.msra.mxu0 0
    %2576 = vmatprep.subr.bf16.mxu0 0
    %2577 = vmatpush1.bf16.msra.mxu0 0
    %2578 = vmatprep.subr.bf16.mxu0 0
    %2579 = vmatpush1.bf16.msra.mxu0 0
    %2580 = vmatprep.subr.bf16.mxu0 0
    %2581 = vmatpush1.bf16.msra.mxu0 0
    %2582 = vmatprep.subr.bf16.mxu0 0
    %2583 = vmatpush1.bf16.msra.mxu0 0
    %2584 = vmatprep.subr.bf16.mxu0 0
    %2585 = vmatpush1.bf16.msra.mxu0 0
    %2586 = vmatprep.mubr.bf16.mxu0 0
    %2587 = vmatmul.mubr.bf16.gmra.mrb[0].mxu0 %v2512
    %v2588 = vpop.f32.mrb[0].mxu0
    %v2589 = vadd.f32 0.0, %v2588
    %v2590 = vpop.f32.mrb[0].mxu0
    %v2591 = vadd.f32 0.0, %v2590
    %v2592 = vpop.f32.mrb[0].mxu0
    %v2593 = vpop.f32.mrb[0].mxu0
    %2594 = vdwg.mxu0
    %v2595 = vadd.f32 %v2508, %v2548
    %v2596 = vadd.f32 %v2509, %v2550
    %v2597 = vadd.f32 %v2510, %v2589
    %v2598 = vadd.f32 %v2511, %v2591
    %v2599 = vxor.u32 %v2595, 2147483648
    %v2600 = vmul.f32 %v2599, 1.442695
    %v2601 = vpow.pop %v2600
    %v2602 = vadd.f32 %v2601, 1.0
    %v2603 = vrcp.pop %v2602
    %v2604 = vmul.f32 1.0, %v2603
    %v2605 = vxor.u32 %v2596, 2147483648
    %v2606 = vmul.f32 %v2605, 1.442695
    %v2607 = vpow.pop %v2606
    %v2608 = vadd.f32 %v2607, 1.0
    %v2609 = vrcp.pop %v2608
    %v2610 = vmul.f32 1.0, %v2609
    %v2611 = vtanh.pop %v2597
    %v2612 = vxor.u32 %v2598, 2147483648
    %v2613 = vmul.f32 %v2612, 1.442695
    %v2614 = vpow.pop %v2613
    %v2615 = vadd.f32 %v2614, 1.0
    %v2616 = vrcp.pop %v2615
    %v2617 = vmul.f32 1.0, %v2616
    %v2618 = vmul.f32 %v2610, %v2505
    %v2619 = vmul.f32 %v2604, %v2611
    %v2620 = vadd.f32 %v2618, %v2619
    %v2621 = vtanh.pop %v2620
    %v2622 = vmul.f32 %v2617, %v2621
    %v2623 = vld [vmem:[#allocation2 + $0xe0] sm:$0xff]
    %v2624 = vld [vmem:[#allocation2 + $0xe8] sm:$0xff]
    %v2625 = vld [vmem:[#allocation2 + $0xf0] sm:$0xff]
    %v2626 = vld [vmem:[#allocation2 + $0xf8] sm:$0xff]
    %v2627 = vpack.c.bf16 %v2622, %v2622
    %2628 = vmatprep.subr.bf16.mxu0 %v1577
    %2629 = vmatpush1.bf16.msra.mxu0 %v1576
    %2630 = vmatprep.subr.bf16.mxu0 %v1581
    %2631 = vmatpush1.bf16.msra.mxu0 %v1580
    %2632 = vmatprep.subr.bf16.mxu0 %v1585
    %2633 = vmatpush1.bf16.msra.mxu0 %v1584
    %2634 = vmatprep.subr.bf16.mxu0 %v1589
    %2635 = vmatpush1.bf16.msra.mxu0 %v1588
    %2636 = vmatprep.subr.bf16.mxu0 %v1593
    %2637 = vmatpush1.bf16.msra.mxu0 %v1592
    %2638 = vmatprep.subr.bf16.mxu0 %v1597
    %2639 = vmatpush1.bf16.msra.mxu0 %v1596
    %2640 = vmatprep.subr.bf16.mxu0 %v1601
    %2641 = vmatpush1.bf16.msra.mxu0 %v1600
    %2642 = vmatprep.subr.bf16.mxu0 %v1605
    %2643 = vmatpush1.bf16.msra.mxu0 %v1604
    %2644 = vmatprep.subr.bf16.mxu0 0
    %2645 = vmatpush1.bf16.msra.mxu0 0
    %2646 = vmatprep.subr.bf16.mxu0 0
    %2647 = vmatpush1.bf16.msra.mxu0 0
    %2648 = vmatprep.subr.bf16.mxu0 0
    %2649 = vmatpush1.bf16.msra.mxu0 0
    %2650 = vmatprep.subr.bf16.mxu0 0
    %2651 = vmatpush1.bf16.msra.mxu0 0
    %2652 = vmatprep.subr.bf16.mxu0 0
    %2653 = vmatpush1.bf16.msra.mxu0 0
    %2654 = vmatprep.subr.bf16.mxu0 0
    %2655 = vmatpush1.bf16.msra.mxu0 0
    %2656 = vmatprep.subr.bf16.mxu0 0
    %2657 = vmatpush1.bf16.msra.mxu0 0
    %2658 = vmatprep.subr.bf16.mxu0 0
    %2659 = vmatpush1.bf16.msra.mxu0 0
    %2660 = vmatprep.mubr.bf16.mxu0 0
    %2661 = vmatmul.mubr.bf16.gmra.mrb[0].mxu0 %v2627
    %v2662 = vpop.f32.mrb[0].mxu0
    %v2663 = vadd.f32 0.0, %v2662
    %v2664 = vpop.f32.mrb[0].mxu0
    %v2665 = vadd.f32 0.0, %v2664
    %v2666 = vpop.f32.mrb[0].mxu0
    %v2667 = vpop.f32.mrb[0].mxu0
    %2668 = vdwg.mxu0
    %2669 = vmatprep.subr.bf16.mxu0 %v1579
    %2670 = vmatpush1.bf16.msra.mxu0 %v1578
    %2671 = vmatprep.subr.bf16.mxu0 %v1583
    %2672 = vmatpush1.bf16.msra.mxu0 %v1582
    %2673 = vmatprep.subr.bf16.mxu0 %v1587
    %2674 = vmatpush1.bf16.msra.mxu0 %v1586
    %2675 = vmatprep.subr.bf16.mxu0 %v1591
    %2676 = vmatpush1.bf16.msra.mxu0 %v1590
    %2677 = vmatprep.subr.bf16.mxu0 %v1595
    %2678 = vmatpush1.bf16.msra.mxu0 %v1594
    %2679 = vmatprep.subr.bf16.mxu0 %v1599
    %2680 = vmatpush1.bf16.msra.mxu0 %v1598
    %2681 = vmatprep.subr.bf16.mxu0 %v1603
    %2682 = vmatpush1.bf16.msra.mxu0 %v1602
    %2683 = vmatprep.subr.bf16.mxu0 %v1607
    %2684 = vmatpush1.bf16.msra.mxu0 %v1606
    %2685 = vmatprep.subr.bf16.mxu0 0
    %2686 = vmatpush1.bf16.msra.mxu0 0
    %2687 = vmatprep.subr.bf16.mxu0 0
    %2688 = vmatpush1.bf16.msra.mxu0 0
    %2689 = vmatprep.subr.bf16.mxu0 0
    %2690 = vmatpush1.bf16.msra.mxu0 0
    %2691 = vmatprep.subr.bf16.mxu0 0
    %2692 = vmatpush1.bf16.msra.mxu0 0
    %2693 = vmatprep.subr.bf16.mxu0 0
    %2694 = vmatpush1.bf16.msra.mxu0 0
    %2695 = vmatprep.subr.bf16.mxu0 0
    %2696 = vmatpush1.bf16.msra.mxu0 0
    %2697 = vmatprep.subr.bf16.mxu0 0
    %2698 = vmatpush1.bf16.msra.mxu0 0
    %2699 = vmatprep.subr.bf16.mxu0 0
    %2700 = vmatpush1.bf16.msra.mxu0 0
    %2701 = vmatprep.mubr.bf16.mxu0 0
    %2702 = vmatmul.mubr.bf16.gmra.mrb[0].mxu0 %v2627
    %v2703 = vpop.f32.mrb[0].mxu0
    %v2704 = vadd.f32 0.0, %v2703
    %v2705 = vpop.f32.mrb[0].mxu0
    %v2706 = vadd.f32 0.0, %v2705
    %v2707 = vpop.f32.mrb[0].mxu0
    %v2708 = vpop.f32.mrb[0].mxu0
    %2709 = vdwg.mxu0
    %v2710 = vadd.f32 %v2623, %v2663
    %v2711 = vadd.f32 %v2624, %v2665
    %v2712 = vadd.f32 %v2625, %v2704
    %v2713 = vadd.f32 %v2626, %v2706
    %v2714 = vxor.u32 %v2710, 2147483648
    %v2715 = vmul.f32 %v2714, 1.442695
    %v2716 = vpow.pop %v2715
    %v2717 = vadd.f32 %v2716, 1.0
    %v2718 = vrcp.pop %v2717
    %v2719 = vmul.f32 1.0, %v2718
    %v2720 = vxor.u32 %v2711, 2147483648
    %v2721 = vmul.f32 %v2720, 1.442695
    %v2722 = vpow.pop %v2721
    %v2723 = vadd.f32 %v2722, 1.0
    %v2724 = vrcp.pop %v2723
    %v2725 = vmul.f32 1.0, %v2724
    %v2726 = vtanh.pop %v2712
    %v2727 = vxor.u32 %v2713, 2147483648
    %v2728 = vmul.f32 %v2727, 1.442695
    %v2729 = vpow.pop %v2728
    %v2730 = vadd.f32 %v2729, 1.0
    %v2731 = vrcp.pop %v2730
    %v2732 = vmul.f32 1.0, %v2731
    %v2733 = vmul.f32 %v2725, %v2620
    %v2734 = vmul.f32 %v2719, %v2726
    %v2735 = vadd.f32 %v2733, %v2734
    %v2736 = vtanh.pop %v2735
    %v2737 = vmul.f32 %v2732, %v2736
    %v2738 = vld [vmem:[%s7] sm:$0x1]
    %v2740 = vlaneseq
    %v2741 = vshrl.u32 %v2740, 7
    %v2742 = vsub.s32 0, %v2741
    %v2743 = vrot.slane %v2738, %v2742
    %v2745 = vmul.f32 %v2737, %v2743
    %2746 = vadd.xlane.f32.xlu0 %v2745
    %v2747 = vpop.xlane.xlu0 %2746
    %v2748 = vld [vmem:[#allocation7] sm:$0x1]
    %v2750 = vlaneseq
    %v2751 = vshrl.u32 %v2750, 7
    %v2752 = vsub.s32 0, %v2751
    %v2753 = vrot.slane %v2748, %v2752
    %v2755 = vadd.f32 %v2747, %v2753
    %vm2756 = vcmask 7168
    %2757 = vst.msk [vmem:[%s9] sm:$0xff] %vm2756, %v2755
    // Predicated region
    $region38: #{tpu_custom_call.1} parent=1 // pred_check
      _
    $region39: #{tpu_custom_call.1} parent=1 // pred_check_branch
      %2759 = sbr.rel (0) target = $region41
    $region40: #{tpu_custom_call.1} parent=1 // pred_region
      _
    $region41: #{tpu_custom_call.1} parent=1 // pred_fallthru
      _
    // Predicated region
    $region42: #{tpu_custom_call.1} parent=1 // pred_check
      _
    $region43: #{tpu_custom_call.1} parent=1 // pred_check_branch
      %2761 = sbr.rel (0) target = $region45
    $region44: #{tpu_custom_call.1} parent=1 // pred_region
      _
    $region45: #{tpu_custom_call.1} parent=1 // pred_fallthru
      _
    %2762 = vsyncpa [#allocation9], 1
    %2763 = vsyncpa [#allocation11], 1
  %2764 = vsyncmov [#allocation6]
  %s2765 = vpop.sfrf %2764
  %p2766 = scmp.eq.s32.totalorder %s2765, 0
  %p2767 = pneg %p2766
  %2769 = shalt.err (%p2767)
  %s2770 = scalar_lea.sflag [#allocation6], 1
  %2771 = vsyncmov %s2770
  %s2772 = vpop.sfrf %2771
  %p2773 = scmp.eq.s32.totalorder %s2772, 0
  %p2774 = pneg %p2773
  %2776 = shalt.err (%p2774)

</llo_original>
